<compile_context>
chip_gen: v6e
topology: v6e:2x2x1
jax: 0.10.0
libtpu: 0.0.40
codegen_flags: <defaults>
</compile_context>

<pallas_src>
import functools

import jax
import jax.numpy as jnp
import numpy as np
from jax.experimental import pallas as pl
from jax.experimental.pallas import tpu as pltpu


def _round_up(x, m):
    return ((x + m - 1) // m) * m


# ---------------------------------------------------------------------------
# Fused Pallas kernel (bottleneck + 5 heads + discriminator, on the CLS token)
# ---------------------------------------------------------------------------
def _cmu_kernel(x_ref,
                wx_ref, bx_ref, wheads_ref, bheads_ref,
                w2_ref, b2_ref, w3_ref, b3_ref,
                feat_ref, heads_ref, dom_ref,
                *, bottleneck):
    x = x_ref[...]                                              # (TB, H) bf16

    # Fused matmul over the shared LHS:
    #   columns [0, BN)        -> classifier bottleneck
    #   columns [BN, BN+1024)  -> discriminator layer 1
    fused = jnp.dot(x, wx_ref[...], preferred_element_type=jnp.float32) + bx_ref[...]
    feat = fused[:, :bottleneck]
    feat_ref[...] = feat

    # 5 classifier heads fused into a single lane-dense matmul:
    #   columns [k*C, (k+1)*C) hold head k (fc, fc2, fc3, fc4, fc5); rest is padding.
    heads_ref[...] = (jnp.dot(feat.astype(jnp.bfloat16), wheads_ref[...],
                              preferred_element_type=jnp.float32) + bheads_ref[...])

    # Discriminator: GRL forward == identity; Dropout == identity (eval mode).
    h1 = jnp.maximum(fused[:, bottleneck:], 0.0).astype(jnp.bfloat16)
    h2 = jnp.dot(h1, w2_ref[...], preferred_element_type=jnp.float32) + b2_ref[...]
    h2 = jnp.maximum(h2, 0.0).astype(jnp.bfloat16)
    logit = jnp.dot(h2, w3_ref[...], preferred_element_type=jnp.float32) + b3_ref[...]
    # exact sigmoid; only lane 0 is the real output (lanes 1..127 are padding).
    dom_ref[...] = 1.0 / (1.0 + jnp.exp(-logit))


# ---------------------------------------------------------------------------
# pallas_call wrapper (takes the CLS token, already bf16)
# ---------------------------------------------------------------------------
def run_cmu(cls_state, p):
    B, H = cls_state.shape
    BN = p["wheads"].shape[0]        # bottleneck width (256)
    HEAD_PAD = p["wheads"].shape[1]  # lane-padded fused head width (>=128)
    DOM_PAD = p["w3"].shape[1]       # lane-padded discriminator output (128)

    # Batch tile: sublane aligned, <= 128 (MXU-native M; grid >= 2 for B > 128 so the
    # "parallel" axis shards across both v7x TensorCores).
    TB = min(128, _round_up(B, 8))
    B_pad = _round_up(B, TB)
    if B_pad != B:
        cls_state = jnp.pad(cls_state, ((0, B_pad - B), (0, 0)))

    grid = (B_pad // TB,)

    def const2d(arr):
        return pl.BlockSpec(arr.shape, lambda i: (0, 0))

    def batch2d(n):
        return pl.BlockSpec((TB, n), lambda i: (i, 0))

    weight_keys = ("wx", "bx", "wheads", "bheads", "w2", "b2", "w3", "b3")

    in_specs = [batch2d(H)] + [const2d(p[k]) for k in weight_keys]

    out_shapes = (
        jax.ShapeDtypeStruct((B_pad, BN), jnp.float32),        # feature
        jax.ShapeDtypeStruct((B_pad, HEAD_PAD), jnp.float32),  # fused head logits
        jax.ShapeDtypeStruct((B_pad, DOM_PAD), jnp.float32),   # padded sigmoid output
    )
    out_specs = [batch2d(BN), batch2d(HEAD_PAD), batch2d(DOM_PAD)]

    kernel = functools.partial(_cmu_kernel, bottleneck=BN)

    feat, heads, dom = pl.pallas_call(
        kernel,
        out_shape=out_shapes,
        grid=grid,
        in_specs=in_specs,
        out_specs=out_specs,
        compiler_params=pltpu.CompilerParams(
            dimension_semantics=("parallel",)),
    )(cls_state, *(p[k] for k in weight_keys))

    return feat[:B], heads[:B], dom[:B]


# ---------------------------------------------------------------------------
# CMU forward (glue in plain JAX)
# ---------------------------------------------------------------------------
def _norm(x):
    mn = jnp.min(x)
    mx = jnp.max(x)
    return (x - mn) / (mx - mn)


def _entropy(ys):
    probs = [jax.nn.softmax(y, axis=-1) for y in ys]
    ents = [jnp.sum(-q * jnp.log(q + 1e-10), axis=1) for q in probs]
    entropy_norm = np.log(ys[0].shape[1])
    return sum(ents) / (5.0 * entropy_norm)


def _consistency(ys):
    c = jnp.stack(ys, axis=1)               # [B, 5, C]
    d = jnp.std(c, axis=1, ddof=1)          # torch.std is unbiased
    return jnp.mean(d, axis=1)


def _confidence(ys):
    return sum(jnp.max(y, axis=1) for y in ys) / 5.0


@functools.partial(jax.jit, static_argnames=("num_class",))
def cmu_forward(last_hidden_state, packed_params, num_class):
    # CLS-token slice + bf16 cast happen OUTSIDE the kernel: the kernel never sees the
    # [B, S, H] sequence and its input DMA is halved relative to f32.
    cls_state = last_hidden_state[:, 0, :].astype(jnp.bfloat16)

    feature, heads, dom = run_cmu(cls_state, packed_params)

    C = num_class
    fc2 = [heads[:, k * C:(k + 1) * C] for k in range(5)]   # fc, fc2, fc3, fc4, fc5
    predict_prob = jax.nn.softmax(fc2[0], axis=-1)          # exact softmax (wrapper)
    domain_output = dom[:, :1]

    predictions = jnp.argmax(predict_prob, axis=-1)
    max_logits = jnp.max(predict_prob, axis=-1)

    # Computed (and normalized) in the reference forward but never returned;
    # kept for semantic fidelity (dead values, DCE'd by XLA).
    entropy = _norm(_entropy(fc2))
    consistency = _norm(_consistency(fc2))
    confidence = _norm(_confidence(fc2))
    _weight = (1.0 - entropy + 1.0 - consistency + confidence) / 3.0  # unused

    return {
        "predictions": predictions,
        "logits": predict_prob,     # post-softmax probabilities (matches reference key)
        "fc2_1": fc2[0],
        "fc2_2": fc2[1],
        "fc2_3": fc2[2],
        "fc2_4": fc2[3],
        "fc2_5": fc2[4],
        "max_logits": max_logits,
        "domain_output": domain_output,
        "feature": feature,
    }


# ---------------------------------------------------------------------------
# Parameter init + packing
# ---------------------------------------------------------------------------
def init_params(key, hidden_dim, num_class, bottleneck=256, disc_hidden=1024):
    ks = jax.random.split(key, 16)

    def lin(kw, fan_in, fan_out):
        # Simple deterministic init (stand-in for torch's per-layer init schemes).
        w = jax.random.normal(kw, (fan_in, fan_out), jnp.float32) * (1.0 / np.sqrt(fan_in))
        b = jnp.zeros((1, fan_out), jnp.float32)
        return w, b

    cls_params = {}
    cls_params["wbn"], cls_params["bbn"] = lin(ks[0], hidden_dim, bottleneck)
    cls_params["wfc"], cls_params["bfc"] = lin(ks[1], bottleneck, num_class)
    cls_params["wfc2"], cls_params["bfc2"] = lin(ks[2], bottleneck, num_class)
    cls_params["wfc3"], cls_params["bfc3"] = lin(ks[3], bottleneck, num_class)
    cls_params["wfc4"], cls_params["bfc4"] = lin(ks[4], bottleneck, num_class)
    cls_params["wfc5"], cls_params["bfc5"] = lin(ks[5], bottleneck, num_class)

    disc_params = {}
    disc_params["w1"], disc_params["b1"] = lin(ks[6], hidden_dim, disc_hidden)
    disc_params["w2"], disc_params["b2"] = lin(ks[7], disc_hidden, disc_hidden)
    disc_params["w3"], disc_params["b3"] = lin(ks[8], disc_hidden, 1)

    return cls_params, disc_params


def pack_params(cls_params, disc_params, num_class):
    """Fuse bottleneck+disc-layer-1 into one [H, BN+1024] weight, fuse the 5 heads into
    one lane-padded weight, pad the disc output to 128 lanes, cast weights to bf16."""
    C = num_class
    bf16 = lambda w: w.astype(jnp.bfloat16)

    # Shared-LHS fusion: bottleneck (256 cols) ++ discriminator layer 1 (1024 cols).
    wx = jnp.concatenate([cls_params["wbn"], disc_params["w1"]], axis=1)
    bx = jnp.concatenate([cls_params["bbn"], disc_params["b1"]], axis=1)

    wheads = jnp.concatenate(
        [cls_params[k] for k in ("wfc", "wfc2", "wfc3", "wfc4", "wfc5")], axis=1)
    bheads = jnp.concatenate(
        [cls_params[k] for k in ("bfc", "bfc2", "bfc3", "bfc4", "bfc5")], axis=1)
    head_pad = max(128, _round_up(5 * C, 128))
    wheads = jnp.pad(wheads, ((0, 0), (0, head_pad - 5 * C)))
    bheads = jnp.pad(bheads, ((0, 0), (0, head_pad - 5 * C)))

    dom_pad = 128
    w3 = jnp.pad(disc_params["w3"], ((0, 0), (0, dom_pad - disc_params["w3"].shape[1])))
    b3 = jnp.pad(disc_params["b3"], ((0, 0), (0, dom_pad - disc_params["b3"].shape[1])))

    return {
        "wx": bf16(wx), "bx": bx,
        "wheads": bf16(wheads), "bheads": bheads,
        "w2": bf16(disc_params["w2"]), "b2": disc_params["b2"],
        "w3": bf16(w3), "b3": b3,
    }


# ---------------------------------------------------------------------------
# Pure-JAX reference (mirrors the kernel's bf16-weight math) for a correctness check
# ---------------------------------------------------------------------------
def _jnp_reference(last_hidden_state, cls_params, disc_params):
    bf = lambda w: w.astype(jnp.bfloat16)
    x = last_hidden_state[:, 0, :].astype(jnp.bfloat16)

    feat = jnp.dot(x, bf(cls_params["wbn"]),
                   preferred_element_type=jnp.float32) + cls_params["bbn"]
    featb = feat.astype(jnp.bfloat16)
    heads = [jnp.dot(featb, bf(cls_params[w]),
                     preferred_element_type=jnp.float32) + cls_params[b]
             for w, b in (("wfc", "bfc"), ("wfc2", "bfc2"), ("wfc3", "bfc3"),
                          ("wfc4", "bfc4"), ("wfc5", "bfc5"))]
    prob = jax.nn.softmax(heads[0], axis=-1)

    h1 = jnp.maximum(jnp.dot(x, bf(disc_params["w1"]),
                             preferred_element_type=jnp.float32) + disc_params["b1"], 0.0)
    h2 = jnp.maximum(jnp.dot(h1.astype(jnp.bfloat16), bf(disc_params["w2"]),
                             preferred_element_type=jnp.float32) + disc_params["b2"], 0.0)
    logit = jnp.dot(h2.astype(jnp.bfloat16), bf(disc_params["w3"]),
                    preferred_element_type=jnp.float32) + disc_params["b3"]
    dom = 1.0 / (1.0 + jnp.exp(-logit))
    return feat, heads, prob, dom


# ---------------------------------------------------------------------------
# Driver
# ---------------------------------------------------------------------------
if __name__ == "__main__":
    BATCH, SEQ, HIDDEN, NUM_CLASS = 8, 8, 32, 4

    key = jax.random.PRNGKey(0)
    k_x, k_p = jax.random.split(key)

    # Synthetic backbone output: last_hidden_state [B, S, H]
    last_hidden_state = jax.random.normal(k_x, (BATCH, SEQ, HIDDEN), jnp.float32)
    cls_params, disc_params = init_params(k_p, HIDDEN, NUM_CLASS)
    packed = pack_params(cls_params, disc_params, NUM_CLASS)

    out = cmu_forward(last_hidden_state, packed, NUM_CLASS)
    out = jax.block_until_ready(out)

    # Shape / value sanity checks.
    assert out["logits"].shape == (BATCH, NUM_CLASS)
    assert out["predictions"].shape == (BATCH,)
    assert out["domain_output"].shape == (BATCH, 1)
    assert bool(jnp.all(jnp.isfinite(out["logits"])))
    # exact softmax in the wrapper -> rows sum to 1
    assert bool(jnp.allclose(jnp.sum(out["logits"], axis=-1), 1.0, atol=1e-3))
    assert bool(jnp.all((out["domain_output"] >= 0.0) & (out["domain_output"] <= 1.0)))

    # Numerical check against a pure-JAX reference using the same bf16 weights.
    ref_feat, ref_heads, ref_prob, ref_dom = _jnp_reference(
        last_hidden_state, cls_params, disc_params)
    np.testing.assert_allclose(np.asarray(out["feature"]), np.asarray(ref_feat),
                               rtol=2e-2, atol=2e-2)
    for k, rh in zip(("fc2_1", "fc2_2", "fc2_3", "fc2_4", "fc2_5"), ref_heads):
        np.testing.assert_allclose(np.asarray(out[k]), np.asarray(rh),
                                   rtol=2e-2, atol=2e-2)
    np.testing.assert_allclose(np.asarray(out["logits"]), np.asarray(ref_prob),
                               rtol=2e-2, atol=2e-2)
    np.testing.assert_allclose(np.asarray(out["domain_output"]), np.asarray(ref_dom),
                               rtol=2e-2, atol=2e-2)

    print("KERNEL_OK")
</pallas_src>

<mosaic_0001>
module attributes {stable_mosaic.version = 11 : i64} {
  func.func @_cmu_kernel(%arg0: i32, %arg1: memref<8x32xbf16, #tpu.memory_space<vmem>>, %arg2: memref<32x1280xbf16, #tpu.memory_space<vmem>>, %arg3: memref<1x1280xf32, #tpu.memory_space<vmem>>, %arg4: memref<256x128xbf16, #tpu.memory_space<vmem>>, %arg5: memref<1x128xf32, #tpu.memory_space<vmem>>, %arg6: memref<1024x1024xbf16, #tpu.memory_space<vmem>>, %arg7: memref<1x1024xf32, #tpu.memory_space<vmem>>, %arg8: memref<1024x128xbf16, #tpu.memory_space<vmem>>, %arg9: memref<1x128xf32, #tpu.memory_space<vmem>>, %arg10: memref<8x256xf32, #tpu.memory_space<vmem>>, %arg11: memref<8x128xf32, #tpu.memory_space<vmem>>, %arg12: memref<8x128xf32, #tpu.memory_space<vmem>>) attributes {dimension_semantics = [#tpu.dimension_semantics<parallel>], iteration_bounds = array<i64: 1>, scalar_prefetch = 0 : i64, scratch_operands = 0 : i64, tpu.core_type = #tpu.core_type<tc>, window_params = [{transform_indices = @transform_0, window_bounds = array<i64: 8, 32>}, {pipeline_mode = #tpu.pipeline_mode<synchronous>, transform_indices = @transform_1, window_bounds = array<i64: 32, 1280>}, {pipeline_mode = #tpu.pipeline_mode<synchronous>, transform_indices = @transform_2, window_bounds = array<i64: 1, 1280>}, {pipeline_mode = #tpu.pipeline_mode<synchronous>, transform_indices = @transform_3, window_bounds = array<i64: 256, 128>}, {pipeline_mode = #tpu.pipeline_mode<synchronous>, transform_indices = @transform_4, window_bounds = array<i64: 1, 128>}, {pipeline_mode = #tpu.pipeline_mode<synchronous>, transform_indices = @transform_5, window_bounds = array<i64: 1024, 1024>}, {pipeline_mode = #tpu.pipeline_mode<synchronous>, transform_indices = @transform_6, window_bounds = array<i64: 1, 1024>}, {pipeline_mode = #tpu.pipeline_mode<synchronous>, transform_indices = @transform_7, window_bounds = array<i64: 1024, 128>}, {pipeline_mode = #tpu.pipeline_mode<synchronous>, transform_indices = @transform_8, window_bounds = array<i64: 1, 128>}, {transform_indices = @transform_9, window_bounds = array<i64: 8, 256>}, {transform_indices = @transform_10, window_bounds = array<i64: 8, 128>}, {transform_indices = @transform_11, window_bounds = array<i64: 8, 128>}]} {
    %c0 = arith.constant 0 : index
    %c0_0 = arith.constant 0 : index
    %0 = vector.load %arg1[%c0, %c0_0] : memref<8x32xbf16, #tpu.memory_space<vmem>>, vector<8x32xbf16>
    %c0_1 = arith.constant 0 : index
    %c0_2 = arith.constant 0 : index
    %1 = vector.load %arg2[%c0_1, %c0_2] : memref<32x1280xbf16, #tpu.memory_space<vmem>>, vector<32x1280xbf16>
    %cst = arith.constant dense<0.000000e+00> : vector<8x1280xf32>
    %2 = tpu.matmul %0, %1, %cst {dimension_numbers = #tpu.dot_dimension_numbers<[1], [0], [0], [1], [0, 0, 1, 1], [], []>} : vector<8x32xbf16>, vector<32x1280xbf16>, vector<8x1280xf32> -> vector<8x1280xf32>
    %c0_3 = arith.constant 0 : index
    %c0_4 = arith.constant 0 : index
    %3 = vector.load %arg3[%c0_3, %c0_4] : memref<1x1280xf32, #tpu.memory_space<vmem>>, vector<1x1280xf32>
    %4 = vector.broadcast %3 : vector<1x1280xf32> to vector<8x1280xf32>
    %5 = arith.addf %2, %4 : vector<8x1280xf32>
    %6 = vector.extract_strided_slice %5 {offsets = [0, 0], sizes = [8, 256], strides = [1, 1]} : vector<8x1280xf32> to vector<8x256xf32>
    %c0_5 = arith.constant 0 : index
    %c0_6 = arith.constant 0 : index
    %7 = vector.load %arg10[%c0_5, %c0_6] : memref<8x256xf32, #tpu.memory_space<vmem>>, vector<8x256xf32>
    tpu.vector_store %arg10[%c0_5, %c0_6], %6 {strides = array<i32>} : memref<8x256xf32, #tpu.memory_space<vmem>>, vector<8x256xf32>,
    %8 = arith.truncf %6 : vector<8x256xf32> to vector<8x256xbf16>
    %c0_7 = arith.constant 0 : index
    %c0_8 = arith.constant 0 : index
    %9 = vector.load %arg4[%c0_7, %c0_8] : memref<256x128xbf16, #tpu.memory_space<vmem>>, vector<256x128xbf16>
    %cst_9 = arith.constant dense<0.000000e+00> : vector<8x128xf32>
    %10 = tpu.matmul %8, %9, %cst_9 {dimension_numbers = #tpu.dot_dimension_numbers<[1], [0], [0], [1], [0, 0, 1, 1], [], []>} : vector<8x256xbf16>, vector<256x128xbf16>, vector<8x128xf32> -> vector<8x128xf32>
    %c0_10 = arith.constant 0 : index
    %c0_11 = arith.constant 0 : index
    %11 = vector.load %arg5[%c0_10, %c0_11] : memref<1x128xf32, #tpu.memory_space<vmem>>, vector<1x128xf32>
    %12 = vector.broadcast %11 : vector<1x128xf32> to vector<8x128xf32>
    %13 = arith.addf %10, %12 : vector<8x128xf32>
    %c0_12 = arith.constant 0 : index
    %c0_13 = arith.constant 0 : index
    %14 = vector.load %arg11[%c0_12, %c0_13] : memref<8x128xf32, #tpu.memory_space<vmem>>, vector<8x128xf32>
    tpu.vector_store %arg11[%c0_12, %c0_13], %13 {strides = array<i32>} : memref<8x128xf32, #tpu.memory_space<vmem>>, vector<8x128xf32>,
    %15 = vector.extract_strided_slice %5 {offsets = [0, 256], sizes = [8, 1024], strides = [1, 1]} : vector<8x1280xf32> to vector<8x1024xf32>
    %cst_14 = arith.constant 0.000000e+00 : f32
    %16 = vector.broadcast %cst_14 : f32 to vector<8x1024xf32>
    %17 = arith.maximumf %15, %16 : vector<8x1024xf32>
    %18 = arith.truncf %17 : vector<8x1024xf32> to vector<8x1024xbf16>
    %c0_15 = arith.constant 0 : index
    %c0_16 = arith.constant 0 : index
    %19 = vector.load %arg6[%c0_15, %c0_16] : memref<1024x1024xbf16, #tpu.memory_space<vmem>>, vector<1024x1024xbf16>
    %cst_17 = arith.constant dense<0.000000e+00> : vector<8x1024xf32>
    %20 = tpu.matmul %18, %19, %cst_17 {dimension_numbers = #tpu.dot_dimension_numbers<[1], [0], [0], [1], [0, 0, 1, 1], [], []>} : vector<8x1024xbf16>, vector<1024x1024xbf16>, vector<8x1024xf32> -> vector<8x1024xf32>
    %c0_18 = arith.constant 0 : index
    %c0_19 = arith.constant 0 : index
    %21 = vector.load %arg7[%c0_18, %c0_19] : memref<1x1024xf32, #tpu.memory_space<vmem>>, vector<1x1024xf32>
    %22 = vector.broadcast %21 : vector<1x1024xf32> to vector<8x1024xf32>
    %23 = arith.addf %20, %22 : vector<8x1024xf32>
    %cst_20 = arith.constant 0.000000e+00 : f32
    %24 = vector.broadcast %cst_20 : f32 to vector<8x1024xf32>
    %25 = arith.maximumf %23, %24 : vector<8x1024xf32>
    %26 = arith.truncf %25 : vector<8x1024xf32> to vector<8x1024xbf16>
    %c0_21 = arith.constant 0 : index
    %c0_22 = arith.constant 0 : index
    %27 = vector.load %arg8[%c0_21, %c0_22] : memref<1024x128xbf16, #tpu.memory_space<vmem>>, vector<1024x128xbf16>
    %cst_23 = arith.constant dense<0.000000e+00> : vector<8x128xf32>
    %28 = tpu.matmul %26, %27, %cst_23 {dimension_numbers = #tpu.dot_dimension_numbers<[1], [0], [0], [1], [0, 0, 1, 1], [], []>} : vector<8x1024xbf16>, vector<1024x128xbf16>, vector<8x128xf32> -> vector<8x128xf32>
    %c0_24 = arith.constant 0 : index
    %c0_25 = arith.constant 0 : index
    %29 = vector.load %arg9[%c0_24, %c0_25] : memref<1x128xf32, #tpu.memory_space<vmem>>, vector<1x128xf32>
    %30 = vector.broadcast %29 : vector<1x128xf32> to vector<8x128xf32>
    %31 = arith.addf %28, %30 : vector<8x128xf32>
    %cst_26 = arith.constant 0.000000e+00 : f32
    %32 = vector.broadcast %cst_26 : f32 to vector<8x128xf32>
    %33 = arith.subf %32, %31 : vector<8x128xf32>
    %34 = math.exp %33 : vector<8x128xf32>
    %cst_27 = arith.constant 1.000000e+00 : f32
    %35 = vector.broadcast %cst_27 : f32 to vector<8x128xf32>
    %36 = arith.addf %35, %34 : vector<8x128xf32>
    %cst_28 = arith.constant 1.000000e+00 : f32
    %37 = vector.broadcast %cst_28 : f32 to vector<8x128xf32>
    %38 = arith.divf %37, %36 : vector<8x128xf32>
    %c0_29 = arith.constant 0 : index
    %c0_30 = arith.constant 0 : index
    %39 = vector.load %arg12[%c0_29, %c0_30] : memref<8x128xf32, #tpu.memory_space<vmem>>, vector<8x128xf32>
    tpu.vector_store %arg12[%c0_29, %c0_30], %38 {strides = array<i32>} : memref<8x128xf32, #tpu.memory_space<vmem>>, vector<8x128xf32>,
    return
  }
  func.func @transform_0(%arg0: i32) -> (i32, i32) {
    %c0_i32 = arith.constant 0 : i32
    %c0_i32_0 = arith.constant 0 : i32
    return %arg0, %c0_i32 : i32, i32
  }
  func.func @transform_1(%arg0: i32) -> (i32, i32) {
    %c0_i32 = arith.constant 0 : i32
    %c0_i32_0 = arith.constant 0 : i32
    %c0_i32_1 = arith.constant 0 : i32
    return %c0_i32, %c0_i32_0 : i32, i32
  }
  func.func @transform_2(%arg0: i32) -> (i32, i32) {
    %c0_i32 = arith.constant 0 : i32
    %c0_i32_0 = arith.constant 0 : i32
    %c0_i32_1 = arith.constant 0 : i32
    return %c0_i32, %c0_i32_0 : i32, i32
  }
  func.func @transform_3(%arg0: i32) -> (i32, i32) {
    %c0_i32 = arith.constant 0 : i32
    %c0_i32_0 = arith.constant 0 : i32
    %c0_i32_1 = arith.constant 0 : i32
    return %c0_i32, %c0_i32_0 : i32, i32
  }
  func.func @transform_4(%arg0: i32) -> (i32, i32) {
    %c0_i32 = arith.constant 0 : i32
    %c0_i32_0 = arith.constant 0 : i32
    %c0_i32_1 = arith.constant 0 : i32
    return %c0_i32, %c0_i32_0 : i32, i32
  }
  func.func @transform_5(%arg0: i32) -> (i32, i32) {
    %c0_i32 = arith.constant 0 : i32
    %c0_i32_0 = arith.constant 0 : i32
    %c0_i32_1 = arith.constant 0 : i32
    return %c0_i32, %c0_i32_0 : i32, i32
  }
  func.func @transform_6(%arg0: i32) -> (i32, i32) {
    %c0_i32 = arith.constant 0 : i32
    %c0_i32_0 = arith.constant 0 : i32
    %c0_i32_1 = arith.constant 0 : i32
    return %c0_i32, %c0_i32_0 : i32, i32
  }
  func.func @transform_7(%arg0: i32) -> (i32, i32) {
    %c0_i32 = arith.constant 0 : i32
    %c0_i32_0 = arith.constant 0 : i32
    %c0_i32_1 = arith.constant 0 : i32
    return %c0_i32, %c0_i32_0 : i32, i32
  }
  func.func @transform_8(%arg0: i32) -> (i32, i32) {
    %c0_i32 = arith.constant 0 : i32
    %c0_i32_0 = arith.constant 0 : i32
    %c0_i32_1 = arith.constant 0 : i32
    return %c0_i32, %c0_i32_0 : i32, i32
  }
  func.func @transform_9(%arg0: i32) -> (i32, i32) {
    %c0_i32 = arith.constant 0 : i32
    %c0_i32_0 = arith.constant 0 : i32
    return %arg0, %c0_i32 : i32, i32
  }
  func.func @transform_10(%arg0: i32) -> (i32, i32) {
    %c0_i32 = arith.constant 0 : i32
    %c0_i32_0 = arith.constant 0 : i32
    return %arg0, %c0_i32 : i32, i32
  }
  func.func @transform_11(%arg0: i32) -> (i32, i32) {
    %c0_i32 = arith.constant 0 : i32
    %c0_i32_0 = arith.constant 0 : i32
    return %arg0, %c0_i32 : i32, i32
  }
}

</mosaic_0001>

<llo_original>
// kernel: cmu_forward.1
$region0: #{cmu_forward.1}
  #allocation0 [shape = 'u32[]', space=smem, size = 0x4, offset = 0x4, fixed_abs, tag = 'smem constant byte address 0x4 - core index']
  #allocation1 [shape = 'u32[144,128]{1,0:T(1,128)}', space=vmem, size = 0x12000, scoped, tag = 'internal scratch']
  %s0 = inlined_call_operand.vmem [shape: bf16[8,32], index: 0, kind: input, shape index: {}]
  %s1 = inlined_call_operand.hbm [shape: bf16[32,1280], index: 1, kind: input, shape index: {}]
  %s2 = inlined_call_operand.hbm [shape: f32[1,1280], index: 2, kind: input, shape index: {}]
  %s3 = inlined_call_operand.hbm [shape: bf16[256,128], index: 3, kind: input, shape index: {}]
  %s4 = inlined_call_operand.hbm [shape: f32[1,128], index: 4, kind: input, shape index: {}]
  %s5 = inlined_call_operand.hbm [shape: bf16[1024,1024], index: 5, kind: input, shape index: {}]
  %s6 = inlined_call_operand.hbm [shape: f32[1,1024], index: 6, kind: input, shape index: {}]
  %s7 = inlined_call_operand.hbm [shape: bf16[1024,128], index: 7, kind: input, shape index: {}]
  %s8 = inlined_call_operand.hbm [shape: f32[1,128], index: 8, kind: input, shape index: {}]
  %s9 = inlined_call_operand.hbm [shape: f32[8,256], index: 9, kind: output, shape index: {0}]
  %s10 = inlined_call_operand.vmem [shape: f32[8,128], index: 10, kind: output, shape index: {1}]
  %s11 = inlined_call_operand.vmem [shape: f32[8,128], index: 11, kind: output, shape index: {2}]
  %12 = xla_tuple %s9, %s10, %s11
  %s13 = sld [smem:[#allocation0]]
  $region94: #{cmu_forward.1} parent=0
    _
  %s15 = ssub.s32 1, %s13
  %s16 = scalar_select 0, %s15, %s13
  $region1: #{cmu_forward.1} parent=0
    #allocation2 [shape = 'u8[81920]{0}', space=vmem, size = 0x14000, scoped, tag = 'input window, operand 1, single buffered']
    #allocation3 [shape = 's32[1]{0}', space=sflag, size = 0x4, scoped, tag = 'scoped memory for cmu_forward.1']
    #allocation4 [shape = 's32[1]{0}', space=sflag, size = 0x4, scoped, tag = 'scoped memory for cmu_forward.1']
    #allocation5 [shape = 'u8[5120]{0}', space=vmem, size = 0x1400, scoped, tag = 'input window, operand 2, single buffered']
    #allocation6 [shape = 's32[1]{0}', space=sflag, size = 0x4, scoped, tag = 'scoped memory for cmu_forward.1']
    #allocation7 [shape = 'u8[65536]{0}', space=vmem, size = 0x10000, scoped, tag = 'input window, operand 3, single buffered']
    #allocation8 [shape = 'u8[512]{0}', space=vmem, size = 0x400, scoped, tag = 'input window, operand 4, single buffered']
    #allocation9 [shape = 's32[1]{0}', space=sflag, size = 0x4, scoped, tag = 'scoped memory for cmu_forward.1']
    #allocation10 [shape = 'u8[2097152]{0}', space=vmem, size = 0x200000, scoped, tag = 'input window, operand 5, single buffered']
    #allocation11 [shape = 'u8[4096]{0}', space=vmem, size = 0x1000, scoped, tag = 'input window, operand 6, single buffered']
    #allocation12 [shape = 's32[1]{0}', space=sflag, size = 0x4, scoped, tag = 'scoped memory for cmu_forward.1']
    #allocation13 [shape = 'u8[262144]{0}', space=vmem, size = 0x40000, scoped, tag = 'input window, operand 7, single buffered']
    #allocation14 [shape = 'u8[512]{0}', space=vmem, size = 0x400, scoped, tag = 'input window, operand 8, single buffered']
    #allocation15 [shape = 's32[1]{0}', space=sflag, size = 0x4, scoped, tag = 'scoped memory for cmu_forward.1']
    #allocation16 [shape = 'u8[8192]{0}', space=vmem, size = 0x2000, scoped, tag = 'output window, operand 0, single buffered']
    %17 = vsyncpa [#allocation3], 0
    %18 = vsyncpa [#allocation6], 0
    %19 = vsyncpa [#allocation9], 0
    %20 = vsyncpa [#allocation12], 0
    %21 = vsyncpa [#allocation15], 0
    %22 = vsyncpa [#allocation4], 0
    // Predicated region
    $region2: #{cmu_forward.1} parent=1 // pred_check
      _
    $region3: #{cmu_forward.1} parent=1 // pred_check_branch
      %24 = sbr.rel (0) target = $region5
    $region4: #{cmu_forward.1} parent=1 // pred_region
      _
    $region5: #{cmu_forward.1} parent=1 // pred_fallthru
      _
    // Predicated region
    $region6: #{cmu_forward.1} parent=1 // pred_check
      _
    $region7: #{cmu_forward.1} parent=1 // pred_check_branch
      %26 = sbr.rel (0) target = $region9
    $region8: #{cmu_forward.1} parent=1 // pred_region
      %s28 = ssub.s32 2560, 2560
      %29 = vsyncadd [#allocation3], %s28
      %s30 = sshll.u32 [#allocation2], 4
      %s31 = int_to_ptr.vmem [resolvable:$true] %s30
      %36 = dma.hbm_to_vmem [thread:$0]  %s1, 2560, %s31, [#allocation3], 640, 640, 40
    $region9: #{cmu_forward.1} parent=1 // pred_fallthru
      _
    // Predicated region
    $region10: #{cmu_forward.1} parent=1 // pred_check
      _
    $region11: #{cmu_forward.1} parent=1 // pred_check_branch
      %38 = sbr.rel (0) target = $region13
    $region12: #{cmu_forward.1} parent=1 // pred_region
      %s40 = ssub.s32 160, 160
      %41 = vsyncadd [#allocation6], %s40
      %s43 = sshll.u32 [#allocation5], 4
      %s44 = int_to_ptr.vmem [resolvable:$true] %s43
      %46 = dma.hbm_to_vmem [thread:$0]  %s2, 160, %s44, [#allocation6]
    $region13: #{cmu_forward.1} parent=1 // pred_fallthru
      _
    // Predicated region
    $region14: #{cmu_forward.1} parent=1 // pred_check
      _
    $region15: #{cmu_forward.1} parent=1 // pred_check_branch
      %48 = sbr.rel (0) target = $region17
    $region16: #{cmu_forward.1} parent=1 // pred_region
      %s50 = ssub.s32 2048, 2048
      %51 = vsyncadd [#allocation6], %s50
      %s52 = sshll.u32 [#allocation7], 4
      %s53 = int_to_ptr.vmem [resolvable:$true] %s52
      %58 = dma.hbm_to_vmem [thread:$0]  %s3, 2048, %s53, [#allocation6], 64, 64, 4
    $region17: #{cmu_forward.1} parent=1 // pred_fallthru
      _
    // Predicated region
    $region18: #{cmu_forward.1} parent=1 // pred_check
      _
    $region19: #{cmu_forward.1} parent=1 // pred_check_branch
      %60 = sbr.rel (0) target = $region21
    $region20: #{cmu_forward.1} parent=1 // pred_region
      %s62 = ssub.s32 16, 16
      %63 = vsyncadd [#allocation9], %s62
      %s65 = sshll.u32 [#allocation8], 4
      %s66 = int_to_ptr.vmem [resolvable:$true] %s65
      %68 = dma.hbm_to_vmem [thread:$0]  %s4, 16, %s66, [#allocation9]
    $region21: #{cmu_forward.1} parent=1 // pred_fallthru
      _
    // Predicated region
    $region22: #{cmu_forward.1} parent=1 // pred_check
      _
    $region23: #{cmu_forward.1} parent=1 // pred_check_branch
      %70 = sbr.rel (0) target = $region25
    $region24: #{cmu_forward.1} parent=1 // pred_region
      %s72 = ssub.s32 65536, 65536
      %73 = vsyncadd [#allocation9], %s72
      %s74 = sshll.u32 [#allocation10], 4
      %s75 = int_to_ptr.vmem [resolvable:$true] %s74
      %80 = dma.hbm_to_vmem [thread:$0]  %s5, 65536, %s75, [#allocation9], 512, 512, 32
    $region25: #{cmu_forward.1} parent=1 // pred_fallthru
      _
    // Predicated region
    $region26: #{cmu_forward.1} parent=1 // pred_check
      _
    $region27: #{cmu_forward.1} parent=1 // pred_check_branch
      %82 = sbr.rel (0) target = $region29
    $region28: #{cmu_forward.1} parent=1 // pred_region
      %s84 = ssub.s32 128, 128
      %85 = vsyncadd [#allocation12], %s84
      %s87 = sshll.u32 [#allocation11], 4
      %s88 = int_to_ptr.vmem [resolvable:$true] %s87
      %90 = dma.hbm_to_vmem [thread:$0]  %s6, 128, %s88, [#allocation12]
    $region29: #{cmu_forward.1} parent=1 // pred_fallthru
      _
    // Predicated region
    $region30: #{cmu_forward.1} parent=1 // pred_check
      _
    $region31: #{cmu_forward.1} parent=1 // pred_check_branch
      %92 = sbr.rel (0) target = $region33
    $region32: #{cmu_forward.1} parent=1 // pred_region
      %s94 = ssub.s32 8192, 8192
      %95 = vsyncadd [#allocation12], %s94
      %s96 = sshll.u32 [#allocation13], 4
      %s97 = int_to_ptr.vmem [resolvable:$true] %s96
      %102 = dma.hbm_to_vmem [thread:$0]  %s7, 8192, %s97, [#allocation12], 64, 64, 4
    $region33: #{cmu_forward.1} parent=1 // pred_fallthru
      _
    // Predicated region
    $region34: #{cmu_forward.1} parent=1 // pred_check
      _
    $region35: #{cmu_forward.1} parent=1 // pred_check_branch
      %104 = sbr.rel (0) target = $region37
    $region36: #{cmu_forward.1} parent=1 // pred_region
      %s106 = ssub.s32 16, 16
      %107 = vsyncadd [#allocation15], %s106
      %s109 = sshll.u32 [#allocation14], 4
      %s110 = int_to_ptr.vmem [resolvable:$true] %s109
      %112 = dma.hbm_to_vmem [thread:$0]  %s8, 16, %s110, [#allocation15]
    $region37: #{cmu_forward.1} parent=1 // pred_fallthru
      _
    // Predicated region
    $region38: #{cmu_forward.1} parent=1 // pred_check
      _
    $region39: #{cmu_forward.1} parent=1 // pred_check_branch
      %114 = sbr.rel (0) target = $region41
    $region40: #{cmu_forward.1} parent=1 // pred_region
      %115 = dma.done [#allocation3], 2560
    $region41: #{cmu_forward.1} parent=1 // pred_fallthru
      _
    // Predicated region
    $region42: #{cmu_forward.1} parent=1 // pred_check
      _
    $region43: #{cmu_forward.1} parent=1 // pred_check_branch
      %117 = sbr.rel (0) target = $region45
    $region44: #{cmu_forward.1} parent=1 // pred_region
      %118 = dma.done [#allocation6], 160
    $region45: #{cmu_forward.1} parent=1 // pred_fallthru
      _
    // Predicated region
    $region46: #{cmu_forward.1} parent=1 // pred_check
      _
    $region47: #{cmu_forward.1} parent=1 // pred_check_branch
      %120 = sbr.rel (0) target = $region49
    $region48: #{cmu_forward.1} parent=1 // pred_region
      %121 = dma.done [#allocation6], 2048
    $region49: #{cmu_forward.1} parent=1 // pred_fallthru
      _
    // Predicated region
    $region50: #{cmu_forward.1} parent=1 // pred_check
      _
    $region51: #{cmu_forward.1} parent=1 // pred_check_branch
      %123 = sbr.rel (0) target = $region53
    $region52: #{cmu_forward.1} parent=1 // pred_region
      %124 = dma.done [#allocation9], 16
    $region53: #{cmu_forward.1} parent=1 // pred_fallthru
      _
    // Predicated region
    $region54: #{cmu_forward.1} parent=1 // pred_check
      _
    $region55: #{cmu_forward.1} parent=1 // pred_check_branch
      %126 = sbr.rel (0) target = $region57
    $region56: #{cmu_forward.1} parent=1 // pred_region
      %127 = dma.done [#allocation9], 65536
    $region57: #{cmu_forward.1} parent=1 // pred_fallthru
      _
    // Predicated region
    $region58: #{cmu_forward.1} parent=1 // pred_check
      _
    $region59: #{cmu_forward.1} parent=1 // pred_check_branch
      %129 = sbr.rel (0) target = $region61
    $region60: #{cmu_forward.1} parent=1 // pred_region
      %130 = dma.done [#allocation12], 128
    $region61: #{cmu_forward.1} parent=1 // pred_fallthru
      _
    // Predicated region
    $region62: #{cmu_forward.1} parent=1 // pred_check
      _
    $region63: #{cmu_forward.1} parent=1 // pred_check_branch
      %132 = sbr.rel (0) target = $region65
    $region64: #{cmu_forward.1} parent=1 // pred_region
      %133 = dma.done [#allocation12], 8192
    $region65: #{cmu_forward.1} parent=1 // pred_fallthru
      _
    // Predicated region
    $region66: #{cmu_forward.1} parent=1 // pred_check
      _
    $region67: #{cmu_forward.1} parent=1 // pred_check_branch
      %135 = sbr.rel (0) target = $region69
    $region68: #{cmu_forward.1} parent=1 // pred_region
      %136 = dma.done [#allocation15], 16
    $region69: #{cmu_forward.1} parent=1 // pred_fallthru
      _
    %v138 = vld [vmem:[%s0] sm:$0xf]
    %v139 = vld [vmem:[#allocation2] sm:$0xff]
    %v140 = vld [vmem:[#allocation2 + $0x8] sm:$0xff]
    %v141 = vld [vmem:[#allocation2 + $0x10] sm:$0xff]
    %v142 = vld [vmem:[#allocation2 + $0x18] sm:$0xff]
    %v143 = vld [vmem:[#allocation2 + $0x20] sm:$0xff]
    %v144 = vld [vmem:[#allocation2 + $0x28] sm:$0xff]
    %v145 = vld [vmem:[#allocation2 + $0x30] sm:$0xff]
    %v146 = vld [vmem:[#allocation2 + $0x38] sm:$0xff]
    %v147 = vld [vmem:[#allocation2 + $0x40] sm:$0xff]
    %v148 = vld [vmem:[#allocation2 + $0x48] sm:$0xff]
    %v149 = vld [vmem:[#allocation2 + $0x50] sm:$0xff]
    %v150 = vld [vmem:[#allocation2 + $0x58] sm:$0xff]
    %v151 = vld [vmem:[#allocation2 + $0x60] sm:$0xff]
    %v152 = vld [vmem:[#allocation2 + $0x68] sm:$0xff]
    %v153 = vld [vmem:[#allocation2 + $0x70] sm:$0xff]
    %v154 = vld [vmem:[#allocation2 + $0x78] sm:$0xff]
    %v155 = vld [vmem:[#allocation2 + $0x80] sm:$0xff]
    %v156 = vld [vmem:[#allocation2 + $0x88] sm:$0xff]
    %v157 = vld [vmem:[#allocation2 + $0x90] sm:$0xff]
    %v158 = vld [vmem:[#allocation2 + $0x98] sm:$0xff]
    %v159 = vld [vmem:[#allocation5] sm:$0xff]
    %v160 = vld [vmem:[#allocation5 + $0x8] sm:$0x3]
    %v163 = vlaneseq
    %v164 = vshrl.u32 %v163, 7
    %v165 = vsub.s32 0, %v164
    %v166 = vrot.slane %v159, %v165
    %v167 = vlaneseq
    %v168 = vshrl.u32 %v167, 7
    %v169 = vsub.s32 1, %v168
    %v170 = vrot.slane %v159, %v169
    %v171 = vlaneseq
    %v172 = vshrl.u32 %v171, 7
    %v173 = vsub.s32 2, %v172
    %v174 = vrot.slane %v159, %v173
    %v175 = vlaneseq
    %v176 = vshrl.u32 %v175, 7
    %v177 = vsub.s32 3, %v176
    %v178 = vrot.slane %v159, %v177
    %v179 = vlaneseq
    %v180 = vshrl.u32 %v179, 7
    %v181 = vsub.s32 4, %v180
    %v182 = vrot.slane %v159, %v181
    %v183 = vlaneseq
    %v184 = vshrl.u32 %v183, 7
    %v185 = vsub.s32 5, %v184
    %v186 = vrot.slane %v159, %v185
    %v187 = vlaneseq
    %v188 = vshrl.u32 %v187, 7
    %v189 = vsub.s32 6, %v188
    %v190 = vrot.slane %v159, %v189
    %v191 = vlaneseq
    %v192 = vshrl.u32 %v191, 7
    %v193 = vsub.s32 7, %v192
    %v194 = vrot.slane %v159, %v193
    %v195 = vlaneseq
    %v196 = vshrl.u32 %v195, 7
    %v197 = vsub.s32 0, %v196
    %v198 = vrot.slane %v160, %v197
    %v199 = vlaneseq
    %v200 = vshrl.u32 %v199, 7
    %v201 = vsub.s32 1, %v200
    %v202 = vrot.slane %v160, %v201
    %v233 = vunpack.c.l.b16 %v139
    %v234 = vunpack.c.h.b16 %v139
    %v235 = vunpack.c.l.b16 %v140
    %v236 = vunpack.c.h.b16 %v140
    %v237 = vunpack.c.l.b16 %v141
    %v238 = vunpack.c.h.b16 %v141
    %v239 = vunpack.c.l.b16 %v142
    %v240 = vunpack.c.h.b16 %v142
    %v241 = vunpack.c.l.b16 %v143
    %v242 = vunpack.c.h.b16 %v143
    %v243 = vunpack.c.l.b16 %v144
    %v244 = vunpack.c.h.b16 %v144
    %v245 = vunpack.c.l.b16 %v145
    %v246 = vunpack.c.h.b16 %v145
    %v247 = vunpack.c.l.b16 %v146
    %v248 = vunpack.c.h.b16 %v146
    %v249 = vunpack.c.l.b16 %v147
    %v250 = vunpack.c.h.b16 %v147
    %v251 = vunpack.c.l.b16 %v148
    %v252 = vunpack.c.h.b16 %v148
    %v253 = vunpack.c.l.b16 %v149
    %v254 = vunpack.c.h.b16 %v149
    %v255 = vunpack.c.l.b16 %v150
    %v256 = vunpack.c.h.b16 %v150
    %v257 = vunpack.c.l.b16 %v151
    %v258 = vunpack.c.h.b16 %v151
    %v259 = vunpack.c.l.b16 %v152
    %v260 = vunpack.c.h.b16 %v152
    %v261 = vunpack.c.l.b16 %v153
    %v262 = vunpack.c.h.b16 %v153
    %v263 = vunpack.c.l.b16 %v154
    %v264 = vunpack.c.h.b16 %v154
    %v265 = vunpack.c.l.b16 %v155
    %v266 = vunpack.c.h.b16 %v155
    %v267 = vunpack.c.l.b16 %v156
    %v268 = vunpack.c.h.b16 %v156
    %v269 = vunpack.c.l.b16 %v157
    %v270 = vunpack.c.h.b16 %v157
    %v271 = vunpack.c.l.b16 %v158
    %v272 = vunpack.c.h.b16 %v158
    %v273 = vpack.c.b16 %v243, %v233
    %v274 = vpack.c.b16 %v244, %v234
    %v275 = vpack.c.b16 %v245, %v235
    %v276 = vpack.c.b16 %v246, %v236
    %v277 = vpack.c.b16 %v247, %v237
    %v278 = vpack.c.b16 %v248, %v238
    %v279 = vpack.c.b16 %v249, %v239
    %v280 = vpack.c.b16 %v250, %v240
    %v281 = vpack.c.b16 %v251, %v241
    %v282 = vpack.c.b16 %v252, %v242
    %v283 = vpack.c.b16 %v263, %v253
    %v284 = vpack.c.b16 %v264, %v254
    %v285 = vpack.c.b16 %v265, %v255
    %v286 = vpack.c.b16 %v266, %v256
    %v287 = vpack.c.b16 %v267, %v257
    %v288 = vpack.c.b16 %v268, %v258
    %v289 = vpack.c.b16 %v269, %v259
    %v290 = vpack.c.b16 %v270, %v260
    %v291 = vpack.c.b16 %v271, %v261
    %v292 = vpack.c.b16 %v272, %v262
    %vm313 = vcmask 261120
    %v315 = vsel %vm313, %v138, 0
    %317 = vmatprep.subr.bf16.mxu0 0
    %318 = vmatpush1.bf16.msra.mxu0 0
    %319 = vmatprep.subr.bf16.mxu0 0
    %320 = vmatpush1.bf16.msra.mxu0 0
    %321 = vmatprep.subr.bf16.mxu0 0
    %322 = vmatpush1.bf16.msra.mxu0 0
    %323 = vmatprep.subr.bf16.mxu0 0
    %324 = vmatpush1.bf16.msra.mxu0 0
    %325 = vmatprep.subr.bf16.mxu0 0
    %326 = vmatpush1.bf16.msra.mxu0 0
    %327 = vmatprep.subr.bf16.mxu0 0
    %328 = vmatpush1.bf16.msra.mxu0 0
    %329 = vmatprep.subr.bf16.mxu0 %v284
    %330 = vmatpush1.bf16.msra.mxu0 %v283
    %331 = vmatprep.subr.bf16.mxu0 %v274
    %332 = vmatpush1.bf16.msra.mxu0 %v273
    %333 = vmatprep.subr.bf16.mxu0 0
    %334 = vmatpush2.bf16.msra.mxu0 0
    %335 = vmatprep.subr.bf16.mxu0 0
    %336 = vmatpush2.bf16.msra.mxu0 0
    %337 = vmatprep.subr.bf16.mxu0 0
    %338 = vmatpush2.bf16.msra.mxu0 0
    %339 = vmatprep.subr.bf16.mxu0 0
    %340 = vmatpush2.bf16.msra.mxu0 0
    %341 = vmatprep.subr.bf16.mxu0 0
    %342 = vmatpush2.bf16.msra.mxu0 0
    %343 = vmatprep.subr.bf16.mxu0 0
    %344 = vmatpush2.bf16.msra.mxu0 0
    %345 = vmatprep.subr.bf16.mxu0 0
    %346 = vmatpush2.bf16.msra.mxu0 0
    %347 = vmatprep.subr.bf16.mxu0 0
    %348 = vmatpush2.bf16.msra.mxu0 0
    %349 = vmatprep.mubr.bf16.mxu0 0
    %350 = vmatmul.mubr.bf16.gmra.mxu0 %v315
    %v351 = vpop.f32.mrf.mxu0
    %v352 = vadd.f32 %v166, %v351
    %v353 = vpop.f32.mrf.mxu0
    %v354 = vadd.f32 %v170, %v353
    %v355 = vpop.f32.mrf.mxu0
    %v356 = vpop.f32.mrf.mxu0
    %357 = vdwg.mxu0
    %358 = vmatprep.subr.bf16.mxu0 0
    %359 = vmatpush1.bf16.msra.mxu0 0
    %360 = vmatprep.subr.bf16.mxu0 0
    %361 = vmatpush1.bf16.msra.mxu0 0
    %362 = vmatprep.subr.bf16.mxu0 0
    %363 = vmatpush1.bf16.msra.mxu0 0
    %364 = vmatprep.subr.bf16.mxu0 0
    %365 = vmatpush1.bf16.msra.mxu0 0
    %366 = vmatprep.subr.bf16.mxu0 0
    %367 = vmatpush1.bf16.msra.mxu0 0
    %368 = vmatprep.subr.bf16.mxu0 0
    %369 = vmatpush1.bf16.msra.mxu0 0
    %370 = vmatprep.subr.bf16.mxu0 %v286
    %371 = vmatpush1.bf16.msra.mxu0 %v285
    %372 = vmatprep.subr.bf16.mxu0 %v276
    %373 = vmatpush1.bf16.msra.mxu0 %v275
    %374 = vmatprep.subr.bf16.mxu0 0
    %375 = vmatpush2.bf16.msra.mxu0 0
    %376 = vmatprep.subr.bf16.mxu0 0
    %377 = vmatpush2.bf16.msra.mxu0 0
    %378 = vmatprep.subr.bf16.mxu0 0
    %379 = vmatpush2.bf16.msra.mxu0 0
    %380 = vmatprep.subr.bf16.mxu0 0
    %381 = vmatpush2.bf16.msra.mxu0 0
    %382 = vmatprep.subr.bf16.mxu0 0
    %383 = vmatpush2.bf16.msra.mxu0 0
    %384 = vmatprep.subr.bf16.mxu0 0
    %385 = vmatpush2.bf16.msra.mxu0 0
    %386 = vmatprep.subr.bf16.mxu0 0
    %387 = vmatpush2.bf16.msra.mxu0 0
    %388 = vmatprep.subr.bf16.mxu0 0
    %389 = vmatpush2.bf16.msra.mxu0 0
    %390 = vmatprep.mubr.bf16.mxu0 0
    %391 = vmatmul.mubr.bf16.gmra.mxu0 %v315
    %v392 = vpop.f32.mrf.mxu0
    %v393 = vadd.f32 %v174, %v392
    %v394 = vpop.f32.mrf.mxu0
    %v395 = vadd.f32 %v178, %v394
    %v396 = vpop.f32.mrf.mxu0
    %v397 = vpop.f32.mrf.mxu0
    %398 = vdwg.mxu0
    %399 = vmatprep.subr.bf16.mxu0 0
    %400 = vmatpush1.bf16.msra.mxu0 0
    %401 = vmatprep.subr.bf16.mxu0 0
    %402 = vmatpush1.bf16.msra.mxu0 0
    %403 = vmatprep.subr.bf16.mxu0 0
    %404 = vmatpush1.bf16.msra.mxu0 0
    %405 = vmatprep.subr.bf16.mxu0 0
    %406 = vmatpush1.bf16.msra.mxu0 0
    %407 = vmatprep.subr.bf16.mxu0 0
    %408 = vmatpush1.bf16.msra.mxu0 0
    %409 = vmatprep.subr.bf16.mxu0 0
    %410 = vmatpush1.bf16.msra.mxu0 0
    %411 = vmatprep.subr.bf16.mxu0 %v288
    %412 = vmatpush1.bf16.msra.mxu0 %v287
    %413 = vmatprep.subr.bf16.mxu0 %v278
    %414 = vmatpush1.bf16.msra.mxu0 %v277
    %415 = vmatprep.subr.bf16.mxu0 0
    %416 = vmatpush2.bf16.msra.mxu0 0
    %417 = vmatprep.subr.bf16.mxu0 0
    %418 = vmatpush2.bf16.msra.mxu0 0
    %419 = vmatprep.subr.bf16.mxu0 0
    %420 = vmatpush2.bf16.msra.mxu0 0
    %421 = vmatprep.subr.bf16.mxu0 0
    %422 = vmatpush2.bf16.msra.mxu0 0
    %423 = vmatprep.subr.bf16.mxu0 0
    %424 = vmatpush2.bf16.msra.mxu0 0
    %425 = vmatprep.subr.bf16.mxu0 0
    %426 = vmatpush2.bf16.msra.mxu0 0
    %427 = vmatprep.subr.bf16.mxu0 0
    %428 = vmatpush2.bf16.msra.mxu0 0
    %429 = vmatprep.subr.bf16.mxu0 0
    %430 = vmatpush2.bf16.msra.mxu0 0
    %431 = vmatprep.mubr.bf16.mxu0 0
    %432 = vmatmul.mubr.bf16.gmra.mxu0 %v315
    %v433 = vpop.f32.mrf.mxu0
    %v434 = vadd.f32 %v182, %v433
    %v435 = vpop.f32.mrf.mxu0
    %v436 = vadd.f32 %v186, %v435
    %v437 = vpop.f32.mrf.mxu0
    %v438 = vpop.f32.mrf.mxu0
    %439 = vdwg.mxu0
    %440 = vmatprep.subr.bf16.mxu0 0
    %441 = vmatpush1.bf16.msra.mxu0 0
    %442 = vmatprep.subr.bf16.mxu0 0
    %443 = vmatpush1.bf16.msra.mxu0 0
    %444 = vmatprep.subr.bf16.mxu0 0
    %445 = vmatpush1.bf16.msra.mxu0 0
    %446 = vmatprep.subr.bf16.mxu0 0
    %447 = vmatpush1.bf16.msra.mxu0 0
    %448 = vmatprep.subr.bf16.mxu0 0
    %449 = vmatpush1.bf16.msra.mxu0 0
    %450 = vmatprep.subr.bf16.mxu0 0
    %451 = vmatpush1.bf16.msra.mxu0 0
    %452 = vmatprep.subr.bf16.mxu0 %v290
    %453 = vmatpush1.bf16.msra.mxu0 %v289
    %454 = vmatprep.subr.bf16.mxu0 %v280
    %455 = vmatpush1.bf16.msra.mxu0 %v279
    %456 = vmatprep.subr.bf16.mxu0 0
    %457 = vmatpush2.bf16.msra.mxu0 0
    %458 = vmatprep.subr.bf16.mxu0 0
    %459 = vmatpush2.bf16.msra.mxu0 0
    %460 = vmatprep.subr.bf16.mxu0 0
    %461 = vmatpush2.bf16.msra.mxu0 0
    %462 = vmatprep.subr.bf16.mxu0 0
    %463 = vmatpush2.bf16.msra.mxu0 0
    %464 = vmatprep.subr.bf16.mxu0 0
    %465 = vmatpush2.bf16.msra.mxu0 0
    %466 = vmatprep.subr.bf16.mxu0 0
    %467 = vmatpush2.bf16.msra.mxu0 0
    %468 = vmatprep.subr.bf16.mxu0 0
    %469 = vmatpush2.bf16.msra.mxu0 0
    %470 = vmatprep.subr.bf16.mxu0 0
    %471 = vmatpush2.bf16.msra.mxu0 0
    %472 = vmatprep.mubr.bf16.mxu0 0
    %473 = vmatmul.mubr.bf16.gmra.mxu0 %v315
    %v474 = vpop.f32.mrf.mxu0
    %v475 = vadd.f32 %v190, %v474
    %v476 = vpop.f32.mrf.mxu0
    %v477 = vadd.f32 %v194, %v476
    %v478 = vpop.f32.mrf.mxu0
    %v479 = vpop.f32.mrf.mxu0
    %480 = vdwg.mxu0
    %481 = vmatprep.subr.bf16.mxu0 0
    %482 = vmatpush1.bf16.msra.mxu0 0
    %483 = vmatprep.subr.bf16.mxu0 0
    %484 = vmatpush1.bf16.msra.mxu0 0
    %485 = vmatprep.subr.bf16.mxu0 0
    %486 = vmatpush1.bf16.msra.mxu0 0
    %487 = vmatprep.subr.bf16.mxu0 0
    %488 = vmatpush1.bf16.msra.mxu0 0
    %489 = vmatprep.subr.bf16.mxu0 0
    %490 = vmatpush1.bf16.msra.mxu0 0
    %491 = vmatprep.subr.bf16.mxu0 0
    %492 = vmatpush1.bf16.msra.mxu0 0
    %493 = vmatprep.subr.bf16.mxu0 %v292
    %494 = vmatpush1.bf16.msra.mxu0 %v291
    %495 = vmatprep.subr.bf16.mxu0 %v282
    %496 = vmatpush1.bf16.msra.mxu0 %v281
    %497 = vmatprep.subr.bf16.mxu0 0
    %498 = vmatpush2.bf16.msra.mxu0 0
    %499 = vmatprep.subr.bf16.mxu0 0
    %500 = vmatpush2.bf16.msra.mxu0 0
    %501 = vmatprep.subr.bf16.mxu0 0
    %502 = vmatpush2.bf16.msra.mxu0 0
    %503 = vmatprep.subr.bf16.mxu0 0
    %504 = vmatpush2.bf16.msra.mxu0 0
    %505 = vmatprep.subr.bf16.mxu0 0
    %506 = vmatpush2.bf16.msra.mxu0 0
    %507 = vmatprep.subr.bf16.mxu0 0
    %508 = vmatpush2.bf16.msra.mxu0 0
    %509 = vmatprep.subr.bf16.mxu0 0
    %510 = vmatpush2.bf16.msra.mxu0 0
    %511 = vmatprep.subr.bf16.mxu0 0
    %512 = vmatpush2.bf16.msra.mxu0 0
    %513 = vmatprep.mubr.bf16.mxu0 0
    %514 = vmatmul.mubr.bf16.gmra.mxu0 %v315
    %v515 = vpop.f32.mrf.mxu0
    %v516 = vadd.f32 %v198, %v515
    %v517 = vpop.f32.mrf.mxu0
    %v518 = vadd.f32 %v202, %v517
    %v519 = vpop.f32.mrf.mxu0
    %v520 = vpop.f32.mrf.mxu0
    %521 = vdwg.mxu0
    %522 = vst [vmem:[#allocation16] sm:$0xff] %v352
    %523 = vst [vmem:[#allocation16 + $0x8] sm:$0xff] %v354
    %v524 = vpack.c.bf16 %v352, %v352
    %v525 = vpack.c.bf16 %v354, %v354
    %v526 = vld [vmem:[#allocation7] sm:$0xf]
    %v527 = vld [vmem:[#allocation7 + $0x4] sm:$0xf]
    %v528 = vld [vmem:[#allocation7 + $0x8] sm:$0xf]
    %v529 = vld [vmem:[#allocation7 + $0xc] sm:$0xf]
    %v530 = vld [vmem:[#allocation7 + $0x10] sm:$0xf]
    %v531 = vld [vmem:[#allocation7 + $0x14] sm:$0xf]
    %v532 = vld [vmem:[#allocation7 + $0x18] sm:$0xf]
    %v533 = vld [vmem:[#allocation7 + $0x1c] sm:$0xf]
    %v534 = vld [vmem:[#allocation7 + $0x20] sm:$0xf]
    %v535 = vld [vmem:[#allocation7 + $0x24] sm:$0xf]
    %v536 = vld [vmem:[#allocation7 + $0x28] sm:$0xf]
    %v537 = vld [vmem:[#allocation7 + $0x2c] sm:$0xf]
    %v538 = vld [vmem:[#allocation7 + $0x30] sm:$0xf]
    %v539 = vld [vmem:[#allocation7 + $0x34] sm:$0xf]
    %v540 = vld [vmem:[#allocation7 + $0x38] sm:$0xf]
    %v541 = vld [vmem:[#allocation7 + $0x3c] sm:$0xf]
    %v542 = vld [vmem:[#allocation7 + $0x40] sm:$0xf]
    %v543 = vld [vmem:[#allocation7 + $0x44] sm:$0xf]
    %v544 = vld [vmem:[#allocation7 + $0x48] sm:$0xf]
    %v545 = vld [vmem:[#allocation7 + $0x4c] sm:$0xf]
    %v546 = vld [vmem:[#allocation7 + $0x50] sm:$0xf]
    %v547 = vld [vmem:[#allocation7 + $0x54] sm:$0xf]
    %v548 = vld [vmem:[#allocation7 + $0x58] sm:$0xf]
    %v549 = vld [vmem:[#allocation7 + $0x5c] sm:$0xf]
    %v550 = vld [vmem:[#allocation7 + $0x60] sm:$0xf]
    %v551 = vld [vmem:[#allocation7 + $0x64] sm:$0xf]
    %v552 = vld [vmem:[#allocation7 + $0x68] sm:$0xf]
    %v553 = vld [vmem:[#allocation7 + $0x6c] sm:$0xf]
    %v554 = vld [vmem:[#allocation7 + $0x70] sm:$0xf]
    %v555 = vld [vmem:[#allocation7 + $0x74] sm:$0xf]
    %v556 = vld [vmem:[#allocation7 + $0x78] sm:$0xf]
    %v557 = vld [vmem:[#allocation7 + $0x7c] sm:$0xf]
    %v558 = vld [vmem:[#allocation8] sm:$0x1]
    %v560 = vlaneseq
    %v561 = vshrl.u32 %v560, 7
    %v562 = vsub.s32 0, %v561
    %v563 = vrot.slane %v558, %v562
    %v597 = vunpack.c.l.b16 %v526
    %v598 = vunpack.c.l.b16 %v527
    %v599 = vunpack.c.l.b16 %v528
    %v600 = vunpack.c.l.b16 %v529
    %v601 = vunpack.c.l.b16 %v530
    %v602 = vunpack.c.l.b16 %v531
    %v603 = vunpack.c.l.b16 %v532
    %v604 = vunpack.c.l.b16 %v533
    %v605 = vunpack.c.l.b16 %v534
    %v606 = vunpack.c.l.b16 %v535
    %v607 = vunpack.c.l.b16 %v536
    %v608 = vunpack.c.l.b16 %v537
    %v609 = vunpack.c.l.b16 %v538
    %v610 = vunpack.c.l.b16 %v539
    %v611 = vunpack.c.l.b16 %v540
    %v612 = vunpack.c.l.b16 %v541
    %v613 = vunpack.c.l.b16 %v542
    %v614 = vunpack.c.l.b16 %v543
    %v615 = vunpack.c.l.b16 %v544
    %v616 = vunpack.c.l.b16 %v545
    %v617 = vunpack.c.l.b16 %v546
    %v618 = vunpack.c.l.b16 %v547
    %v619 = vunpack.c.l.b16 %v548
    %v620 = vunpack.c.l.b16 %v549
    %v621 = vunpack.c.l.b16 %v550
    %v622 = vunpack.c.l.b16 %v551
    %v623 = vunpack.c.l.b16 %v552
    %v624 = vunpack.c.l.b16 %v553
    %v625 = vunpack.c.l.b16 %v554
    %v626 = vunpack.c.l.b16 %v555
    %v627 = vunpack.c.l.b16 %v556
    %v628 = vunpack.c.l.b16 %v557
    %v629 = vpack.c.b16 %v598, %v597
    %v630 = vpack.c.b16 %v600, %v599
    %v631 = vpack.c.b16 %v602, %v601
    %v632 = vpack.c.b16 %v604, %v603
    %v633 = vpack.c.b16 %v606, %v605
    %v634 = vpack.c.b16 %v608, %v607
    %v635 = vpack.c.b16 %v610, %v609
    %v636 = vpack.c.b16 %v612, %v611
    %v637 = vpack.c.b16 %v614, %v613
    %v638 = vpack.c.b16 %v616, %v615
    %v639 = vpack.c.b16 %v618, %v617
    %v640 = vpack.c.b16 %v620, %v619
    %v641 = vpack.c.b16 %v622, %v621
    %v642 = vpack.c.b16 %v624, %v623
    %v643 = vpack.c.b16 %v626, %v625
    %v644 = vpack.c.b16 %v628, %v627
    %661 = vmatprep.subr.bf16.mxu0 0
    %662 = vmatpush1.bf16.msra.mxu0 %v636
    %663 = vmatprep.subr.bf16.mxu0 0
    %664 = vmatpush1.bf16.msra.mxu0 %v635
    %665 = vmatprep.subr.bf16.mxu0 0
    %666 = vmatpush1.bf16.msra.mxu0 %v634
    %667 = vmatprep.subr.bf16.mxu0 0
    %668 = vmatpush1.bf16.msra.mxu0 %v633
    %669 = vmatprep.subr.bf16.mxu0 0
    %670 = vmatpush1.bf16.msra.mxu0 %v632
    %671 = vmatprep.subr.bf16.mxu0 0
    %672 = vmatpush1.bf16.msra.mxu0 %v631
    %673 = vmatprep.subr.bf16.mxu0 0
    %674 = vmatpush1.bf16.msra.mxu0 %v630
    %675 = vmatprep.subr.bf16.mxu0 0
    %676 = vmatpush1.bf16.msra.mxu0 %v629
    %677 = vmatprep.subr.bf16.mxu0 0
    %678 = vmatpush2.bf16.msra.mxu0 %v644
    %679 = vmatprep.subr.bf16.mxu0 0
    %680 = vmatpush2.bf16.msra.mxu0 %v643
    %681 = vmatprep.subr.bf16.mxu0 0
    %682 = vmatpush2.bf16.msra.mxu0 %v642
    %683 = vmatprep.subr.bf16.mxu0 0
    %684 = vmatpush2.bf16.msra.mxu0 %v641
    %685 = vmatprep.subr.bf16.mxu0 0
    %686 = vmatpush2.bf16.msra.mxu0 %v640
    %687 = vmatprep.subr.bf16.mxu0 0
    %688 = vmatpush2.bf16.msra.mxu0 %v639
    %689 = vmatprep.subr.bf16.mxu0 0
    %690 = vmatpush2.bf16.msra.mxu0 %v638
    %691 = vmatprep.subr.bf16.mxu0 0
    %692 = vmatpush2.bf16.msra.mxu0 %v637
    %693 = vmatprep.mubr.bf16.mxu0 %v525
    %694 = vmatmul.mubr.bf16.gmra.mxu0 %v524
    %v695 = vpop.f32.mrf.mxu0
    %v696 = vadd.f32 %v563, %v695
    %v697 = vpop.f32.mrf.mxu0
    %v698 = vpop.f32.mrf.mxu0
    %v699 = vpop.f32.mrf.mxu0
    %700 = vdwg.mxu0
    %701 = vst [vmem:[%s10] sm:$0xff] %v696
    %v702 = vmax.f32 %v393, 0.0
    %v703 = vmax.f32 %v395, 0.0
    %v704 = vmax.f32 %v434, 0.0
    %v705 = vmax.f32 %v436, 0.0
    %v706 = vmax.f32 %v475, 0.0
    %v707 = vmax.f32 %v477, 0.0
    %v708 = vmax.f32 %v516, 0.0
    %v709 = vmax.f32 %v518, 0.0
    %v710 = vpack.c.bf16 %v702, %v702
    %v711 = vpack.c.bf16 %v703, %v703
    %v712 = vpack.c.bf16 %v704, %v704
    %v713 = vpack.c.bf16 %v705, %v705
    %v714 = vpack.c.bf16 %v706, %v706
    %v715 = vpack.c.bf16 %v707, %v707
    %v716 = vpack.c.bf16 %v708, %v708
    %v717 = vpack.c.bf16 %v709, %v709
    %v718 = vld [vmem:[#allocation10] sm:$0xff]
    %v719 = vld [vmem:[#allocation10 + $0x8] sm:$0xff]
    %v720 = vld [vmem:[#allocation10 + $0x10] sm:$0xff]
    %v721 = vld [vmem:[#allocation10 + $0x18] sm:$0xff]
    %v722 = vld [vmem:[#allocation10 + $0x20] sm:$0xff]
    %v723 = vld [vmem:[#allocation10 + $0x28] sm:$0xff]
    %v724 = vld [vmem:[#allocation10 + $0x30] sm:$0xff]
    %v725 = vld [vmem:[#allocation10 + $0x38] sm:$0xff]
    %v726 = vld [vmem:[#allocation10 + $0x40] sm:$0xff]
    %v727 = vld [vmem:[#allocation10 + $0x48] sm:$0xff]
    %v728 = vld [vmem:[#allocation10 + $0x50] sm:$0xff]
    %v729 = vld [vmem:[#allocation10 + $0x58] sm:$0xff]
    %v730 = vld [vmem:[#allocation10 + $0x60] sm:$0xff]
    %v731 = vld [vmem:[#allocation10 + $0x68] sm:$0xff]
    %v732 = vld [vmem:[#allocation10 + $0x70] sm:$0xff]
    %v733 = vld [vmem:[#allocation10 + $0x78] sm:$0xff]
    %v734 = vld [vmem:[#allocation10 + $0x80] sm:$0xff]
    %v735 = vld [vmem:[#allocation10 + $0x88] sm:$0xff]
    %v736 = vld [vmem:[#allocation10 + $0x90] sm:$0xff]
    %v737 = vld [vmem:[#allocation10 + $0x98] sm:$0xff]
    %v738 = vld [vmem:[#allocation10 + $0xa0] sm:$0xff]
    %v739 = vld [vmem:[#allocation10 + $0xa8] sm:$0xff]
    %v740 = vld [vmem:[#allocation10 + $0xb0] sm:$0xff]
    %v741 = vld [vmem:[#allocation10 + $0xb8] sm:$0xff]
    %v742 = vld [vmem:[#allocation10 + $0xc0] sm:$0xff]
    %v743 = vld [vmem:[#allocation10 + $0xc8] sm:$0xff]
    %v744 = vld [vmem:[#allocation10 + $0xd0] sm:$0xff]
    %v745 = vld [vmem:[#allocation10 + $0xd8] sm:$0xff]
    %v746 = vld [vmem:[#allocation10 + $0xe0] sm:$0xff]
    %v747 = vld [vmem:[#allocation10 + $0xe8] sm:$0xff]
    %v748 = vld [vmem:[#allocation10 + $0xf0] sm:$0xff]
    %v749 = vld [vmem:[#allocation10 + $0xf8] sm:$0xff]
    %v750 = vld [vmem:[#allocation10 + $0x100] sm:$0xff]
    %v751 = vld [vmem:[#allocation10 + $0x108] sm:$0xff]
    %v752 = vld [vmem:[#allocation10 + $0x110] sm:$0xff]
    %v753 = vld [vmem:[#allocation10 + $0x118] sm:$0xff]
    %v754 = vld [vmem:[#allocation10 + $0x120] sm:$0xff]
    %v755 = vld [vmem:[#allocation10 + $0x128] sm:$0xff]
    %v756 = vld [vmem:[#allocation10 + $0x130] sm:$0xff]
    %v757 = vld [vmem:[#allocation10 + $0x138] sm:$0xff]
    %v758 = vld [vmem:[#allocation10 + $0x140] sm:$0xff]
    %v759 = vld [vmem:[#allocation10 + $0x148] sm:$0xff]
    %v760 = vld [vmem:[#allocation10 + $0x150] sm:$0xff]
    %v761 = vld [vmem:[#allocation10 + $0x158] sm:$0xff]
    %v762 = vld [vmem:[#allocation10 + $0x160] sm:$0xff]
    %v763 = vld [vmem:[#allocation10 + $0x168] sm:$0xff]
    %v764 = vld [vmem:[#allocation10 + $0x170] sm:$0xff]
    %v765 = vld [vmem:[#allocation10 + $0x178] sm:$0xff]
    %v766 = vld [vmem:[#allocation10 + $0x180] sm:$0xff]
    %v767 = vld [vmem:[#allocation10 + $0x188] sm:$0xff]
    %v768 = vld [vmem:[#allocation10 + $0x190] sm:$0xff]
    %v769 = vld [vmem:[#allocation10 + $0x198] sm:$0xff]
    %v770 = vld [vmem:[#allocation10 + $0x1a0] sm:$0xff]
    %v771 = vld [vmem:[#allocation10 + $0x1a8] sm:$0xff]
    %v772 = vld [vmem:[#allocation10 + $0x1b0] sm:$0xff]
    %v773 = vld [vmem:[#allocation10 + $0x1b8] sm:$0xff]
    %v774 = vld [vmem:[#allocation10 + $0x1c0] sm:$0xff]
    %v775 = vld [vmem:[#allocation10 + $0x1c8] sm:$0xff]
    %v776 = vld [vmem:[#allocation10 + $0x1d0] sm:$0xff]
    %v777 = vld [vmem:[#allocation10 + $0x1d8] sm:$0xff]
    %v778 = vld [vmem:[#allocation10 + $0x1e0] sm:$0xff]
    %v779 = vld [vmem:[#allocation10 + $0x1e8] sm:$0xff]
    %v780 = vld [vmem:[#allocation10 + $0x1f0] sm:$0xff]
    %v781 = vld [vmem:[#allocation10 + $0x1f8] sm:$0xff]
    %v782 = vld [vmem:[#allocation10 + $0x200] sm:$0xff]
    %v783 = vld [vmem:[#allocation10 + $0x208] sm:$0xff]
    %v784 = vld [vmem:[#allocation10 + $0x210] sm:$0xff]
    %v785 = vld [vmem:[#allocation10 + $0x218] sm:$0xff]
    %v786 = vld [vmem:[#allocation10 + $0x220] sm:$0xff]
    %v787 = vld [vmem:[#allocation10 + $0x228] sm:$0xff]
    %v788 = vld [vmem:[#allocation10 + $0x230] sm:$0xff]
    %v789 = vld [vmem:[#allocation10 + $0x238] sm:$0xff]
    %v790 = vld [vmem:[#allocation10 + $0x240] sm:$0xff]
    %v791 = vld [vmem:[#allocation10 + $0x248] sm:$0xff]
    %v792 = vld [vmem:[#allocation10 + $0x250] sm:$0xff]
    %v793 = vld [vmem:[#allocation10 + $0x258] sm:$0xff]
    %v794 = vld [vmem:[#allocation10 + $0x260] sm:$0xff]
    %v795 = vld [vmem:[#allocation10 + $0x268] sm:$0xff]
    %v796 = vld [vmem:[#allocation10 + $0x270] sm:$0xff]
    %v797 = vld [vmem:[#allocation10 + $0x278] sm:$0xff]
    %v798 = vld [vmem:[#allocation10 + $0x280] sm:$0xff]
    %v799 = vld [vmem:[#allocation10 + $0x288] sm:$0xff]
    %v800 = vld [vmem:[#allocation10 + $0x290] sm:$0xff]
    %v801 = vld [vmem:[#allocation10 + $0x298] sm:$0xff]
    %v802 = vld [vmem:[#allocation10 + $0x2a0] sm:$0xff]
    %v803 = vld [vmem:[#allocation10 + $0x2a8] sm:$0xff]
    %v804 = vld [vmem:[#allocation10 + $0x2b0] sm:$0xff]
    %v805 = vld [vmem:[#allocation10 + $0x2b8] sm:$0xff]
    %v806 = vld [vmem:[#allocation10 + $0x2c0] sm:$0xff]
    %v807 = vld [vmem:[#allocation10 + $0x2c8] sm:$0xff]
    %v808 = vld [vmem:[#allocation10 + $0x2d0] sm:$0xff]
    %v809 = vld [vmem:[#allocation10 + $0x2d8] sm:$0xff]
    %v810 = vld [vmem:[#allocation10 + $0x2e0] sm:$0xff]
    %v811 = vld [vmem:[#allocation10 + $0x2e8] sm:$0xff]
    %v812 = vld [vmem:[#allocation10 + $0x2f0] sm:$0xff]
    %v813 = vld [vmem:[#allocation10 + $0x2f8] sm:$0xff]
    %v814 = vld [vmem:[#allocation10 + $0x300] sm:$0xff]
    %v815 = vld [vmem:[#allocation10 + $0x308] sm:$0xff]
    %v816 = vld [vmem:[#allocation10 + $0x310] sm:$0xff]
    %v817 = vld [vmem:[#allocation10 + $0x318] sm:$0xff]
    %v818 = vld [vmem:[#allocation10 + $0x320] sm:$0xff]
    %v819 = vld [vmem:[#allocation10 + $0x328] sm:$0xff]
    %v820 = vld [vmem:[#allocation10 + $0x330] sm:$0xff]
    %v821 = vld [vmem:[#allocation10 + $0x338] sm:$0xff]
    %v822 = vld [vmem:[#allocation10 + $0x340] sm:$0xff]
    %v823 = vld [vmem:[#allocation10 + $0x348] sm:$0xff]
    %v824 = vld [vmem:[#allocation10 + $0x350] sm:$0xff]
    %v825 = vld [vmem:[#allocation10 + $0x358] sm:$0xff]
    %v826 = vld [vmem:[#allocation10 + $0x360] sm:$0xff]
    %v827 = vld [vmem:[#allocation10 + $0x368] sm:$0xff]
    %v828 = vld [vmem:[#allocation10 + $0x370] sm:$0xff]
    %v829 = vld [vmem:[#allocation10 + $0x378] sm:$0xff]
    %v830 = vld [vmem:[#allocation10 + $0x380] sm:$0xff]
    %v831 = vld [vmem:[#allocation10 + $0x388] sm:$0xff]
    %v832 = vld [vmem:[#allocation10 + $0x390] sm:$0xff]
    %v833 = vld [vmem:[#allocation10 + $0x398] sm:$0xff]
    %v834 = vld [vmem:[#allocation10 + $0x3a0] sm:$0xff]
    %v835 = vld [vmem:[#allocation10 + $0x3a8] sm:$0xff]
    %v836 = vld [vmem:[#allocation10 + $0x3b0] sm:$0xff]
    %v837 = vld [vmem:[#allocation10 + $0x3b8] sm:$0xff]
    %v838 = vld [vmem:[#allocation10 + $0x3c0] sm:$0xff]
    %v839 = vld [vmem:[#allocation10 + $0x3c8] sm:$0xff]
    %v840 = vld [vmem:[#allocation10 + $0x3d0] sm:$0xff]
    %v841 = vld [vmem:[#allocation10 + $0x3d8] sm:$0xff]
    %v842 = vld [vmem:[#allocation10 + $0x3e0] sm:$0xff]
    %v843 = vld [vmem:[#allocation10 + $0x3e8] sm:$0xff]
    %v844 = vld [vmem:[#allocation10 + $0x3f0] sm:$0xff]
    %v845 = vld [vmem:[#allocation10 + $0x3f8] sm:$0xff]
    %v846 = vld [vmem:[#allocation10 + $0x400] sm:$0xff]
    %v847 = vld [vmem:[#allocation10 + $0x408] sm:$0xff]
    %v848 = vld [vmem:[#allocation10 + $0x410] sm:$0xff]
    %v849 = vld [vmem:[#allocation10 + $0x418] sm:$0xff]
    %v850 = vld [vmem:[#allocation10 + $0x420] sm:$0xff]
    %v851 = vld [vmem:[#allocation10 + $0x428] sm:$0xff]
    %v852 = vld [vmem:[#allocation10 + $0x430] sm:$0xff]
    %v853 = vld [vmem:[#allocation10 + $0x438] sm:$0xff]
    %v854 = vld [vmem:[#allocation10 + $0x440] sm:$0xff]
    %v855 = vld [vmem:[#allocation10 + $0x448] sm:$0xff]
    %v856 = vld [vmem:[#allocation10 + $0x450] sm:$0xff]
    %v857 = vld [vmem:[#allocation10 + $0x458] sm:$0xff]
    %v858 = vld [vmem:[#allocation10 + $0x460] sm:$0xff]
    %v859 = vld [vmem:[#allocation10 + $0x468] sm:$0xff]
    %v860 = vld [vmem:[#allocation10 + $0x470] sm:$0xff]
    %v861 = vld [vmem:[#allocation10 + $0x478] sm:$0xff]
    %v862 = vld [vmem:[#allocation10 + $0x480] sm:$0xff]
    %v863 = vld [vmem:[#allocation10 + $0x488] sm:$0xff]
    %v864 = vld [vmem:[#allocation10 + $0x490] sm:$0xff]
    %v865 = vld [vmem:[#allocation10 + $0x498] sm:$0xff]
    %v866 = vld [vmem:[#allocation10 + $0x4a0] sm:$0xff]
    %v867 = vld [vmem:[#allocation10 + $0x4a8] sm:$0xff]
    %v868 = vld [vmem:[#allocation10 + $0x4b0] sm:$0xff]
    %v869 = vld [vmem:[#allocation10 + $0x4b8] sm:$0xff]
    %v870 = vld [vmem:[#allocation10 + $0x4c0] sm:$0xff]
    %v871 = vld [vmem:[#allocation10 + $0x4c8] sm:$0xff]
    %v872 = vld [vmem:[#allocation10 + $0x4d0] sm:$0xff]
    %v873 = vld [vmem:[#allocation10 + $0x4d8] sm:$0xff]
    %v874 = vld [vmem:[#allocation10 + $0x4e0] sm:$0xff]
    %v875 = vld [vmem:[#allocation10 + $0x4e8] sm:$0xff]
    %v876 = vld [vmem:[#allocation10 + $0x4f0] sm:$0xff]
    %v877 = vld [vmem:[#allocation10 + $0x4f8] sm:$0xff]
    %v878 = vld [vmem:[#allocation10 + $0x500] sm:$0xff]
    %v879 = vld [vmem:[#allocation10 + $0x508] sm:$0xff]
    %v880 = vld [vmem:[#allocation10 + $0x510] sm:$0xff]
    %v881 = vld [vmem:[#allocation10 + $0x518] sm:$0xff]
    %v882 = vld [vmem:[#allocation10 + $0x520] sm:$0xff]
    %v883 = vld [vmem:[#allocation10 + $0x528] sm:$0xff]
    %v884 = vld [vmem:[#allocation10 + $0x530] sm:$0xff]
    %v885 = vld [vmem:[#allocation10 + $0x538] sm:$0xff]
    %v886 = vld [vmem:[#allocation10 + $0x540] sm:$0xff]
    %v887 = vld [vmem:[#allocation10 + $0x548] sm:$0xff]
    %v888 = vld [vmem:[#allocation10 + $0x550] sm:$0xff]
    %v889 = vld [vmem:[#allocation10 + $0x558] sm:$0xff]
    %v890 = vld [vmem:[#allocation10 + $0x560] sm:$0xff]
    %v891 = vld [vmem:[#allocation10 + $0x568] sm:$0xff]
    %v892 = vld [vmem:[#allocation10 + $0x570] sm:$0xff]
    %v893 = vld [vmem:[#allocation10 + $0x578] sm:$0xff]
    %v894 = vld [vmem:[#allocation10 + $0x580] sm:$0xff]
    %v895 = vld [vmem:[#allocation10 + $0x588] sm:$0xff]
    %v896 = vld [vmem:[#allocation10 + $0x590] sm:$0xff]
    %v897 = vld [vmem:[#allocation10 + $0x598] sm:$0xff]
    %v898 = vld [vmem:[#allocation10 + $0x5a0] sm:$0xff]
    %v899 = vld [vmem:[#allocation10 + $0x5a8] sm:$0xff]
    %v900 = vld [vmem:[#allocation10 + $0x5b0] sm:$0xff]
    %v901 = vld [vmem:[#allocation10 + $0x5b8] sm:$0xff]
    %v902 = vld [vmem:[#allocation10 + $0x5c0] sm:$0xff]
    %v903 = vld [vmem:[#allocation10 + $0x5c8] sm:$0xff]
    %v904 = vld [vmem:[#allocation10 + $0x5d0] sm:$0xff]
    %v905 = vld [vmem:[#allocation10 + $0x5d8] sm:$0xff]
    %v906 = vld [vmem:[#allocation10 + $0x5e0] sm:$0xff]
    %v907 = vld [vmem:[#allocation10 + $0x5e8] sm:$0xff]
    %v908 = vld [vmem:[#allocation10 + $0x5f0] sm:$0xff]
    %v909 = vld [vmem:[#allocation10 + $0x5f8] sm:$0xff]
    %v910 = vld [vmem:[#allocation10 + $0x600] sm:$0xff]
    %v911 = vld [vmem:[#allocation10 + $0x608] sm:$0xff]
    %v912 = vld [vmem:[#allocation10 + $0x610] sm:$0xff]
    %v913 = vld [vmem:[#allocation10 + $0x618] sm:$0xff]
    %v914 = vld [vmem:[#allocation10 + $0x620] sm:$0xff]
    %v915 = vld [vmem:[#allocation10 + $0x628] sm:$0xff]
    %v916 = vld [vmem:[#allocation10 + $0x630] sm:$0xff]
    %v917 = vld [vmem:[#allocation10 + $0x638] sm:$0xff]
    %v918 = vld [vmem:[#allocation10 + $0x640] sm:$0xff]
    %v919 = vld [vmem:[#allocation10 + $0x648] sm:$0xff]
    %v920 = vld [vmem:[#allocation10 + $0x650] sm:$0xff]
    %v921 = vld [vmem:[#allocation10 + $0x658] sm:$0xff]
    %v922 = vld [vmem:[#allocation10 + $0x660] sm:$0xff]
    %v923 = vld [vmem:[#allocation10 + $0x668] sm:$0xff]
    %v924 = vld [vmem:[#allocation10 + $0x670] sm:$0xff]
    %v925 = vld [vmem:[#allocation10 + $0x678] sm:$0xff]
    %v926 = vld [vmem:[#allocation10 + $0x680] sm:$0xff]
    %v927 = vld [vmem:[#allocation10 + $0x688] sm:$0xff]
    %v928 = vld [vmem:[#allocation10 + $0x690] sm:$0xff]
    %v929 = vld [vmem:[#allocation10 + $0x698] sm:$0xff]
    %v930 = vld [vmem:[#allocation10 + $0x6a0] sm:$0xff]
    %v931 = vld [vmem:[#allocation10 + $0x6a8] sm:$0xff]
    %v932 = vld [vmem:[#allocation10 + $0x6b0] sm:$0xff]
    %v933 = vld [vmem:[#allocation10 + $0x6b8] sm:$0xff]
    %v934 = vld [vmem:[#allocation10 + $0x6c0] sm:$0xff]
    %v935 = vld [vmem:[#allocation10 + $0x6c8] sm:$0xff]
    %v936 = vld [vmem:[#allocation10 + $0x6d0] sm:$0xff]
    %v937 = vld [vmem:[#allocation10 + $0x6d8] sm:$0xff]
    %v938 = vld [vmem:[#allocation10 + $0x6e0] sm:$0xff]
    %v939 = vld [vmem:[#allocation10 + $0x6e8] sm:$0xff]
    %v940 = vld [vmem:[#allocation10 + $0x6f0] sm:$0xff]
    %v941 = vld [vmem:[#allocation10 + $0x6f8] sm:$0xff]
    %v942 = vld [vmem:[#allocation10 + $0x700] sm:$0xff]
    %v943 = vld [vmem:[#allocation10 + $0x708] sm:$0xff]
    %v944 = vld [vmem:[#allocation10 + $0x710] sm:$0xff]
    %v945 = vld [vmem:[#allocation10 + $0x718] sm:$0xff]
    %v946 = vld [vmem:[#allocation10 + $0x720] sm:$0xff]
    %v947 = vld [vmem:[#allocation10 + $0x728] sm:$0xff]
    %v948 = vld [vmem:[#allocation10 + $0x730] sm:$0xff]
    %v949 = vld [vmem:[#allocation10 + $0x738] sm:$0xff]
    %v950 = vld [vmem:[#allocation10 + $0x740] sm:$0xff]
    %v951 = vld [vmem:[#allocation10 + $0x748] sm:$0xff]
    %v952 = vld [vmem:[#allocation10 + $0x750] sm:$0xff]
    %v953 = vld [vmem:[#allocation10 + $0x758] sm:$0xff]
    %v954 = vld [vmem:[#allocation10 + $0x760] sm:$0xff]
    %v955 = vld [vmem:[#allocation10 + $0x768] sm:$0xff]
    %v956 = vld [vmem:[#allocation10 + $0x770] sm:$0xff]
    %v957 = vld [vmem:[#allocation10 + $0x778] sm:$0xff]
    %v958 = vld [vmem:[#allocation10 + $0x780] sm:$0xff]
    %v959 = vld [vmem:[#allocation10 + $0x788] sm:$0xff]
    %v960 = vld [vmem:[#allocation10 + $0x790] sm:$0xff]
    %v961 = vld [vmem:[#allocation10 + $0x798] sm:$0xff]
    %v962 = vld [vmem:[#allocation10 + $0x7a0] sm:$0xff]
    %v963 = vld [vmem:[#allocation10 + $0x7a8] sm:$0xff]
    %v964 = vld [vmem:[#allocation10 + $0x7b0] sm:$0xff]
    %v965 = vld [vmem:[#allocation10 + $0x7b8] sm:$0xff]
    %v966 = vld [vmem:[#allocation10 + $0x7c0] sm:$0xff]
    %v967 = vld [vmem:[#allocation10 + $0x7c8] sm:$0xff]
    %v968 = vld [vmem:[#allocation10 + $0x7d0] sm:$0xff]
    %v969 = vld [vmem:[#allocation10 + $0x7d8] sm:$0xff]
    %v970 = vld [vmem:[#allocation10 + $0x7e0] sm:$0xff]
    %v971 = vld [vmem:[#allocation10 + $0x7e8] sm:$0xff]
    %v972 = vld [vmem:[#allocation10 + $0x7f0] sm:$0xff]
    %v973 = vld [vmem:[#allocation10 + $0x7f8] sm:$0xff]
    %v974 = vld [vmem:[#allocation10 + $0x800] sm:$0xff]
    %v975 = vld [vmem:[#allocation10 + $0x808] sm:$0xff]
    %v976 = vld [vmem:[#allocation10 + $0x810] sm:$0xff]
    %v977 = vld [vmem:[#allocation10 + $0x818] sm:$0xff]
    %v978 = vld [vmem:[#allocation10 + $0x820] sm:$0xff]
    %v979 = vld [vmem:[#allocation10 + $0x828] sm:$0xff]
    %v980 = vld [vmem:[#allocation10 + $0x830] sm:$0xff]
    %v981 = vld [vmem:[#allocation10 + $0x838] sm:$0xff]
    %v982 = vld [vmem:[#allocation10 + $0x840] sm:$0xff]
    %v983 = vld [vmem:[#allocation10 + $0x848] sm:$0xff]
    %v984 = vld [vmem:[#allocation10 + $0x850] sm:$0xff]
    %v985 = vld [vmem:[#allocation10 + $0x858] sm:$0xff]
    %v986 = vld [vmem:[#allocation10 + $0x860] sm:$0xff]
    %v987 = vld [vmem:[#allocation10 + $0x868] sm:$0xff]
    %v988 = vld [vmem:[#allocation10 + $0x870] sm:$0xff]
    %v989 = vld [vmem:[#allocation10 + $0x878] sm:$0xff]
    %v990 = vld [vmem:[#allocation10 + $0x880] sm:$0xff]
    %v991 = vld [vmem:[#allocation10 + $0x888] sm:$0xff]
    %v992 = vld [vmem:[#allocation10 + $0x890] sm:$0xff]
    %v993 = vld [vmem:[#allocation10 + $0x898] sm:$0xff]
    %v994 = vld [vmem:[#allocation10 + $0x8a0] sm:$0xff]
    %v995 = vld [vmem:[#allocation10 + $0x8a8] sm:$0xff]
    %v996 = vld [vmem:[#allocation10 + $0x8b0] sm:$0xff]
    %v997 = vld [vmem:[#allocation10 + $0x8b8] sm:$0xff]
    %v998 = vld [vmem:[#allocation10 + $0x8c0] sm:$0xff]
    %v999 = vld [vmem:[#allocation10 + $0x8c8] sm:$0xff]
    %v1000 = vld [vmem:[#allocation10 + $0x8d0] sm:$0xff]
    %v1001 = vld [vmem:[#allocation10 + $0x8d8] sm:$0xff]
    %v1002 = vld [vmem:[#allocation10 + $0x8e0] sm:$0xff]
    %v1003 = vld [vmem:[#allocation10 + $0x8e8] sm:$0xff]
    %v1004 = vld [vmem:[#allocation10 + $0x8f0] sm:$0xff]
    %v1005 = vld [vmem:[#allocation10 + $0x8f8] sm:$0xff]
    %v1006 = vld [vmem:[#allocation10 + $0x900] sm:$0xff]
    %v1007 = vld [vmem:[#allocation10 + $0x908] sm:$0xff]
    %v1008 = vld [vmem:[#allocation10 + $0x910] sm:$0xff]
    %v1009 = vld [vmem:[#allocation10 + $0x918] sm:$0xff]
    %v1010 = vld [vmem:[#allocation10 + $0x920] sm:$0xff]
    %v1011 = vld [vmem:[#allocation10 + $0x928] sm:$0xff]
    %v1012 = vld [vmem:[#allocation10 + $0x930] sm:$0xff]
    %v1013 = vld [vmem:[#allocation10 + $0x938] sm:$0xff]
    %v1014 = vld [vmem:[#allocation10 + $0x940] sm:$0xff]
    %v1015 = vld [vmem:[#allocation10 + $0x948] sm:$0xff]
    %v1016 = vld [vmem:[#allocation10 + $0x950] sm:$0xff]
    %v1017 = vld [vmem:[#allocation10 + $0x958] sm:$0xff]
    %v1018 = vld [vmem:[#allocation10 + $0x960] sm:$0xff]
    %v1019 = vld [vmem:[#allocation10 + $0x968] sm:$0xff]
    %v1020 = vld [vmem:[#allocation10 + $0x970] sm:$0xff]
    %v1021 = vld [vmem:[#allocation10 + $0x978] sm:$0xff]
    %v1022 = vld [vmem:[#allocation10 + $0x980] sm:$0xff]
    %v1023 = vld [vmem:[#allocation10 + $0x988] sm:$0xff]
    %v1024 = vld [vmem:[#allocation10 + $0x990] sm:$0xff]
    %v1025 = vld [vmem:[#allocation10 + $0x998] sm:$0xff]
    %v1026 = vld [vmem:[#allocation10 + $0x9a0] sm:$0xff]
    %v1027 = vld [vmem:[#allocation10 + $0x9a8] sm:$0xff]
    %v1028 = vld [vmem:[#allocation10 + $0x9b0] sm:$0xff]
    %v1029 = vld [vmem:[#allocation10 + $0x9b8] sm:$0xff]
    %v1030 = vld [vmem:[#allocation10 + $0x9c0] sm:$0xff]
    %v1031 = vld [vmem:[#allocation10 + $0x9c8] sm:$0xff]
    %v1032 = vld [vmem:[#allocation10 + $0x9d0] sm:$0xff]
    %v1033 = vld [vmem:[#allocation10 + $0x9d8] sm:$0xff]
    %v1034 = vld [vmem:[#allocation10 + $0x9e0] sm:$0xff]
    %v1035 = vld [vmem:[#allocation10 + $0x9e8] sm:$0xff]
    %v1036 = vld [vmem:[#allocation10 + $0x9f0] sm:$0xff]
    %v1037 = vld [vmem:[#allocation10 + $0x9f8] sm:$0xff]
    %v1038 = vld [vmem:[#allocation10 + $0xa00] sm:$0xff]
    %v1039 = vld [vmem:[#allocation10 + $0xa08] sm:$0xff]
    %v1040 = vld [vmem:[#allocation10 + $0xa10] sm:$0xff]
    %v1041 = vld [vmem:[#allocation10 + $0xa18] sm:$0xff]
    %v1042 = vld [vmem:[#allocation10 + $0xa20] sm:$0xff]
    %v1043 = vld [vmem:[#allocation10 + $0xa28] sm:$0xff]
    %v1044 = vld [vmem:[#allocation10 + $0xa30] sm:$0xff]
    %v1045 = vld [vmem:[#allocation10 + $0xa38] sm:$0xff]
    %v1046 = vld [vmem:[#allocation10 + $0xa40] sm:$0xff]
    %v1047 = vld [vmem:[#allocation10 + $0xa48] sm:$0xff]
    %v1048 = vld [vmem:[#allocation10 + $0xa50] sm:$0xff]
    %v1049 = vld [vmem:[#allocation10 + $0xa58] sm:$0xff]
    %v1050 = vld [vmem:[#allocation10 + $0xa60] sm:$0xff]
    %v1051 = vld [vmem:[#allocation10 + $0xa68] sm:$0xff]
    %v1052 = vld [vmem:[#allocation10 + $0xa70] sm:$0xff]
    %v1053 = vld [vmem:[#allocation10 + $0xa78] sm:$0xff]
    %v1054 = vld [vmem:[#allocation10 + $0xa80] sm:$0xff]
    %v1055 = vld [vmem:[#allocation10 + $0xa88] sm:$0xff]
    %v1056 = vld [vmem:[#allocation10 + $0xa90] sm:$0xff]
    %v1057 = vld [vmem:[#allocation10 + $0xa98] sm:$0xff]
    %v1058 = vld [vmem:[#allocation10 + $0xaa0] sm:$0xff]
    %v1059 = vld [vmem:[#allocation10 + $0xaa8] sm:$0xff]
    %v1060 = vld [vmem:[#allocation10 + $0xab0] sm:$0xff]
    %v1061 = vld [vmem:[#allocation10 + $0xab8] sm:$0xff]
    %v1062 = vld [vmem:[#allocation10 + $0xac0] sm:$0xff]
    %v1063 = vld [vmem:[#allocation10 + $0xac8] sm:$0xff]
    %v1064 = vld [vmem:[#allocation10 + $0xad0] sm:$0xff]
    %v1065 = vld [vmem:[#allocation10 + $0xad8] sm:$0xff]
    %v1066 = vld [vmem:[#allocation10 + $0xae0] sm:$0xff]
    %v1067 = vld [vmem:[#allocation10 + $0xae8] sm:$0xff]
    %v1068 = vld [vmem:[#allocation10 + $0xaf0] sm:$0xff]
    %v1069 = vld [vmem:[#allocation10 + $0xaf8] sm:$0xff]
    %v1070 = vld [vmem:[#allocation10 + $0xb00] sm:$0xff]
    %v1071 = vld [vmem:[#allocation10 + $0xb08] sm:$0xff]
    %v1072 = vld [vmem:[#allocation10 + $0xb10] sm:$0xff]
    %v1073 = vld [vmem:[#allocation10 + $0xb18] sm:$0xff]
    %v1074 = vld [vmem:[#allocation10 + $0xb20] sm:$0xff]
    %v1075 = vld [vmem:[#allocation10 + $0xb28] sm:$0xff]
    %v1076 = vld [vmem:[#allocation10 + $0xb30] sm:$0xff]
    %v1077 = vld [vmem:[#allocation10 + $0xb38] sm:$0xff]
    %v1078 = vld [vmem:[#allocation10 + $0xb40] sm:$0xff]
    %v1079 = vld [vmem:[#allocation10 + $0xb48] sm:$0xff]
    %v1080 = vld [vmem:[#allocation10 + $0xb50] sm:$0xff]
    %v1081 = vld [vmem:[#allocation10 + $0xb58] sm:$0xff]
    %v1082 = vld [vmem:[#allocation10 + $0xb60] sm:$0xff]
    %v1083 = vld [vmem:[#allocation10 + $0xb68] sm:$0xff]
    %v1084 = vld [vmem:[#allocation10 + $0xb70] sm:$0xff]
    %v1085 = vld [vmem:[#allocation10 + $0xb78] sm:$0xff]
    %v1086 = vld [vmem:[#allocation10 + $0xb80] sm:$0xff]
    %v1087 = vld [vmem:[#allocation10 + $0xb88] sm:$0xff]
    %v1088 = vld [vmem:[#allocation10 + $0xb90] sm:$0xff]
    %v1089 = vld [vmem:[#allocation10 + $0xb98] sm:$0xff]
    %v1090 = vld [vmem:[#allocation10 + $0xba0] sm:$0xff]
    %v1091 = vld [vmem:[#allocation10 + $0xba8] sm:$0xff]
    %v1092 = vld [vmem:[#allocation10 + $0xbb0] sm:$0xff]
    %v1093 = vld [vmem:[#allocation10 + $0xbb8] sm:$0xff]
    %v1094 = vld [vmem:[#allocation10 + $0xbc0] sm:$0xff]
    %v1095 = vld [vmem:[#allocation10 + $0xbc8] sm:$0xff]
    %v1096 = vld [vmem:[#allocation10 + $0xbd0] sm:$0xff]
    %v1097 = vld [vmem:[#allocation10 + $0xbd8] sm:$0xff]
    %v1098 = vld [vmem:[#allocation10 + $0xbe0] sm:$0xff]
    %v1099 = vld [vmem:[#allocation10 + $0xbe8] sm:$0xff]
    %v1100 = vld [vmem:[#allocation10 + $0xbf0] sm:$0xff]
    %v1101 = vld [vmem:[#allocation10 + $0xbf8] sm:$0xff]
    %v1102 = vld [vmem:[#allocation10 + $0xc00] sm:$0xff]
    %v1103 = vld [vmem:[#allocation10 + $0xc08] sm:$0xff]
    %v1104 = vld [vmem:[#allocation10 + $0xc10] sm:$0xff]
    %v1105 = vld [vmem:[#allocation10 + $0xc18] sm:$0xff]
    %v1106 = vld [vmem:[#allocation10 + $0xc20] sm:$0xff]
    %v1107 = vld [vmem:[#allocation10 + $0xc28] sm:$0xff]
    %v1108 = vld [vmem:[#allocation10 + $0xc30] sm:$0xff]
    %v1109 = vld [vmem:[#allocation10 + $0xc38] sm:$0xff]
    %v1110 = vld [vmem:[#allocation10 + $0xc40] sm:$0xff]
    %v1111 = vld [vmem:[#allocation10 + $0xc48] sm:$0xff]
    %v1112 = vld [vmem:[#allocation10 + $0xc50] sm:$0xff]
    %v1113 = vld [vmem:[#allocation10 + $0xc58] sm:$0xff]
    %v1114 = vld [vmem:[#allocation10 + $0xc60] sm:$0xff]
    %v1115 = vld [vmem:[#allocation10 + $0xc68] sm:$0xff]
    %v1116 = vld [vmem:[#allocation10 + $0xc70] sm:$0xff]
    %v1117 = vld [vmem:[#allocation10 + $0xc78] sm:$0xff]
    %v1118 = vld [vmem:[#allocation10 + $0xc80] sm:$0xff]
    %v1119 = vld [vmem:[#allocation10 + $0xc88] sm:$0xff]
    %v1120 = vld [vmem:[#allocation10 + $0xc90] sm:$0xff]
    %v1121 = vld [vmem:[#allocation10 + $0xc98] sm:$0xff]
    %v1122 = vld [vmem:[#allocation10 + $0xca0] sm:$0xff]
    %v1123 = vld [vmem:[#allocation10 + $0xca8] sm:$0xff]
    %v1124 = vld [vmem:[#allocation10 + $0xcb0] sm:$0xff]
    %v1125 = vld [vmem:[#allocation10 + $0xcb8] sm:$0xff]
    %v1126 = vld [vmem:[#allocation10 + $0xcc0] sm:$0xff]
    %v1127 = vld [vmem:[#allocation10 + $0xcc8] sm:$0xff]
    %v1128 = vld [vmem:[#allocation10 + $0xcd0] sm:$0xff]
    %v1129 = vld [vmem:[#allocation10 + $0xcd8] sm:$0xff]
    %v1130 = vld [vmem:[#allocation10 + $0xce0] sm:$0xff]
    %v1131 = vld [vmem:[#allocation10 + $0xce8] sm:$0xff]
    %v1132 = vld [vmem:[#allocation10 + $0xcf0] sm:$0xff]
    %v1133 = vld [vmem:[#allocation10 + $0xcf8] sm:$0xff]
    %v1134 = vld [vmem:[#allocation10 + $0xd00] sm:$0xff]
    %v1135 = vld [vmem:[#allocation10 + $0xd08] sm:$0xff]
    %v1136 = vld [vmem:[#allocation10 + $0xd10] sm:$0xff]
    %v1137 = vld [vmem:[#allocation10 + $0xd18] sm:$0xff]
    %v1138 = vld [vmem:[#allocation10 + $0xd20] sm:$0xff]
    %v1139 = vld [vmem:[#allocation10 + $0xd28] sm:$0xff]
    %v1140 = vld [vmem:[#allocation10 + $0xd30] sm:$0xff]
    %v1141 = vld [vmem:[#allocation10 + $0xd38] sm:$0xff]
    %v1142 = vld [vmem:[#allocation10 + $0xd40] sm:$0xff]
    %v1143 = vld [vmem:[#allocation10 + $0xd48] sm:$0xff]
    %v1144 = vld [vmem:[#allocation10 + $0xd50] sm:$0xff]
    %v1145 = vld [vmem:[#allocation10 + $0xd58] sm:$0xff]
    %v1146 = vld [vmem:[#allocation10 + $0xd60] sm:$0xff]
    %v1147 = vld [vmem:[#allocation10 + $0xd68] sm:$0xff]
    %v1148 = vld [vmem:[#allocation10 + $0xd70] sm:$0xff]
    %v1149 = vld [vmem:[#allocation10 + $0xd78] sm:$0xff]
    %v1150 = vld [vmem:[#allocation10 + $0xd80] sm:$0xff]
    %v1151 = vld [vmem:[#allocation10 + $0xd88] sm:$0xff]
    %v1152 = vld [vmem:[#allocation10 + $0xd90] sm:$0xff]
    %v1153 = vld [vmem:[#allocation10 + $0xd98] sm:$0xff]
    %v1154 = vld [vmem:[#allocation10 + $0xda0] sm:$0xff]
    %v1155 = vld [vmem:[#allocation10 + $0xda8] sm:$0xff]
    %v1156 = vld [vmem:[#allocation10 + $0xdb0] sm:$0xff]
    %v1157 = vld [vmem:[#allocation10 + $0xdb8] sm:$0xff]
    %v1158 = vld [vmem:[#allocation10 + $0xdc0] sm:$0xff]
    %v1159 = vld [vmem:[#allocation10 + $0xdc8] sm:$0xff]
    %v1160 = vld [vmem:[#allocation10 + $0xdd0] sm:$0xff]
    %v1161 = vld [vmem:[#allocation10 + $0xdd8] sm:$0xff]
    %v1162 = vld [vmem:[#allocation10 + $0xde0] sm:$0xff]
    %v1163 = vld [vmem:[#allocation10 + $0xde8] sm:$0xff]
    %v1164 = vld [vmem:[#allocation10 + $0xdf0] sm:$0xff]
    %v1165 = vld [vmem:[#allocation10 + $0xdf8] sm:$0xff]
    %v1166 = vld [vmem:[#allocation10 + $0xe00] sm:$0xff]
    %v1167 = vld [vmem:[#allocation10 + $0xe08] sm:$0xff]
    %v1168 = vld [vmem:[#allocation10 + $0xe10] sm:$0xff]
    %v1169 = vld [vmem:[#allocation10 + $0xe18] sm:$0xff]
    %v1170 = vld [vmem:[#allocation10 + $0xe20] sm:$0xff]
    %v1171 = vld [vmem:[#allocation10 + $0xe28] sm:$0xff]
    %v1172 = vld [vmem:[#allocation10 + $0xe30] sm:$0xff]
    %v1173 = vld [vmem:[#allocation10 + $0xe38] sm:$0xff]
    %v1174 = vld [vmem:[#allocation10 + $0xe40] sm:$0xff]
    %v1175 = vld [vmem:[#allocation10 + $0xe48] sm:$0xff]
    %v1176 = vld [vmem:[#allocation10 + $0xe50] sm:$0xff]
    %v1177 = vld [vmem:[#allocation10 + $0xe58] sm:$0xff]
    %v1178 = vld [vmem:[#allocation10 + $0xe60] sm:$0xff]
    %v1179 = vld [vmem:[#allocation10 + $0xe68] sm:$0xff]
    %v1180 = vld [vmem:[#allocation10 + $0xe70] sm:$0xff]
    %v1181 = vld [vmem:[#allocation10 + $0xe78] sm:$0xff]
    %v1182 = vld [vmem:[#allocation10 + $0xe80] sm:$0xff]
    %v1183 = vld [vmem:[#allocation10 + $0xe88] sm:$0xff]
    %v1184 = vld [vmem:[#allocation10 + $0xe90] sm:$0xff]
    %v1185 = vld [vmem:[#allocation10 + $0xe98] sm:$0xff]
    %v1186 = vld [vmem:[#allocation10 + $0xea0] sm:$0xff]
    %v1187 = vld [vmem:[#allocation10 + $0xea8] sm:$0xff]
    %v1188 = vld [vmem:[#allocation10 + $0xeb0] sm:$0xff]
    %v1189 = vld [vmem:[#allocation10 + $0xeb8] sm:$0xff]
    %v1190 = vld [vmem:[#allocation10 + $0xec0] sm:$0xff]
    %v1191 = vld [vmem:[#allocation10 + $0xec8] sm:$0xff]
    %v1192 = vld [vmem:[#allocation10 + $0xed0] sm:$0xff]
    %v1193 = vld [vmem:[#allocation10 + $0xed8] sm:$0xff]
    %v1194 = vld [vmem:[#allocation10 + $0xee0] sm:$0xff]
    %v1195 = vld [vmem:[#allocation10 + $0xee8] sm:$0xff]
    %v1196 = vld [vmem:[#allocation10 + $0xef0] sm:$0xff]
    %v1197 = vld [vmem:[#allocation10 + $0xef8] sm:$0xff]
    %v1198 = vld [vmem:[#allocation10 + $0xf00] sm:$0xff]
    %v1199 = vld [vmem:[#allocation10 + $0xf08] sm:$0xff]
    %v1200 = vld [vmem:[#allocation10 + $0xf10] sm:$0xff]
    %v1201 = vld [vmem:[#allocation10 + $0xf18] sm:$0xff]
    %v1202 = vld [vmem:[#allocation10 + $0xf20] sm:$0xff]
    %v1203 = vld [vmem:[#allocation10 + $0xf28] sm:$0xff]
    %v1204 = vld [vmem:[#allocation10 + $0xf30] sm:$0xff]
    %v1205 = vld [vmem:[#allocation10 + $0xf38] sm:$0xff]
    %v1206 = vld [vmem:[#allocation10 + $0xf40] sm:$0xff]
    %v1207 = vld [vmem:[#allocation10 + $0xf48] sm:$0xff]
    %v1208 = vld [vmem:[#allocation10 + $0xf50] sm:$0xff]
    %v1209 = vld [vmem:[#allocation10 + $0xf58] sm:$0xff]
    %v1210 = vld [vmem:[#allocation10 + $0xf60] sm:$0xff]
    %v1211 = vld [vmem:[#allocation10 + $0xf68] sm:$0xff]
    %v1212 = vld [vmem:[#allocation10 + $0xf70] sm:$0xff]
    %v1213 = vld [vmem:[#allocation10 + $0xf78] sm:$0xff]
    %v1214 = vld [vmem:[#allocation10 + $0xf80] sm:$0xff]
    %v1215 = vld [vmem:[#allocation10 + $0xf88] sm:$0xff]
    %v1216 = vld [vmem:[#allocation10 + $0xf90] sm:$0xff]
    %v1217 = vld [vmem:[#allocation10 + $0xf98] sm:$0xff]
    %v1218 = vld [vmem:[#allocation10 + $0xfa0] sm:$0xff]
    %v1219 = vld [vmem:[#allocation10 + $0xfa8] sm:$0xff]
    %v1220 = vld [vmem:[#allocation10 + $0xfb0] sm:$0xff]
    %v1221 = vld [vmem:[#allocation10 + $0xfb8] sm:$0xff]
    %v1222 = vld [vmem:[#allocation10 + $0xfc0] sm:$0xff]
    %v1223 = vld [vmem:[#allocation10 + $0xfc8] sm:$0xff]
    %v1224 = vld [vmem:[#allocation10 + $0xfd0] sm:$0xff]
    %v1225 = vld [vmem:[#allocation10 + $0xfd8] sm:$0xff]
    %v1226 = vld [vmem:[#allocation10 + $0xfe0] sm:$0xff]
    %v1227 = vld [vmem:[#allocation10 + $0xfe8] sm:$0xff]
    %v1228 = vld [vmem:[#allocation10 + $0xff0] sm:$0xff]
    %v1229 = vld [vmem:[#allocation10 + $0xff8] sm:$0xff]
    %v1230 = vld [vmem:[#allocation11] sm:$0xff]
    %v1232 = vlaneseq
    %v1233 = vshrl.u32 %v1232, 7
    %v1234 = vsub.s32 0, %v1233
    %v1235 = vrot.slane %v1230, %v1234
    %v1236 = vlaneseq
    %v1237 = vshrl.u32 %v1236, 7
    %v1238 = vsub.s32 1, %v1237
    %v1239 = vrot.slane %v1230, %v1238
    %v1240 = vlaneseq
    %v1241 = vshrl.u32 %v1240, 7
    %v1242 = vsub.s32 2, %v1241
    %v1243 = vrot.slane %v1230, %v1242
    %v1244 = vlaneseq
    %v1245 = vshrl.u32 %v1244, 7
    %v1246 = vsub.s32 3, %v1245
    %v1247 = vrot.slane %v1230, %v1246
    %v1248 = vlaneseq
    %v1249 = vshrl.u32 %v1248, 7
    %v1250 = vsub.s32 4, %v1249
    %v1251 = vrot.slane %v1230, %v1250
    %v1252 = vlaneseq
    %v1253 = vshrl.u32 %v1252, 7
    %v1254 = vsub.s32 5, %v1253
    %v1255 = vrot.slane %v1230, %v1254
    %v1256 = vlaneseq
    %v1257 = vshrl.u32 %v1256, 7
    %v1258 = vsub.s32 6, %v1257
    %v1259 = vrot.slane %v1230, %v1258
    %v1260 = vlaneseq
    %v1261 = vshrl.u32 %v1260, 7
    %v1262 = vsub.s32 7, %v1261
    %v1263 = vrot.slane %v1230, %v1262
    %v1784 = vunpack.c.l.b16 %v718
    %v1785 = vunpack.c.h.b16 %v718
    %v1786 = vunpack.c.l.b16 %v719
    %v1787 = vunpack.c.h.b16 %v719
    %v1788 = vunpack.c.l.b16 %v720
    %v1789 = vunpack.c.h.b16 %v720
    %v1790 = vunpack.c.l.b16 %v721
    %v1791 = vunpack.c.h.b16 %v721
    %v1792 = vunpack.c.l.b16 %v722
    %v1793 = vunpack.c.h.b16 %v722
    %v1794 = vunpack.c.l.b16 %v723
    %v1795 = vunpack.c.h.b16 %v723
    %v1796 = vunpack.c.l.b16 %v724
    %v1797 = vunpack.c.h.b16 %v724
    %v1798 = vunpack.c.l.b16 %v725
    %v1799 = vunpack.c.h.b16 %v725
    %v1800 = vunpack.c.l.b16 %v726
    %v1801 = vunpack.c.h.b16 %v726
    %v1802 = vunpack.c.l.b16 %v727
    %v1803 = vunpack.c.h.b16 %v727
    %v1804 = vunpack.c.l.b16 %v728
    %v1805 = vunpack.c.h.b16 %v728
    %v1806 = vunpack.c.l.b16 %v729
    %v1807 = vunpack.c.h.b16 %v729
    %v1808 = vunpack.c.l.b16 %v730
    %v1809 = vunpack.c.h.b16 %v730
    %v1810 = vunpack.c.l.b16 %v731
    %v1811 = vunpack.c.h.b16 %v731
    %v1812 = vunpack.c.l.b16 %v732
    %v1813 = vunpack.c.h.b16 %v732
    %v1814 = vunpack.c.l.b16 %v733
    %v1815 = vunpack.c.h.b16 %v733
    %v1816 = vunpack.c.l.b16 %v734
    %v1817 = vunpack.c.h.b16 %v734
    %v1818 = vunpack.c.l.b16 %v735
    %v1819 = vunpack.c.h.b16 %v735
    %v1820 = vunpack.c.l.b16 %v736
    %v1821 = vunpack.c.h.b16 %v736
    %v1822 = vunpack.c.l.b16 %v737
    %v1823 = vunpack.c.h.b16 %v737
    %v1824 = vunpack.c.l.b16 %v738
    %v1825 = vunpack.c.h.b16 %v738
    %v1826 = vunpack.c.l.b16 %v739
    %v1827 = vunpack.c.h.b16 %v739
    %v1828 = vunpack.c.l.b16 %v740
    %v1829 = vunpack.c.h.b16 %v740
    %v1830 = vunpack.c.l.b16 %v741
    %v1831 = vunpack.c.h.b16 %v741
    %v1832 = vunpack.c.l.b16 %v742
    %v1833 = vunpack.c.h.b16 %v742
    %v1834 = vunpack.c.l.b16 %v743
    %v1835 = vunpack.c.h.b16 %v743
    %v1836 = vunpack.c.l.b16 %v744
    %v1837 = vunpack.c.h.b16 %v744
    %v1838 = vunpack.c.l.b16 %v745
    %v1839 = vunpack.c.h.b16 %v745
    %v1840 = vunpack.c.l.b16 %v746
    %v1841 = vunpack.c.h.b16 %v746
    %v1842 = vunpack.c.l.b16 %v747
    %v1843 = vunpack.c.h.b16 %v747
    %v1844 = vunpack.c.l.b16 %v748
    %v1845 = vunpack.c.h.b16 %v748
    %v1846 = vunpack.c.l.b16 %v749
    %v1847 = vunpack.c.h.b16 %v749
    %v1848 = vunpack.c.l.b16 %v750
    %v1849 = vunpack.c.h.b16 %v750
    %v1850 = vunpack.c.l.b16 %v751
    %v1851 = vunpack.c.h.b16 %v751
    %v1852 = vunpack.c.l.b16 %v752
    %v1853 = vunpack.c.h.b16 %v752
    %v1854 = vunpack.c.l.b16 %v753
    %v1855 = vunpack.c.h.b16 %v753
    %v1856 = vunpack.c.l.b16 %v754
    %v1857 = vunpack.c.h.b16 %v754
    %v1858 = vunpack.c.l.b16 %v755
    %v1859 = vunpack.c.h.b16 %v755
    %v1860 = vunpack.c.l.b16 %v756
    %v1861 = vunpack.c.h.b16 %v756
    %v1862 = vunpack.c.l.b16 %v757
    %v1863 = vunpack.c.h.b16 %v757
    %v1864 = vunpack.c.l.b16 %v758
    %v1865 = vunpack.c.h.b16 %v758
    %v1866 = vunpack.c.l.b16 %v759
    %v1867 = vunpack.c.h.b16 %v759
    %v1868 = vunpack.c.l.b16 %v760
    %v1869 = vunpack.c.h.b16 %v760
    %v1870 = vunpack.c.l.b16 %v761
    %v1871 = vunpack.c.h.b16 %v761
    %v1872 = vunpack.c.l.b16 %v762
    %v1873 = vunpack.c.h.b16 %v762
    %v1874 = vunpack.c.l.b16 %v763
    %v1875 = vunpack.c.h.b16 %v763
    %v1876 = vunpack.c.l.b16 %v764
    %v1877 = vunpack.c.h.b16 %v764
    %v1878 = vunpack.c.l.b16 %v765
    %v1879 = vunpack.c.h.b16 %v765
    %v1880 = vunpack.c.l.b16 %v766
    %v1881 = vunpack.c.h.b16 %v766
    %v1882 = vunpack.c.l.b16 %v767
    %v1883 = vunpack.c.h.b16 %v767
    %v1884 = vunpack.c.l.b16 %v768
    %v1885 = vunpack.c.h.b16 %v768
    %v1886 = vunpack.c.l.b16 %v769
    %v1887 = vunpack.c.h.b16 %v769
    %v1888 = vunpack.c.l.b16 %v770
    %v1889 = vunpack.c.h.b16 %v770
    %v1890 = vunpack.c.l.b16 %v771
    %v1891 = vunpack.c.h.b16 %v771
    %v1892 = vunpack.c.l.b16 %v772
    %v1893 = vunpack.c.h.b16 %v772
    %v1894 = vunpack.c.l.b16 %v773
    %v1895 = vunpack.c.h.b16 %v773
    %v1896 = vunpack.c.l.b16 %v774
    %v1897 = vunpack.c.h.b16 %v774
    %v1898 = vunpack.c.l.b16 %v775
    %v1899 = vunpack.c.h.b16 %v775
    %v1900 = vunpack.c.l.b16 %v776
    %v1901 = vunpack.c.h.b16 %v776
    %v1902 = vunpack.c.l.b16 %v777
    %v1903 = vunpack.c.h.b16 %v777
    %v1904 = vunpack.c.l.b16 %v778
    %v1905 = vunpack.c.h.b16 %v778
    %v1906 = vunpack.c.l.b16 %v779
    %v1907 = vunpack.c.h.b16 %v779
    %v1908 = vunpack.c.l.b16 %v780
    %v1909 = vunpack.c.h.b16 %v780
    %v1910 = vunpack.c.l.b16 %v781
    %v1911 = vunpack.c.h.b16 %v781
    %v1912 = vunpack.c.l.b16 %v782
    %v1913 = vunpack.c.h.b16 %v782
    %v1914 = vunpack.c.l.b16 %v783
    %v1915 = vunpack.c.h.b16 %v783
    %v1916 = vunpack.c.l.b16 %v784
    %v1917 = vunpack.c.h.b16 %v784
    %v1918 = vunpack.c.l.b16 %v785
    %v1919 = vunpack.c.h.b16 %v785
    %v1920 = vunpack.c.l.b16 %v786
    %v1921 = vunpack.c.h.b16 %v786
    %v1922 = vunpack.c.l.b16 %v787
    %v1923 = vunpack.c.h.b16 %v787
    %v1924 = vunpack.c.l.b16 %v788
    %v1925 = vunpack.c.h.b16 %v788
    %v1926 = vunpack.c.l.b16 %v789
    %v1927 = vunpack.c.h.b16 %v789
    %v1928 = vunpack.c.l.b16 %v790
    %v1929 = vunpack.c.h.b16 %v790
    %v1930 = vunpack.c.l.b16 %v791
    %v1931 = vunpack.c.h.b16 %v791
    %v1932 = vunpack.c.l.b16 %v792
    %v1933 = vunpack.c.h.b16 %v792
    %v1934 = vunpack.c.l.b16 %v793
    %v1935 = vunpack.c.h.b16 %v793
    %v1936 = vunpack.c.l.b16 %v794
    %v1937 = vunpack.c.h.b16 %v794
    %v1938 = vunpack.c.l.b16 %v795
    %v1939 = vunpack.c.h.b16 %v795
    %v1940 = vunpack.c.l.b16 %v796
    %v1941 = vunpack.c.h.b16 %v796
    %v1942 = vunpack.c.l.b16 %v797
    %v1943 = vunpack.c.h.b16 %v797
    %v1944 = vunpack.c.l.b16 %v798
    %v1945 = vunpack.c.h.b16 %v798
    %v1946 = vunpack.c.l.b16 %v799
    %v1947 = vunpack.c.h.b16 %v799
    %v1948 = vunpack.c.l.b16 %v800
    %v1949 = vunpack.c.h.b16 %v800
    %v1950 = vunpack.c.l.b16 %v801
    %v1951 = vunpack.c.h.b16 %v801
    %v1952 = vunpack.c.l.b16 %v802
    %v1953 = vunpack.c.h.b16 %v802
    %v1954 = vunpack.c.l.b16 %v803
    %v1955 = vunpack.c.h.b16 %v803
    %v1956 = vunpack.c.l.b16 %v804
    %v1957 = vunpack.c.h.b16 %v804
    %v1958 = vunpack.c.l.b16 %v805
    %v1959 = vunpack.c.h.b16 %v805
    %v1960 = vunpack.c.l.b16 %v806
    %v1961 = vunpack.c.h.b16 %v806
    %v1962 = vunpack.c.l.b16 %v807
    %v1963 = vunpack.c.h.b16 %v807
    %v1964 = vunpack.c.l.b16 %v808
    %v1965 = vunpack.c.h.b16 %v808
    %v1966 = vunpack.c.l.b16 %v809
    %v1967 = vunpack.c.h.b16 %v809
    %v1968 = vunpack.c.l.b16 %v810
    %v1969 = vunpack.c.h.b16 %v810
    %v1970 = vunpack.c.l.b16 %v811
    %v1971 = vunpack.c.h.b16 %v811
    %v1972 = vunpack.c.l.b16 %v812
    %v1973 = vunpack.c.h.b16 %v812
    %v1974 = vunpack.c.l.b16 %v813
    %v1975 = vunpack.c.h.b16 %v813
    %v1976 = vunpack.c.l.b16 %v814
    %v1977 = vunpack.c.h.b16 %v814
    %v1978 = vunpack.c.l.b16 %v815
    %v1979 = vunpack.c.h.b16 %v815
    %v1980 = vunpack.c.l.b16 %v816
    %v1981 = vunpack.c.h.b16 %v816
    %v1982 = vunpack.c.l.b16 %v817
    %v1983 = vunpack.c.h.b16 %v817
    %v1984 = vunpack.c.l.b16 %v818
    %v1985 = vunpack.c.h.b16 %v818
    %v1986 = vunpack.c.l.b16 %v819
    %v1987 = vunpack.c.h.b16 %v819
    %v1988 = vunpack.c.l.b16 %v820
    %v1989 = vunpack.c.h.b16 %v820
    %v1990 = vunpack.c.l.b16 %v821
    %v1991 = vunpack.c.h.b16 %v821
    %v1992 = vunpack.c.l.b16 %v822
    %v1993 = vunpack.c.h.b16 %v822
    %v1994 = vunpack.c.l.b16 %v823
    %v1995 = vunpack.c.h.b16 %v823
    %v1996 = vunpack.c.l.b16 %v824
    %v1997 = vunpack.c.h.b16 %v824
    %v1998 = vunpack.c.l.b16 %v825
    %v1999 = vunpack.c.h.b16 %v825
    %v2000 = vunpack.c.l.b16 %v826
    %v2001 = vunpack.c.h.b16 %v826
    %v2002 = vunpack.c.l.b16 %v827
    %v2003 = vunpack.c.h.b16 %v827
    %v2004 = vunpack.c.l.b16 %v828
    %v2005 = vunpack.c.h.b16 %v828
    %v2006 = vunpack.c.l.b16 %v829
    %v2007 = vunpack.c.h.b16 %v829
    %v2008 = vunpack.c.l.b16 %v830
    %v2009 = vunpack.c.h.b16 %v830
    %v2010 = vunpack.c.l.b16 %v831
    %v2011 = vunpack.c.h.b16 %v831
    %v2012 = vunpack.c.l.b16 %v832
    %v2013 = vunpack.c.h.b16 %v832
    %v2014 = vunpack.c.l.b16 %v833
    %v2015 = vunpack.c.h.b16 %v833
    %v2016 = vunpack.c.l.b16 %v834
    %v2017 = vunpack.c.h.b16 %v834
    %v2018 = vunpack.c.l.b16 %v835
    %v2019 = vunpack.c.h.b16 %v835
    %v2020 = vunpack.c.l.b16 %v836
    %v2021 = vunpack.c.h.b16 %v836
    %v2022 = vunpack.c.l.b16 %v837
    %v2023 = vunpack.c.h.b16 %v837
    %v2024 = vunpack.c.l.b16 %v838
    %v2025 = vunpack.c.h.b16 %v838
    %v2026 = vunpack.c.l.b16 %v839
    %v2027 = vunpack.c.h.b16 %v839
    %v2028 = vunpack.c.l.b16 %v840
    %v2029 = vunpack.c.h.b16 %v840
    %v2030 = vunpack.c.l.b16 %v841
    %v2031 = vunpack.c.h.b16 %v841
    %v2032 = vunpack.c.l.b16 %v842
    %v2033 = vunpack.c.h.b16 %v842
    %v2034 = vunpack.c.l.b16 %v843
    %v2035 = vunpack.c.h.b16 %v843
    %v2036 = vunpack.c.l.b16 %v844
    %v2037 = vunpack.c.h.b16 %v844
    %v2038 = vunpack.c.l.b16 %v845
    %v2039 = vunpack.c.h.b16 %v845
    %v2040 = vunpack.c.l.b16 %v846
    %v2041 = vunpack.c.h.b16 %v846
    %v2042 = vunpack.c.l.b16 %v847
    %v2043 = vunpack.c.h.b16 %v847
    %v2044 = vunpack.c.l.b16 %v848
    %v2045 = vunpack.c.h.b16 %v848
    %v2046 = vunpack.c.l.b16 %v849
    %v2047 = vunpack.c.h.b16 %v849
    %v2048 = vunpack.c.l.b16 %v850
    %v2049 = vunpack.c.h.b16 %v850
    %v2050 = vunpack.c.l.b16 %v851
    %v2051 = vunpack.c.h.b16 %v851
    %v2052 = vunpack.c.l.b16 %v852
    %v2053 = vunpack.c.h.b16 %v852
    %v2054 = vunpack.c.l.b16 %v853
    %v2055 = vunpack.c.h.b16 %v853
    %v2056 = vunpack.c.l.b16 %v854
    %v2057 = vunpack.c.h.b16 %v854
    %v2058 = vunpack.c.l.b16 %v855
    %v2059 = vunpack.c.h.b16 %v855
    %v2060 = vunpack.c.l.b16 %v856
    %v2061 = vunpack.c.h.b16 %v856
    %v2062 = vunpack.c.l.b16 %v857
    %v2063 = vunpack.c.h.b16 %v857
    %v2064 = vunpack.c.l.b16 %v858
    %v2065 = vunpack.c.h.b16 %v858
    %v2066 = vunpack.c.l.b16 %v859
    %v2067 = vunpack.c.h.b16 %v859
    %v2068 = vunpack.c.l.b16 %v860
    %v2069 = vunpack.c.h.b16 %v860
    %v2070 = vunpack.c.l.b16 %v861
    %v2071 = vunpack.c.h.b16 %v861
    %v2072 = vunpack.c.l.b16 %v862
    %v2073 = vunpack.c.h.b16 %v862
    %v2074 = vunpack.c.l.b16 %v863
    %v2075 = vunpack.c.h.b16 %v863
    %v2076 = vunpack.c.l.b16 %v864
    %v2077 = vunpack.c.h.b16 %v864
    %v2078 = vunpack.c.l.b16 %v865
    %v2079 = vunpack.c.h.b16 %v865
    %v2080 = vunpack.c.l.b16 %v866
    %v2081 = vunpack.c.h.b16 %v866
    %v2082 = vunpack.c.l.b16 %v867
    %v2083 = vunpack.c.h.b16 %v867
    %v2084 = vunpack.c.l.b16 %v868
    %v2085 = vunpack.c.h.b16 %v868
    %v2086 = vunpack.c.l.b16 %v869
    %v2087 = vunpack.c.h.b16 %v869
    %v2088 = vunpack.c.l.b16 %v870
    %v2089 = vunpack.c.h.b16 %v870
    %v2090 = vunpack.c.l.b16 %v871
    %v2091 = vunpack.c.h.b16 %v871
    %v2092 = vunpack.c.l.b16 %v872
    %v2093 = vunpack.c.h.b16 %v872
    %v2094 = vunpack.c.l.b16 %v873
    %v2095 = vunpack.c.h.b16 %v873
    %v2096 = vunpack.c.l.b16 %v874
    %v2097 = vunpack.c.h.b16 %v874
    %v2098 = vunpack.c.l.b16 %v875
    %v2099 = vunpack.c.h.b16 %v875
    %v2100 = vunpack.c.l.b16 %v876
    %v2101 = vunpack.c.h.b16 %v876
    %v2102 = vunpack.c.l.b16 %v877
    %v2103 = vunpack.c.h.b16 %v877
    %v2104 = vunpack.c.l.b16 %v878
    %v2105 = vunpack.c.h.b16 %v878
    %v2106 = vunpack.c.l.b16 %v879
    %v2107 = vunpack.c.h.b16 %v879
    %v2108 = vunpack.c.l.b16 %v880
    %v2109 = vunpack.c.h.b16 %v880
    %v2110 = vunpack.c.l.b16 %v881
    %v2111 = vunpack.c.h.b16 %v881
    %v2112 = vunpack.c.l.b16 %v882
    %v2113 = vunpack.c.h.b16 %v882
    %v2114 = vunpack.c.l.b16 %v883
    %v2115 = vunpack.c.h.b16 %v883
    %v2116 = vunpack.c.l.b16 %v884
    %v2117 = vunpack.c.h.b16 %v884
    %v2118 = vunpack.c.l.b16 %v885
    %v2119 = vunpack.c.h.b16 %v885
    %v2120 = vunpack.c.l.b16 %v886
    %v2121 = vunpack.c.h.b16 %v886
    %v2122 = vunpack.c.l.b16 %v887
    %v2123 = vunpack.c.h.b16 %v887
    %v2124 = vunpack.c.l.b16 %v888
    %v2125 = vunpack.c.h.b16 %v888
    %v2126 = vunpack.c.l.b16 %v889
    %v2127 = vunpack.c.h.b16 %v889
    %v2128 = vunpack.c.l.b16 %v890
    %v2129 = vunpack.c.h.b16 %v890
    %v2130 = vunpack.c.l.b16 %v891
    %v2131 = vunpack.c.h.b16 %v891
    %v2132 = vunpack.c.l.b16 %v892
    %v2133 = vunpack.c.h.b16 %v892
    %v2134 = vunpack.c.l.b16 %v893
    %v2135 = vunpack.c.h.b16 %v893
    %v2136 = vunpack.c.l.b16 %v894
    %v2137 = vunpack.c.h.b16 %v894
    %v2138 = vunpack.c.l.b16 %v895
    %v2139 = vunpack.c.h.b16 %v895
    %v2140 = vunpack.c.l.b16 %v896
    %v2141 = vunpack.c.h.b16 %v896
    %v2142 = vunpack.c.l.b16 %v897
    %v2143 = vunpack.c.h.b16 %v897
    %v2144 = vunpack.c.l.b16 %v898
    %v2145 = vunpack.c.h.b16 %v898
    %v2146 = vunpack.c.l.b16 %v899
    %v2147 = vunpack.c.h.b16 %v899
    %v2148 = vunpack.c.l.b16 %v900
    %v2149 = vunpack.c.h.b16 %v900
    %v2150 = vunpack.c.l.b16 %v901
    %v2151 = vunpack.c.h.b16 %v901
    %v2152 = vunpack.c.l.b16 %v902
    %v2153 = vunpack.c.h.b16 %v902
    %v2154 = vunpack.c.l.b16 %v903
    %v2155 = vunpack.c.h.b16 %v903
    %v2156 = vunpack.c.l.b16 %v904
    %v2157 = vunpack.c.h.b16 %v904
    %v2158 = vunpack.c.l.b16 %v905
    %v2159 = vunpack.c.h.b16 %v905
    %v2160 = vunpack.c.l.b16 %v906
    %v2161 = vunpack.c.h.b16 %v906
    %v2162 = vunpack.c.l.b16 %v907
    %v2163 = vunpack.c.h.b16 %v907
    %v2164 = vunpack.c.l.b16 %v908
    %v2165 = vunpack.c.h.b16 %v908
    %v2166 = vunpack.c.l.b16 %v909
    %v2167 = vunpack.c.h.b16 %v909
    %v2168 = vunpack.c.l.b16 %v910
    %v2169 = vunpack.c.h.b16 %v910
    %v2170 = vunpack.c.l.b16 %v911
    %v2171 = vunpack.c.h.b16 %v911
    %v2172 = vunpack.c.l.b16 %v912
    %v2173 = vunpack.c.h.b16 %v912
    %v2174 = vunpack.c.l.b16 %v913
    %v2175 = vunpack.c.h.b16 %v913
    %v2176 = vunpack.c.l.b16 %v914
    %v2177 = vunpack.c.h.b16 %v914
    %v2178 = vunpack.c.l.b16 %v915
    %v2179 = vunpack.c.h.b16 %v915
    %v2180 = vunpack.c.l.b16 %v916
    %v2181 = vunpack.c.h.b16 %v916
    %v2182 = vunpack.c.l.b16 %v917
    %v2183 = vunpack.c.h.b16 %v917
    %v2184 = vunpack.c.l.b16 %v918
    %v2185 = vunpack.c.h.b16 %v918
    %v2186 = vunpack.c.l.b16 %v919
    %v2187 = vunpack.c.h.b16 %v919
    %v2188 = vunpack.c.l.b16 %v920
    %v2189 = vunpack.c.h.b16 %v920
    %v2190 = vunpack.c.l.b16 %v921
    %v2191 = vunpack.c.h.b16 %v921
    %v2192 = vunpack.c.l.b16 %v922
    %v2193 = vunpack.c.h.b16 %v922
    %v2194 = vunpack.c.l.b16 %v923
    %v2195 = vunpack.c.h.b16 %v923
    %v2196 = vunpack.c.l.b16 %v924
    %v2197 = vunpack.c.h.b16 %v924
    %v2198 = vunpack.c.l.b16 %v925
    %v2199 = vunpack.c.h.b16 %v925
    %v2200 = vunpack.c.l.b16 %v926
    %v2201 = vunpack.c.h.b16 %v926
    %v2202 = vunpack.c.l.b16 %v927
    %v2203 = vunpack.c.h.b16 %v927
    %v2204 = vunpack.c.l.b16 %v928
    %v2205 = vunpack.c.h.b16 %v928
    %v2206 = vunpack.c.l.b16 %v929
    %v2207 = vunpack.c.h.b16 %v929
    %v2208 = vunpack.c.l.b16 %v930
    %v2209 = vunpack.c.h.b16 %v930
    %v2210 = vunpack.c.l.b16 %v931
    %v2211 = vunpack.c.h.b16 %v931
    %v2212 = vunpack.c.l.b16 %v932
    %v2213 = vunpack.c.h.b16 %v932
    %v2214 = vunpack.c.l.b16 %v933
    %v2215 = vunpack.c.h.b16 %v933
    %v2216 = vunpack.c.l.b16 %v934
    %v2217 = vunpack.c.h.b16 %v934
    %v2218 = vunpack.c.l.b16 %v935
    %v2219 = vunpack.c.h.b16 %v935
    %v2220 = vunpack.c.l.b16 %v936
    %v2221 = vunpack.c.h.b16 %v936
    %v2222 = vunpack.c.l.b16 %v937
    %v2223 = vunpack.c.h.b16 %v937
    %v2224 = vunpack.c.l.b16 %v938
    %v2225 = vunpack.c.h.b16 %v938
    %v2226 = vunpack.c.l.b16 %v939
    %v2227 = vunpack.c.h.b16 %v939
    %v2228 = vunpack.c.l.b16 %v940
    %v2229 = vunpack.c.h.b16 %v940
    %v2230 = vunpack.c.l.b16 %v941
    %v2231 = vunpack.c.h.b16 %v941
    %v2232 = vunpack.c.l.b16 %v942
    %v2233 = vunpack.c.h.b16 %v942
    %v2234 = vunpack.c.l.b16 %v943
    %v2235 = vunpack.c.h.b16 %v943
    %v2236 = vunpack.c.l.b16 %v944
    %v2237 = vunpack.c.h.b16 %v944
    %v2238 = vunpack.c.l.b16 %v945
    %v2239 = vunpack.c.h.b16 %v945
    %v2240 = vunpack.c.l.b16 %v946
    %v2241 = vunpack.c.h.b16 %v946
    %v2242 = vunpack.c.l.b16 %v947
    %v2243 = vunpack.c.h.b16 %v947
    %v2244 = vunpack.c.l.b16 %v948
    %v2245 = vunpack.c.h.b16 %v948
    %v2246 = vunpack.c.l.b16 %v949
    %v2247 = vunpack.c.h.b16 %v949
    %v2248 = vunpack.c.l.b16 %v950
    %v2249 = vunpack.c.h.b16 %v950
    %v2250 = vunpack.c.l.b16 %v951
    %v2251 = vunpack.c.h.b16 %v951
    %v2252 = vunpack.c.l.b16 %v952
    %v2253 = vunpack.c.h.b16 %v952
    %v2254 = vunpack.c.l.b16 %v953
    %v2255 = vunpack.c.h.b16 %v953
    %v2256 = vunpack.c.l.b16 %v954
    %v2257 = vunpack.c.h.b16 %v954
    %v2258 = vunpack.c.l.b16 %v955
    %v2259 = vunpack.c.h.b16 %v955
    %v2260 = vunpack.c.l.b16 %v956
    %v2261 = vunpack.c.h.b16 %v956
    %v2262 = vunpack.c.l.b16 %v957
    %v2263 = vunpack.c.h.b16 %v957
    %v2264 = vunpack.c.l.b16 %v958
    %v2265 = vunpack.c.h.b16 %v958
    %v2266 = vunpack.c.l.b16 %v959
    %v2267 = vunpack.c.h.b16 %v959
    %v2268 = vunpack.c.l.b16 %v960
    %v2269 = vunpack.c.h.b16 %v960
    %v2270 = vunpack.c.l.b16 %v961
    %v2271 = vunpack.c.h.b16 %v961
    %v2272 = vunpack.c.l.b16 %v962
    %v2273 = vunpack.c.h.b16 %v962
    %v2274 = vunpack.c.l.b16 %v963
    %v2275 = vunpack.c.h.b16 %v963
    %v2276 = vunpack.c.l.b16 %v964
    %v2277 = vunpack.c.h.b16 %v964
    %v2278 = vunpack.c.l.b16 %v965
    %v2279 = vunpack.c.h.b16 %v965
    %v2280 = vunpack.c.l.b16 %v966
    %v2281 = vunpack.c.h.b16 %v966
    %v2282 = vunpack.c.l.b16 %v967
    %v2283 = vunpack.c.h.b16 %v967
    %v2284 = vunpack.c.l.b16 %v968
    %v2285 = vunpack.c.h.b16 %v968
    %v2286 = vunpack.c.l.b16 %v969
    %v2287 = vunpack.c.h.b16 %v969
    %v2288 = vunpack.c.l.b16 %v970
    %v2289 = vunpack.c.h.b16 %v970
    %v2290 = vunpack.c.l.b16 %v971
    %v2291 = vunpack.c.h.b16 %v971
    %v2292 = vunpack.c.l.b16 %v972
    %v2293 = vunpack.c.h.b16 %v972
    %v2294 = vunpack.c.l.b16 %v973
    %v2295 = vunpack.c.h.b16 %v973
    %v2296 = vunpack.c.l.b16 %v974
    %v2297 = vunpack.c.h.b16 %v974
    %v2298 = vunpack.c.l.b16 %v975
    %v2299 = vunpack.c.h.b16 %v975
    %v2300 = vunpack.c.l.b16 %v976
    %v2301 = vunpack.c.h.b16 %v976
    %v2302 = vunpack.c.l.b16 %v977
    %v2303 = vunpack.c.h.b16 %v977
    %v2304 = vunpack.c.l.b16 %v978
    %v2305 = vunpack.c.h.b16 %v978
    %v2306 = vunpack.c.l.b16 %v979
    %v2307 = vunpack.c.h.b16 %v979
    %v2308 = vunpack.c.l.b16 %v980
    %v2309 = vunpack.c.h.b16 %v980
    %v2310 = vunpack.c.l.b16 %v981
    %v2311 = vunpack.c.h.b16 %v981
    %v2312 = vunpack.c.l.b16 %v982
    %v2313 = vunpack.c.h.b16 %v982
    %v2314 = vunpack.c.l.b16 %v983
    %v2315 = vunpack.c.h.b16 %v983
    %v2316 = vunpack.c.l.b16 %v984
    %v2317 = vunpack.c.h.b16 %v984
    %v2318 = vunpack.c.l.b16 %v985
    %v2319 = vunpack.c.h.b16 %v985
    %v2320 = vunpack.c.l.b16 %v986
    %v2321 = vunpack.c.h.b16 %v986
    %v2322 = vunpack.c.l.b16 %v987
    %v2323 = vunpack.c.h.b16 %v987
    %v2324 = vunpack.c.l.b16 %v988
    %v2325 = vunpack.c.h.b16 %v988
    %v2326 = vunpack.c.l.b16 %v989
    %v2327 = vunpack.c.h.b16 %v989
    %v2328 = vunpack.c.l.b16 %v990
    %v2329 = vunpack.c.h.b16 %v990
    %v2330 = vunpack.c.l.b16 %v991
    %v2331 = vunpack.c.h.b16 %v991
    %v2332 = vunpack.c.l.b16 %v992
    %v2333 = vunpack.c.h.b16 %v992
    %v2334 = vunpack.c.l.b16 %v993
    %v2335 = vunpack.c.h.b16 %v993
    %v2336 = vunpack.c.l.b16 %v994
    %v2337 = vunpack.c.h.b16 %v994
    %v2338 = vunpack.c.l.b16 %v995
    %v2339 = vunpack.c.h.b16 %v995
    %v2340 = vunpack.c.l.b16 %v996
    %v2341 = vunpack.c.h.b16 %v996
    %v2342 = vunpack.c.l.b16 %v997
    %v2343 = vunpack.c.h.b16 %v997
    %v2344 = vunpack.c.l.b16 %v998
    %v2345 = vunpack.c.h.b16 %v998
    %v2346 = vunpack.c.l.b16 %v999
    %v2347 = vunpack.c.h.b16 %v999
    %v2348 = vunpack.c.l.b16 %v1000
    %v2349 = vunpack.c.h.b16 %v1000
    %v2350 = vunpack.c.l.b16 %v1001
    %v2351 = vunpack.c.h.b16 %v1001
    %v2352 = vunpack.c.l.b16 %v1002
    %v2353 = vunpack.c.h.b16 %v1002
    %v2354 = vunpack.c.l.b16 %v1003
    %v2355 = vunpack.c.h.b16 %v1003
    %v2356 = vunpack.c.l.b16 %v1004
    %v2357 = vunpack.c.h.b16 %v1004
    %v2358 = vunpack.c.l.b16 %v1005
    %v2359 = vunpack.c.h.b16 %v1005
    %v2360 = vunpack.c.l.b16 %v1006
    %v2361 = vunpack.c.h.b16 %v1006
    %v2362 = vunpack.c.l.b16 %v1007
    %v2363 = vunpack.c.h.b16 %v1007
    %v2364 = vunpack.c.l.b16 %v1008
    %v2365 = vunpack.c.h.b16 %v1008
    %v2366 = vunpack.c.l.b16 %v1009
    %v2367 = vunpack.c.h.b16 %v1009
    %v2368 = vunpack.c.l.b16 %v1010
    %v2369 = vunpack.c.h.b16 %v1010
    %v2370 = vunpack.c.l.b16 %v1011
    %v2371 = vunpack.c.h.b16 %v1011
    %v2372 = vunpack.c.l.b16 %v1012
    %v2373 = vunpack.c.h.b16 %v1012
    %v2374 = vunpack.c.l.b16 %v1013
    %v2375 = vunpack.c.h.b16 %v1013
    %v2376 = vunpack.c.l.b16 %v1014
    %v2377 = vunpack.c.h.b16 %v1014
    %v2378 = vunpack.c.l.b16 %v1015
    %v2379 = vunpack.c.h.b16 %v1015
    %v2380 = vunpack.c.l.b16 %v1016
    %v2381 = vunpack.c.h.b16 %v1016
    %v2382 = vunpack.c.l.b16 %v1017
    %v2383 = vunpack.c.h.b16 %v1017
    %v2384 = vunpack.c.l.b16 %v1018
    %v2385 = vunpack.c.h.b16 %v1018
    %v2386 = vunpack.c.l.b16 %v1019
    %v2387 = vunpack.c.h.b16 %v1019
    %v2388 = vunpack.c.l.b16 %v1020
    %v2389 = vunpack.c.h.b16 %v1020
    %v2390 = vunpack.c.l.b16 %v1021
    %v2391 = vunpack.c.h.b16 %v1021
    %v2392 = vunpack.c.l.b16 %v1022
    %v2393 = vunpack.c.h.b16 %v1022
    %v2394 = vunpack.c.l.b16 %v1023
    %v2395 = vunpack.c.h.b16 %v1023
    %v2396 = vunpack.c.l.b16 %v1024
    %v2397 = vunpack.c.h.b16 %v1024
    %v2398 = vunpack.c.l.b16 %v1025
    %v2399 = vunpack.c.h.b16 %v1025
    %v2400 = vunpack.c.l.b16 %v1026
    %v2401 = vunpack.c.h.b16 %v1026
    %v2402 = vunpack.c.l.b16 %v1027
    %v2403 = vunpack.c.h.b16 %v1027
    %v2404 = vunpack.c.l.b16 %v1028
    %v2405 = vunpack.c.h.b16 %v1028
    %v2406 = vunpack.c.l.b16 %v1029
    %v2407 = vunpack.c.h.b16 %v1029
    %v2408 = vunpack.c.l.b16 %v1030
    %v2409 = vunpack.c.h.b16 %v1030
    %v2410 = vunpack.c.l.b16 %v1031
    %v2411 = vunpack.c.h.b16 %v1031
    %v2412 = vunpack.c.l.b16 %v1032
    %v2413 = vunpack.c.h.b16 %v1032
    %v2414 = vunpack.c.l.b16 %v1033
    %v2415 = vunpack.c.h.b16 %v1033
    %v2416 = vunpack.c.l.b16 %v1034
    %v2417 = vunpack.c.h.b16 %v1034
    %v2418 = vunpack.c.l.b16 %v1035
    %v2419 = vunpack.c.h.b16 %v1035
    %v2420 = vunpack.c.l.b16 %v1036
    %v2421 = vunpack.c.h.b16 %v1036
    %v2422 = vunpack.c.l.b16 %v1037
    %v2423 = vunpack.c.h.b16 %v1037
    %v2424 = vunpack.c.l.b16 %v1038
    %v2425 = vunpack.c.h.b16 %v1038
    %v2426 = vunpack.c.l.b16 %v1039
    %v2427 = vunpack.c.h.b16 %v1039
    %v2428 = vunpack.c.l.b16 %v1040
    %v2429 = vunpack.c.h.b16 %v1040
    %v2430 = vunpack.c.l.b16 %v1041
    %v2431 = vunpack.c.h.b16 %v1041
    %v2432 = vunpack.c.l.b16 %v1042
    %v2433 = vunpack.c.h.b16 %v1042
    %v2434 = vunpack.c.l.b16 %v1043
    %v2435 = vunpack.c.h.b16 %v1043
    %v2436 = vunpack.c.l.b16 %v1044
    %v2437 = vunpack.c.h.b16 %v1044
    %v2438 = vunpack.c.l.b16 %v1045
    %v2439 = vunpack.c.h.b16 %v1045
    %v2440 = vunpack.c.l.b16 %v1046
    %v2441 = vunpack.c.h.b16 %v1046
    %v2442 = vunpack.c.l.b16 %v1047
    %v2443 = vunpack.c.h.b16 %v1047
    %v2444 = vunpack.c.l.b16 %v1048
    %v2445 = vunpack.c.h.b16 %v1048
    %v2446 = vunpack.c.l.b16 %v1049
    %v2447 = vunpack.c.h.b16 %v1049
    %v2448 = vunpack.c.l.b16 %v1050
    %v2449 = vunpack.c.h.b16 %v1050
    %v2450 = vunpack.c.l.b16 %v1051
    %v2451 = vunpack.c.h.b16 %v1051
    %v2452 = vunpack.c.l.b16 %v1052
    %v2453 = vunpack.c.h.b16 %v1052
    %v2454 = vunpack.c.l.b16 %v1053
    %v2455 = vunpack.c.h.b16 %v1053
    %v2456 = vunpack.c.l.b16 %v1054
    %v2457 = vunpack.c.h.b16 %v1054
    %v2458 = vunpack.c.l.b16 %v1055
    %v2459 = vunpack.c.h.b16 %v1055
    %v2460 = vunpack.c.l.b16 %v1056
    %v2461 = vunpack.c.h.b16 %v1056
    %v2462 = vunpack.c.l.b16 %v1057
    %v2463 = vunpack.c.h.b16 %v1057
    %v2464 = vunpack.c.l.b16 %v1058
    %v2465 = vunpack.c.h.b16 %v1058
    %v2466 = vunpack.c.l.b16 %v1059
    %v2467 = vunpack.c.h.b16 %v1059
    %v2468 = vunpack.c.l.b16 %v1060
    %v2469 = vunpack.c.h.b16 %v1060
    %v2470 = vunpack.c.l.b16 %v1061
    %v2471 = vunpack.c.h.b16 %v1061
    %v2472 = vunpack.c.l.b16 %v1062
    %v2473 = vunpack.c.h.b16 %v1062
    %v2474 = vunpack.c.l.b16 %v1063
    %v2475 = vunpack.c.h.b16 %v1063
    %v2476 = vunpack.c.l.b16 %v1064
    %v2477 = vunpack.c.h.b16 %v1064
    %v2478 = vunpack.c.l.b16 %v1065
    %v2479 = vunpack.c.h.b16 %v1065
    %v2480 = vunpack.c.l.b16 %v1066
    %v2481 = vunpack.c.h.b16 %v1066
    %v2482 = vunpack.c.l.b16 %v1067
    %v2483 = vunpack.c.h.b16 %v1067
    %v2484 = vunpack.c.l.b16 %v1068
    %v2485 = vunpack.c.h.b16 %v1068
    %v2486 = vunpack.c.l.b16 %v1069
    %v2487 = vunpack.c.h.b16 %v1069
    %v2488 = vunpack.c.l.b16 %v1070
    %v2489 = vunpack.c.h.b16 %v1070
    %v2490 = vunpack.c.l.b16 %v1071
    %v2491 = vunpack.c.h.b16 %v1071
    %v2492 = vunpack.c.l.b16 %v1072
    %v2493 = vunpack.c.h.b16 %v1072
    %v2494 = vunpack.c.l.b16 %v1073
    %v2495 = vunpack.c.h.b16 %v1073
    %v2496 = vunpack.c.l.b16 %v1074
    %v2497 = vunpack.c.h.b16 %v1074
    %v2498 = vunpack.c.l.b16 %v1075
    %v2499 = vunpack.c.h.b16 %v1075
    %v2500 = vunpack.c.l.b16 %v1076
    %v2501 = vunpack.c.h.b16 %v1076
    %v2502 = vunpack.c.l.b16 %v1077
    %v2503 = vunpack.c.h.b16 %v1077
    %v2504 = vunpack.c.l.b16 %v1078
    %v2505 = vunpack.c.h.b16 %v1078
    %v2506 = vunpack.c.l.b16 %v1079
    %v2507 = vunpack.c.h.b16 %v1079
    %v2508 = vunpack.c.l.b16 %v1080
    %v2509 = vunpack.c.h.b16 %v1080
    %v2510 = vunpack.c.l.b16 %v1081
    %v2511 = vunpack.c.h.b16 %v1081
    %v2512 = vunpack.c.l.b16 %v1082
    %v2513 = vunpack.c.h.b16 %v1082
    %v2514 = vunpack.c.l.b16 %v1083
    %v2515 = vunpack.c.h.b16 %v1083
    %v2516 = vunpack.c.l.b16 %v1084
    %v2517 = vunpack.c.h.b16 %v1084
    %v2518 = vunpack.c.l.b16 %v1085
    %v2519 = vunpack.c.h.b16 %v1085
    %v2520 = vunpack.c.l.b16 %v1086
    %v2521 = vunpack.c.h.b16 %v1086
    %v2522 = vunpack.c.l.b16 %v1087
    %v2523 = vunpack.c.h.b16 %v1087
    %v2524 = vunpack.c.l.b16 %v1088
    %v2525 = vunpack.c.h.b16 %v1088
    %v2526 = vunpack.c.l.b16 %v1089
    %v2527 = vunpack.c.h.b16 %v1089
    %v2528 = vunpack.c.l.b16 %v1090
    %v2529 = vunpack.c.h.b16 %v1090
    %v2530 = vunpack.c.l.b16 %v1091
    %v2531 = vunpack.c.h.b16 %v1091
    %v2532 = vunpack.c.l.b16 %v1092
    %v2533 = vunpack.c.h.b16 %v1092
    %v2534 = vunpack.c.l.b16 %v1093
    %v2535 = vunpack.c.h.b16 %v1093
    %v2536 = vunpack.c.l.b16 %v1094
    %v2537 = vunpack.c.h.b16 %v1094
    %v2538 = vunpack.c.l.b16 %v1095
    %v2539 = vunpack.c.h.b16 %v1095
    %v2540 = vunpack.c.l.b16 %v1096
    %v2541 = vunpack.c.h.b16 %v1096
    %v2542 = vunpack.c.l.b16 %v1097
    %v2543 = vunpack.c.h.b16 %v1097
    %v2544 = vunpack.c.l.b16 %v1098
    %v2545 = vunpack.c.h.b16 %v1098
    %v2546 = vunpack.c.l.b16 %v1099
    %v2547 = vunpack.c.h.b16 %v1099
    %v2548 = vunpack.c.l.b16 %v1100
    %v2549 = vunpack.c.h.b16 %v1100
    %v2550 = vunpack.c.l.b16 %v1101
    %v2551 = vunpack.c.h.b16 %v1101
    %v2552 = vunpack.c.l.b16 %v1102
    %v2553 = vunpack.c.h.b16 %v1102
    %v2554 = vunpack.c.l.b16 %v1103
    %v2555 = vunpack.c.h.b16 %v1103
    %v2556 = vunpack.c.l.b16 %v1104
    %v2557 = vunpack.c.h.b16 %v1104
    %v2558 = vunpack.c.l.b16 %v1105
    %v2559 = vunpack.c.h.b16 %v1105
    %v2560 = vunpack.c.l.b16 %v1106
    %v2561 = vunpack.c.h.b16 %v1106
    %v2562 = vunpack.c.l.b16 %v1107
    %v2563 = vunpack.c.h.b16 %v1107
    %v2564 = vunpack.c.l.b16 %v1108
    %v2565 = vunpack.c.h.b16 %v1108
    %v2566 = vunpack.c.l.b16 %v1109
    %v2567 = vunpack.c.h.b16 %v1109
    %v2568 = vunpack.c.l.b16 %v1110
    %v2569 = vunpack.c.h.b16 %v1110
    %v2570 = vunpack.c.l.b16 %v1111
    %v2571 = vunpack.c.h.b16 %v1111
    %v2572 = vunpack.c.l.b16 %v1112
    %v2573 = vunpack.c.h.b16 %v1112
    %v2574 = vunpack.c.l.b16 %v1113
    %v2575 = vunpack.c.h.b16 %v1113
    %v2576 = vunpack.c.l.b16 %v1114
    %v2577 = vunpack.c.h.b16 %v1114
    %v2578 = vunpack.c.l.b16 %v1115
    %v2579 = vunpack.c.h.b16 %v1115
    %v2580 = vunpack.c.l.b16 %v1116
    %v2581 = vunpack.c.h.b16 %v1116
    %v2582 = vunpack.c.l.b16 %v1117
    %v2583 = vunpack.c.h.b16 %v1117
    %v2584 = vunpack.c.l.b16 %v1118
    %v2585 = vunpack.c.h.b16 %v1118
    %v2586 = vunpack.c.l.b16 %v1119
    %v2587 = vunpack.c.h.b16 %v1119
    %v2588 = vunpack.c.l.b16 %v1120
    %v2589 = vunpack.c.h.b16 %v1120
    %v2590 = vunpack.c.l.b16 %v1121
    %v2591 = vunpack.c.h.b16 %v1121
    %v2592 = vunpack.c.l.b16 %v1122
    %v2593 = vunpack.c.h.b16 %v1122
    %v2594 = vunpack.c.l.b16 %v1123
    %v2595 = vunpack.c.h.b16 %v1123
    %v2596 = vunpack.c.l.b16 %v1124
    %v2597 = vunpack.c.h.b16 %v1124
    %v2598 = vunpack.c.l.b16 %v1125
    %v2599 = vunpack.c.h.b16 %v1125
    %v2600 = vunpack.c.l.b16 %v1126
    %v2601 = vunpack.c.h.b16 %v1126
    %v2602 = vunpack.c.l.b16 %v1127
    %v2603 = vunpack.c.h.b16 %v1127
    %v2604 = vunpack.c.l.b16 %v1128
    %v2605 = vunpack.c.h.b16 %v1128
    %v2606 = vunpack.c.l.b16 %v1129
    %v2607 = vunpack.c.h.b16 %v1129
    %v2608 = vunpack.c.l.b16 %v1130
    %v2609 = vunpack.c.h.b16 %v1130
    %v2610 = vunpack.c.l.b16 %v1131
    %v2611 = vunpack.c.h.b16 %v1131
    %v2612 = vunpack.c.l.b16 %v1132
    %v2613 = vunpack.c.h.b16 %v1132
    %v2614 = vunpack.c.l.b16 %v1133
    %v2615 = vunpack.c.h.b16 %v1133
    %v2616 = vunpack.c.l.b16 %v1134
    %v2617 = vunpack.c.h.b16 %v1134
    %v2618 = vunpack.c.l.b16 %v1135
    %v2619 = vunpack.c.h.b16 %v1135
    %v2620 = vunpack.c.l.b16 %v1136
    %v2621 = vunpack.c.h.b16 %v1136
    %v2622 = vunpack.c.l.b16 %v1137
    %v2623 = vunpack.c.h.b16 %v1137
    %v2624 = vunpack.c.l.b16 %v1138
    %v2625 = vunpack.c.h.b16 %v1138
    %v2626 = vunpack.c.l.b16 %v1139
    %v2627 = vunpack.c.h.b16 %v1139
    %v2628 = vunpack.c.l.b16 %v1140
    %v2629 = vunpack.c.h.b16 %v1140
    %v2630 = vunpack.c.l.b16 %v1141
    %v2631 = vunpack.c.h.b16 %v1141
    %v2632 = vunpack.c.l.b16 %v1142
    %v2633 = vunpack.c.h.b16 %v1142
    %v2634 = vunpack.c.l.b16 %v1143
    %v2635 = vunpack.c.h.b16 %v1143
    %v2636 = vunpack.c.l.b16 %v1144
    %v2637 = vunpack.c.h.b16 %v1144
    %v2638 = vunpack.c.l.b16 %v1145
    %v2639 = vunpack.c.h.b16 %v1145
    %v2640 = vunpack.c.l.b16 %v1146
    %v2641 = vunpack.c.h.b16 %v1146
    %v2642 = vunpack.c.l.b16 %v1147
    %v2643 = vunpack.c.h.b16 %v1147
    %v2644 = vunpack.c.l.b16 %v1148
    %v2645 = vunpack.c.h.b16 %v1148
    %v2646 = vunpack.c.l.b16 %v1149
    %v2647 = vunpack.c.h.b16 %v1149
    %v2648 = vunpack.c.l.b16 %v1150
    %v2649 = vunpack.c.h.b16 %v1150
    %v2650 = vunpack.c.l.b16 %v1151
    %v2651 = vunpack.c.h.b16 %v1151
    %v2652 = vunpack.c.l.b16 %v1152
    %v2653 = vunpack.c.h.b16 %v1152
    %v2654 = vunpack.c.l.b16 %v1153
    %v2655 = vunpack.c.h.b16 %v1153
    %v2656 = vunpack.c.l.b16 %v1154
    %v2657 = vunpack.c.h.b16 %v1154
    %v2658 = vunpack.c.l.b16 %v1155
    %v2659 = vunpack.c.h.b16 %v1155
    %v2660 = vunpack.c.l.b16 %v1156
    %v2661 = vunpack.c.h.b16 %v1156
    %v2662 = vunpack.c.l.b16 %v1157
    %v2663 = vunpack.c.h.b16 %v1157
    %v2664 = vunpack.c.l.b16 %v1158
    %v2665 = vunpack.c.h.b16 %v1158
    %v2666 = vunpack.c.l.b16 %v1159
    %v2667 = vunpack.c.h.b16 %v1159
    %v2668 = vunpack.c.l.b16 %v1160
    %v2669 = vunpack.c.h.b16 %v1160
    %v2670 = vunpack.c.l.b16 %v1161
    %v2671 = vunpack.c.h.b16 %v1161
    %v2672 = vunpack.c.l.b16 %v1162
    %v2673 = vunpack.c.h.b16 %v1162
    %v2674 = vunpack.c.l.b16 %v1163
    %v2675 = vunpack.c.h.b16 %v1163
    %v2676 = vunpack.c.l.b16 %v1164
    %v2677 = vunpack.c.h.b16 %v1164
    %v2678 = vunpack.c.l.b16 %v1165
    %v2679 = vunpack.c.h.b16 %v1165
    %v2680 = vunpack.c.l.b16 %v1166
    %v2681 = vunpack.c.h.b16 %v1166
    %v2682 = vunpack.c.l.b16 %v1167
    %v2683 = vunpack.c.h.b16 %v1167
    %v2684 = vunpack.c.l.b16 %v1168
    %v2685 = vunpack.c.h.b16 %v1168
    %v2686 = vunpack.c.l.b16 %v1169
    %v2687 = vunpack.c.h.b16 %v1169
    %v2688 = vunpack.c.l.b16 %v1170
    %v2689 = vunpack.c.h.b16 %v1170
    %v2690 = vunpack.c.l.b16 %v1171
    %v2691 = vunpack.c.h.b16 %v1171
    %v2692 = vunpack.c.l.b16 %v1172
    %v2693 = vunpack.c.h.b16 %v1172
    %v2694 = vunpack.c.l.b16 %v1173
    %v2695 = vunpack.c.h.b16 %v1173
    %v2696 = vunpack.c.l.b16 %v1174
    %v2697 = vunpack.c.h.b16 %v1174
    %v2698 = vunpack.c.l.b16 %v1175
    %v2699 = vunpack.c.h.b16 %v1175
    %v2700 = vunpack.c.l.b16 %v1176
    %v2701 = vunpack.c.h.b16 %v1176
    %v2702 = vunpack.c.l.b16 %v1177
    %v2703 = vunpack.c.h.b16 %v1177
    %v2704 = vunpack.c.l.b16 %v1178
    %v2705 = vunpack.c.h.b16 %v1178
    %v2706 = vunpack.c.l.b16 %v1179
    %v2707 = vunpack.c.h.b16 %v1179
    %v2708 = vunpack.c.l.b16 %v1180
    %v2709 = vunpack.c.h.b16 %v1180
    %v2710 = vunpack.c.l.b16 %v1181
    %v2711 = vunpack.c.h.b16 %v1181
    %v2712 = vunpack.c.l.b16 %v1182
    %v2713 = vunpack.c.h.b16 %v1182
    %v2714 = vunpack.c.l.b16 %v1183
    %v2715 = vunpack.c.h.b16 %v1183
    %v2716 = vunpack.c.l.b16 %v1184
    %v2717 = vunpack.c.h.b16 %v1184
    %v2718 = vunpack.c.l.b16 %v1185
    %v2719 = vunpack.c.h.b16 %v1185
    %v2720 = vunpack.c.l.b16 %v1186
    %v2721 = vunpack.c.h.b16 %v1186
    %v2722 = vunpack.c.l.b16 %v1187
    %v2723 = vunpack.c.h.b16 %v1187
    %v2724 = vunpack.c.l.b16 %v1188
    %v2725 = vunpack.c.h.b16 %v1188
    %v2726 = vunpack.c.l.b16 %v1189
    %v2727 = vunpack.c.h.b16 %v1189
    %v2728 = vunpack.c.l.b16 %v1190
    %v2729 = vunpack.c.h.b16 %v1190
    %v2730 = vunpack.c.l.b16 %v1191
    %v2731 = vunpack.c.h.b16 %v1191
    %v2732 = vunpack.c.l.b16 %v1192
    %v2733 = vunpack.c.h.b16 %v1192
    %v2734 = vunpack.c.l.b16 %v1193
    %v2735 = vunpack.c.h.b16 %v1193
    %v2736 = vunpack.c.l.b16 %v1194
    %v2737 = vunpack.c.h.b16 %v1194
    %v2738 = vunpack.c.l.b16 %v1195
    %v2739 = vunpack.c.h.b16 %v1195
    %v2740 = vunpack.c.l.b16 %v1196
    %v2741 = vunpack.c.h.b16 %v1196
    %v2742 = vunpack.c.l.b16 %v1197
    %v2743 = vunpack.c.h.b16 %v1197
    %v2744 = vunpack.c.l.b16 %v1198
    %v2745 = vunpack.c.h.b16 %v1198
    %v2746 = vunpack.c.l.b16 %v1199
    %v2747 = vunpack.c.h.b16 %v1199
    %v2748 = vunpack.c.l.b16 %v1200
    %v2749 = vunpack.c.h.b16 %v1200
    %v2750 = vunpack.c.l.b16 %v1201
    %v2751 = vunpack.c.h.b16 %v1201
    %v2752 = vunpack.c.l.b16 %v1202
    %v2753 = vunpack.c.h.b16 %v1202
    %v2754 = vunpack.c.l.b16 %v1203
    %v2755 = vunpack.c.h.b16 %v1203
    %v2756 = vunpack.c.l.b16 %v1204
    %v2757 = vunpack.c.h.b16 %v1204
    %v2758 = vunpack.c.l.b16 %v1205
    %v2759 = vunpack.c.h.b16 %v1205
    %v2760 = vunpack.c.l.b16 %v1206
    %v2761 = vunpack.c.h.b16 %v1206
    %v2762 = vunpack.c.l.b16 %v1207
    %v2763 = vunpack.c.h.b16 %v1207
    %v2764 = vunpack.c.l.b16 %v1208
    %v2765 = vunpack.c.h.b16 %v1208
    %v2766 = vunpack.c.l.b16 %v1209
    %v2767 = vunpack.c.h.b16 %v1209
    %v2768 = vunpack.c.l.b16 %v1210
    %v2769 = vunpack.c.h.b16 %v1210
    %v2770 = vunpack.c.l.b16 %v1211
    %v2771 = vunpack.c.h.b16 %v1211
    %v2772 = vunpack.c.l.b16 %v1212
    %v2773 = vunpack.c.h.b16 %v1212
    %v2774 = vunpack.c.l.b16 %v1213
    %v2775 = vunpack.c.h.b16 %v1213
    %v2776 = vunpack.c.l.b16 %v1214
    %v2777 = vunpack.c.h.b16 %v1214
    %v2778 = vunpack.c.l.b16 %v1215
    %v2779 = vunpack.c.h.b16 %v1215
    %v2780 = vunpack.c.l.b16 %v1216
    %v2781 = vunpack.c.h.b16 %v1216
    %v2782 = vunpack.c.l.b16 %v1217
    %v2783 = vunpack.c.h.b16 %v1217
    %v2784 = vunpack.c.l.b16 %v1218
    %v2785 = vunpack.c.h.b16 %v1218
    %v2786 = vunpack.c.l.b16 %v1219
    %v2787 = vunpack.c.h.b16 %v1219
    %v2788 = vunpack.c.l.b16 %v1220
    %v2789 = vunpack.c.h.b16 %v1220
    %v2790 = vunpack.c.l.b16 %v1221
    %v2791 = vunpack.c.h.b16 %v1221
    %v2792 = vunpack.c.l.b16 %v1222
    %v2793 = vunpack.c.h.b16 %v1222
    %v2794 = vunpack.c.l.b16 %v1223
    %v2795 = vunpack.c.h.b16 %v1223
    %v2796 = vunpack.c.l.b16 %v1224
    %v2797 = vunpack.c.h.b16 %v1224
    %v2798 = vunpack.c.l.b16 %v1225
    %v2799 = vunpack.c.h.b16 %v1225
    %v2800 = vunpack.c.l.b16 %v1226
    %v2801 = vunpack.c.h.b16 %v1226
    %v2802 = vunpack.c.l.b16 %v1227
    %v2803 = vunpack.c.h.b16 %v1227
    %v2804 = vunpack.c.l.b16 %v1228
    %v2805 = vunpack.c.h.b16 %v1228
    %v2806 = vunpack.c.l.b16 %v1229
    %v2807 = vunpack.c.h.b16 %v1229
    %v2808 = vpack.c.b16 %v1792, %v1784
    %v2809 = vpack.c.b16 %v1793, %v1785
    %v2810 = vpack.c.b16 %v1794, %v1786
    %v2811 = vpack.c.b16 %v1795, %v1787
    %v2812 = vpack.c.b16 %v1796, %v1788
    %v2813 = vpack.c.b16 %v1797, %v1789
    %v2814 = vpack.c.b16 %v1798, %v1790
    %v2815 = vpack.c.b16 %v1799, %v1791
    %v2816 = vpack.c.b16 %v1808, %v1800
    %v2817 = vpack.c.b16 %v1809, %v1801
    %v2818 = vpack.c.b16 %v1810, %v1802
    %v2819 = vpack.c.b16 %v1811, %v1803
    %v2820 = vpack.c.b16 %v1812, %v1804
    %v2821 = vpack.c.b16 %v1813, %v1805
    %v2822 = vpack.c.b16 %v1814, %v1806
    %v2823 = vpack.c.b16 %v1815, %v1807
    %v2824 = vpack.c.b16 %v1824, %v1816
    %v2825 = vpack.c.b16 %v1825, %v1817
    %v2826 = vpack.c.b16 %v1826, %v1818
    %v2827 = vpack.c.b16 %v1827, %v1819
    %v2828 = vpack.c.b16 %v1828, %v1820
    %v2829 = vpack.c.b16 %v1829, %v1821
    %v2830 = vpack.c.b16 %v1830, %v1822
    %v2831 = vpack.c.b16 %v1831, %v1823
    %v2832 = vpack.c.b16 %v1840, %v1832
    %v2833 = vpack.c.b16 %v1841, %v1833
    %v2834 = vpack.c.b16 %v1842, %v1834
    %v2835 = vpack.c.b16 %v1843, %v1835
    %v2836 = vpack.c.b16 %v1844, %v1836
    %v2837 = vpack.c.b16 %v1845, %v1837
    %v2838 = vpack.c.b16 %v1846, %v1838
    %v2839 = vpack.c.b16 %v1847, %v1839
    %v2840 = vpack.c.b16 %v1856, %v1848
    %v2841 = vpack.c.b16 %v1857, %v1849
    %v2842 = vpack.c.b16 %v1858, %v1850
    %v2843 = vpack.c.b16 %v1859, %v1851
    %v2844 = vpack.c.b16 %v1860, %v1852
    %v2845 = vpack.c.b16 %v1861, %v1853
    %v2846 = vpack.c.b16 %v1862, %v1854
    %v2847 = vpack.c.b16 %v1863, %v1855
    %v2848 = vpack.c.b16 %v1872, %v1864
    %v2849 = vpack.c.b16 %v1873, %v1865
    %v2850 = vpack.c.b16 %v1874, %v1866
    %v2851 = vpack.c.b16 %v1875, %v1867
    %v2852 = vpack.c.b16 %v1876, %v1868
    %v2853 = vpack.c.b16 %v1877, %v1869
    %v2854 = vpack.c.b16 %v1878, %v1870
    %v2855 = vpack.c.b16 %v1879, %v1871
    %v2856 = vpack.c.b16 %v1888, %v1880
    %v2857 = vpack.c.b16 %v1889, %v1881
    %v2858 = vpack.c.b16 %v1890, %v1882
    %v2859 = vpack.c.b16 %v1891, %v1883
    %v2860 = vpack.c.b16 %v1892, %v1884
    %v2861 = vpack.c.b16 %v1893, %v1885
    %v2862 = vpack.c.b16 %v1894, %v1886
    %v2863 = vpack.c.b16 %v1895, %v1887
    %v2864 = vpack.c.b16 %v1904, %v1896
    %v2865 = vpack.c.b16 %v1905, %v1897
    %v2866 = vpack.c.b16 %v1906, %v1898
    %v2867 = vpack.c.b16 %v1907, %v1899
    %v2868 = vpack.c.b16 %v1908, %v1900
    %v2869 = vpack.c.b16 %v1909, %v1901
    %v2870 = vpack.c.b16 %v1910, %v1902
    %v2871 = vpack.c.b16 %v1911, %v1903
    %v2872 = vpack.c.b16 %v1920, %v1912
    %v2873 = vpack.c.b16 %v1921, %v1913
    %v2874 = vpack.c.b16 %v1922, %v1914
    %v2875 = vpack.c.b16 %v1923, %v1915
    %v2876 = vpack.c.b16 %v1924, %v1916
    %v2877 = vpack.c.b16 %v1925, %v1917
    %v2878 = vpack.c.b16 %v1926, %v1918
    %v2879 = vpack.c.b16 %v1927, %v1919
    %v2880 = vpack.c.b16 %v1936, %v1928
    %v2881 = vpack.c.b16 %v1937, %v1929
    %v2882 = vpack.c.b16 %v1938, %v1930
    %v2883 = vpack.c.b16 %v1939, %v1931
    %v2884 = vpack.c.b16 %v1940, %v1932
    %v2885 = vpack.c.b16 %v1941, %v1933
    %v2886 = vpack.c.b16 %v1942, %v1934
    %v2887 = vpack.c.b16 %v1943, %v1935
    %v2888 = vpack.c.b16 %v1952, %v1944
    %v2889 = vpack.c.b16 %v1953, %v1945
    %v2890 = vpack.c.b16 %v1954, %v1946
    %v2891 = vpack.c.b16 %v1955, %v1947
    %v2892 = vpack.c.b16 %v1956, %v1948
    %v2893 = vpack.c.b16 %v1957, %v1949
    %v2894 = vpack.c.b16 %v1958, %v1950
    %v2895 = vpack.c.b16 %v1959, %v1951
    %v2896 = vpack.c.b16 %v1968, %v1960
    %v2897 = vpack.c.b16 %v1969, %v1961
    %v2898 = vpack.c.b16 %v1970, %v1962
    %v2899 = vpack.c.b16 %v1971, %v1963
    %v2900 = vpack.c.b16 %v1972, %v1964
    %v2901 = vpack.c.b16 %v1973, %v1965
    %v2902 = vpack.c.b16 %v1974, %v1966
    %v2903 = vpack.c.b16 %v1975, %v1967
    %v2904 = vpack.c.b16 %v1984, %v1976
    %v2905 = vpack.c.b16 %v1985, %v1977
    %v2906 = vpack.c.b16 %v1986, %v1978
    %v2907 = vpack.c.b16 %v1987, %v1979
    %v2908 = vpack.c.b16 %v1988, %v1980
    %v2909 = vpack.c.b16 %v1989, %v1981
    %v2910 = vpack.c.b16 %v1990, %v1982
    %v2911 = vpack.c.b16 %v1991, %v1983
    %v2912 = vpack.c.b16 %v2000, %v1992
    %v2913 = vpack.c.b16 %v2001, %v1993
    %v2914 = vpack.c.b16 %v2002, %v1994
    %v2915 = vpack.c.b16 %v2003, %v1995
    %v2916 = vpack.c.b16 %v2004, %v1996
    %v2917 = vpack.c.b16 %v2005, %v1997
    %v2918 = vpack.c.b16 %v2006, %v1998
    %v2919 = vpack.c.b16 %v2007, %v1999
    %v2920 = vpack.c.b16 %v2016, %v2008
    %v2921 = vpack.c.b16 %v2017, %v2009
    %v2922 = vpack.c.b16 %v2018, %v2010
    %v2923 = vpack.c.b16 %v2019, %v2011
    %v2924 = vpack.c.b16 %v2020, %v2012
    %v2925 = vpack.c.b16 %v2021, %v2013
    %v2926 = vpack.c.b16 %v2022, %v2014
    %v2927 = vpack.c.b16 %v2023, %v2015
    %v2928 = vpack.c.b16 %v2032, %v2024
    %v2929 = vpack.c.b16 %v2033, %v2025
    %v2930 = vpack.c.b16 %v2034, %v2026
    %v2931 = vpack.c.b16 %v2035, %v2027
    %v2932 = vpack.c.b16 %v2036, %v2028
    %v2933 = vpack.c.b16 %v2037, %v2029
    %v2934 = vpack.c.b16 %v2038, %v2030
    %v2935 = vpack.c.b16 %v2039, %v2031
    %v2936 = vpack.c.b16 %v2048, %v2040
    %v2937 = vpack.c.b16 %v2049, %v2041
    %v2938 = vpack.c.b16 %v2050, %v2042
    %v2939 = vpack.c.b16 %v2051, %v2043
    %v2940 = vpack.c.b16 %v2052, %v2044
    %v2941 = vpack.c.b16 %v2053, %v2045
    %v2942 = vpack.c.b16 %v2054, %v2046
    %v2943 = vpack.c.b16 %v2055, %v2047
    %v2944 = vpack.c.b16 %v2064, %v2056
    %v2945 = vpack.c.b16 %v2065, %v2057
    %v2946 = vpack.c.b16 %v2066, %v2058
    %v2947 = vpack.c.b16 %v2067, %v2059
    %v2948 = vpack.c.b16 %v2068, %v2060
    %v2949 = vpack.c.b16 %v2069, %v2061
    %v2950 = vpack.c.b16 %v2070, %v2062
    %v2951 = vpack.c.b16 %v2071, %v2063
    %v2952 = vpack.c.b16 %v2080, %v2072
    %v2953 = vpack.c.b16 %v2081, %v2073
    %v2954 = vpack.c.b16 %v2082, %v2074
    %v2955 = vpack.c.b16 %v2083, %v2075
    %v2956 = vpack.c.b16 %v2084, %v2076
    %v2957 = vpack.c.b16 %v2085, %v2077
    %v2958 = vpack.c.b16 %v2086, %v2078
    %v2959 = vpack.c.b16 %v2087, %v2079
    %v2960 = vpack.c.b16 %v2096, %v2088
    %v2961 = vpack.c.b16 %v2097, %v2089
    %v2962 = vpack.c.b16 %v2098, %v2090
    %v2963 = vpack.c.b16 %v2099, %v2091
    %v2964 = vpack.c.b16 %v2100, %v2092
    %v2965 = vpack.c.b16 %v2101, %v2093
    %v2966 = vpack.c.b16 %v2102, %v2094
    %v2967 = vpack.c.b16 %v2103, %v2095
    %v2968 = vpack.c.b16 %v2112, %v2104
    %v2969 = vpack.c.b16 %v2113, %v2105
    %v2970 = vpack.c.b16 %v2114, %v2106
    %v2971 = vpack.c.b16 %v2115, %v2107
    %v2972 = vpack.c.b16 %v2116, %v2108
    %v2973 = vpack.c.b16 %v2117, %v2109
    %v2974 = vpack.c.b16 %v2118, %v2110
    %v2975 = vpack.c.b16 %v2119, %v2111
    %v2976 = vpack.c.b16 %v2128, %v2120
    %v2977 = vpack.c.b16 %v2129, %v2121
    %v2978 = vpack.c.b16 %v2130, %v2122
    %v2979 = vpack.c.b16 %v2131, %v2123
    %v2980 = vpack.c.b16 %v2132, %v2124
    %v2981 = vpack.c.b16 %v2133, %v2125
    %v2982 = vpack.c.b16 %v2134, %v2126
    %v2983 = vpack.c.b16 %v2135, %v2127
    %v2984 = vpack.c.b16 %v2144, %v2136
    %v2985 = vpack.c.b16 %v2145, %v2137
    %v2986 = vpack.c.b16 %v2146, %v2138
    %v2987 = vpack.c.b16 %v2147, %v2139
    %v2988 = vpack.c.b16 %v2148, %v2140
    %v2989 = vpack.c.b16 %v2149, %v2141
    %v2990 = vpack.c.b16 %v2150, %v2142
    %v2991 = vpack.c.b16 %v2151, %v2143
    %v2992 = vpack.c.b16 %v2160, %v2152
    %v2993 = vpack.c.b16 %v2161, %v2153
    %v2994 = vpack.c.b16 %v2162, %v2154
    %v2995 = vpack.c.b16 %v2163, %v2155
    %v2996 = vpack.c.b16 %v2164, %v2156
    %v2997 = vpack.c.b16 %v2165, %v2157
    %v2998 = vpack.c.b16 %v2166, %v2158
    %v2999 = vpack.c.b16 %v2167, %v2159
    %v3000 = vpack.c.b16 %v2176, %v2168
    %v3001 = vpack.c.b16 %v2177, %v2169
    %v3002 = vpack.c.b16 %v2178, %v2170
    %v3003 = vpack.c.b16 %v2179, %v2171
    %v3004 = vpack.c.b16 %v2180, %v2172
    %v3005 = vpack.c.b16 %v2181, %v2173
    %v3006 = vpack.c.b16 %v2182, %v2174
    %v3007 = vpack.c.b16 %v2183, %v2175
    %v3008 = vpack.c.b16 %v2192, %v2184
    %v3009 = vpack.c.b16 %v2193, %v2185
    %v3010 = vpack.c.b16 %v2194, %v2186
    %v3011 = vpack.c.b16 %v2195, %v2187
    %v3012 = vpack.c.b16 %v2196, %v2188
    %v3013 = vpack.c.b16 %v2197, %v2189
    %v3014 = vpack.c.b16 %v2198, %v2190
    %v3015 = vpack.c.b16 %v2199, %v2191
    %v3016 = vpack.c.b16 %v2208, %v2200
    %v3017 = vpack.c.b16 %v2209, %v2201
    %v3018 = vpack.c.b16 %v2210, %v2202
    %v3019 = vpack.c.b16 %v2211, %v2203
    %v3020 = vpack.c.b16 %v2212, %v2204
    %v3021 = vpack.c.b16 %v2213, %v2205
    %v3022 = vpack.c.b16 %v2214, %v2206
    %v3023 = vpack.c.b16 %v2215, %v2207
    %v3024 = vpack.c.b16 %v2224, %v2216
    %v3025 = vpack.c.b16 %v2225, %v2217
    %v3026 = vpack.c.b16 %v2226, %v2218
    %v3027 = vpack.c.b16 %v2227, %v2219
    %v3028 = vpack.c.b16 %v2228, %v2220
    %v3029 = vpack.c.b16 %v2229, %v2221
    %v3030 = vpack.c.b16 %v2230, %v2222
    %v3031 = vpack.c.b16 %v2231, %v2223
    %v3032 = vpack.c.b16 %v2240, %v2232
    %v3033 = vpack.c.b16 %v2241, %v2233
    %v3034 = vpack.c.b16 %v2242, %v2234
    %v3035 = vpack.c.b16 %v2243, %v2235
    %v3036 = vpack.c.b16 %v2244, %v2236
    %v3037 = vpack.c.b16 %v2245, %v2237
    %v3038 = vpack.c.b16 %v2246, %v2238
    %v3039 = vpack.c.b16 %v2247, %v2239
    %v3040 = vpack.c.b16 %v2256, %v2248
    %v3041 = vpack.c.b16 %v2257, %v2249
    %v3042 = vpack.c.b16 %v2258, %v2250
    %v3043 = vpack.c.b16 %v2259, %v2251
    %v3044 = vpack.c.b16 %v2260, %v2252
    %v3045 = vpack.c.b16 %v2261, %v2253
    %v3046 = vpack.c.b16 %v2262, %v2254
    %v3047 = vpack.c.b16 %v2263, %v2255
    %v3048 = vpack.c.b16 %v2272, %v2264
    %v3049 = vpack.c.b16 %v2273, %v2265
    %v3050 = vpack.c.b16 %v2274, %v2266
    %v3051 = vpack.c.b16 %v2275, %v2267
    %v3052 = vpack.c.b16 %v2276, %v2268
    %v3053 = vpack.c.b16 %v2277, %v2269
    %v3054 = vpack.c.b16 %v2278, %v2270
    %v3055 = vpack.c.b16 %v2279, %v2271
    %v3056 = vpack.c.b16 %v2288, %v2280
    %v3057 = vpack.c.b16 %v2289, %v2281
    %v3058 = vpack.c.b16 %v2290, %v2282
    %v3059 = vpack.c.b16 %v2291, %v2283
    %v3060 = vpack.c.b16 %v2292, %v2284
    %v3061 = vpack.c.b16 %v2293, %v2285
    %v3062 = vpack.c.b16 %v2294, %v2286
    %v3063 = vpack.c.b16 %v2295, %v2287
    %v3064 = vpack.c.b16 %v2304, %v2296
    %v3065 = vpack.c.b16 %v2305, %v2297
    %v3066 = vpack.c.b16 %v2306, %v2298
    %v3067 = vpack.c.b16 %v2307, %v2299
    %v3068 = vpack.c.b16 %v2308, %v2300
    %v3069 = vpack.c.b16 %v2309, %v2301
    %v3070 = vpack.c.b16 %v2310, %v2302
    %v3071 = vpack.c.b16 %v2311, %v2303
    %v3072 = vpack.c.b16 %v2320, %v2312
    %v3073 = vpack.c.b16 %v2321, %v2313
    %v3074 = vpack.c.b16 %v2322, %v2314
    %v3075 = vpack.c.b16 %v2323, %v2315
    %v3076 = vpack.c.b16 %v2324, %v2316
    %v3077 = vpack.c.b16 %v2325, %v2317
    %v3078 = vpack.c.b16 %v2326, %v2318
    %v3079 = vpack.c.b16 %v2327, %v2319
    %v3080 = vpack.c.b16 %v2336, %v2328
    %v3081 = vpack.c.b16 %v2337, %v2329
    %v3082 = vpack.c.b16 %v2338, %v2330
    %v3083 = vpack.c.b16 %v2339, %v2331
    %v3084 = vpack.c.b16 %v2340, %v2332
    %v3085 = vpack.c.b16 %v2341, %v2333
    %v3086 = vpack.c.b16 %v2342, %v2334
    %v3087 = vpack.c.b16 %v2343, %v2335
    %v3088 = vpack.c.b16 %v2352, %v2344
    %v3089 = vpack.c.b16 %v2353, %v2345
    %v3090 = vpack.c.b16 %v2354, %v2346
    %v3091 = vpack.c.b16 %v2355, %v2347
    %v3092 = vpack.c.b16 %v2356, %v2348
    %v3093 = vpack.c.b16 %v2357, %v2349
    %v3094 = vpack.c.b16 %v2358, %v2350
    %v3095 = vpack.c.b16 %v2359, %v2351
    %v3096 = vpack.c.b16 %v2368, %v2360
    %v3097 = vpack.c.b16 %v2369, %v2361
    %v3098 = vpack.c.b16 %v2370, %v2362
    %v3099 = vpack.c.b16 %v2371, %v2363
    %v3100 = vpack.c.b16 %v2372, %v2364
    %v3101 = vpack.c.b16 %v2373, %v2365
    %v3102 = vpack.c.b16 %v2374, %v2366
    %v3103 = vpack.c.b16 %v2375, %v2367
    %v3104 = vpack.c.b16 %v2384, %v2376
    %v3105 = vpack.c.b16 %v2385, %v2377
    %v3106 = vpack.c.b16 %v2386, %v2378
    %v3107 = vpack.c.b16 %v2387, %v2379
    %v3108 = vpack.c.b16 %v2388, %v2380
    %v3109 = vpack.c.b16 %v2389, %v2381
    %v3110 = vpack.c.b16 %v2390, %v2382
    %v3111 = vpack.c.b16 %v2391, %v2383
    %v3112 = vpack.c.b16 %v2400, %v2392
    %v3113 = vpack.c.b16 %v2401, %v2393
    %v3114 = vpack.c.b16 %v2402, %v2394
    %v3115 = vpack.c.b16 %v2403, %v2395
    %v3116 = vpack.c.b16 %v2404, %v2396
    %v3117 = vpack.c.b16 %v2405, %v2397
    %v3118 = vpack.c.b16 %v2406, %v2398
    %v3119 = vpack.c.b16 %v2407, %v2399
    %v3120 = vpack.c.b16 %v2416, %v2408
    %v3121 = vpack.c.b16 %v2417, %v2409
    %v3122 = vpack.c.b16 %v2418, %v2410
    %v3123 = vpack.c.b16 %v2419, %v2411
    %v3124 = vpack.c.b16 %v2420, %v2412
    %v3125 = vpack.c.b16 %v2421, %v2413
    %v3126 = vpack.c.b16 %v2422, %v2414
    %v3127 = vpack.c.b16 %v2423, %v2415
    %v3128 = vpack.c.b16 %v2432, %v2424
    %v3129 = vpack.c.b16 %v2433, %v2425
    %v3130 = vpack.c.b16 %v2434, %v2426
    %v3131 = vpack.c.b16 %v2435, %v2427
    %v3132 = vpack.c.b16 %v2436, %v2428
    %v3133 = vpack.c.b16 %v2437, %v2429
    %v3134 = vpack.c.b16 %v2438, %v2430
    %v3135 = vpack.c.b16 %v2439, %v2431
    %v3136 = vpack.c.b16 %v2448, %v2440
    %v3137 = vpack.c.b16 %v2449, %v2441
    %v3138 = vpack.c.b16 %v2450, %v2442
    %v3139 = vpack.c.b16 %v2451, %v2443
    %v3140 = vpack.c.b16 %v2452, %v2444
    %v3141 = vpack.c.b16 %v2453, %v2445
    %v3142 = vpack.c.b16 %v2454, %v2446
    %v3143 = vpack.c.b16 %v2455, %v2447
    %v3144 = vpack.c.b16 %v2464, %v2456
    %v3145 = vpack.c.b16 %v2465, %v2457
    %v3146 = vpack.c.b16 %v2466, %v2458
    %v3147 = vpack.c.b16 %v2467, %v2459
    %v3148 = vpack.c.b16 %v2468, %v2460
    %v3149 = vpack.c.b16 %v2469, %v2461
    %v3150 = vpack.c.b16 %v2470, %v2462
    %v3151 = vpack.c.b16 %v2471, %v2463
    %v3152 = vpack.c.b16 %v2480, %v2472
    %v3153 = vpack.c.b16 %v2481, %v2473
    %v3154 = vpack.c.b16 %v2482, %v2474
    %v3155 = vpack.c.b16 %v2483, %v2475
    %v3156 = vpack.c.b16 %v2484, %v2476
    %v3157 = vpack.c.b16 %v2485, %v2477
    %v3158 = vpack.c.b16 %v2486, %v2478
    %v3159 = vpack.c.b16 %v2487, %v2479
    %v3160 = vpack.c.b16 %v2496, %v2488
    %v3161 = vpack.c.b16 %v2497, %v2489
    %v3162 = vpack.c.b16 %v2498, %v2490
    %v3163 = vpack.c.b16 %v2499, %v2491
    %v3164 = vpack.c.b16 %v2500, %v2492
    %v3165 = vpack.c.b16 %v2501, %v2493
    %v3166 = vpack.c.b16 %v2502, %v2494
    %v3167 = vpack.c.b16 %v2503, %v2495
    %v3168 = vpack.c.b16 %v2512, %v2504
    %v3169 = vpack.c.b16 %v2513, %v2505
    %v3170 = vpack.c.b16 %v2514, %v2506
    %v3171 = vpack.c.b16 %v2515, %v2507
    %v3172 = vpack.c.b16 %v2516, %v2508
    %v3173 = vpack.c.b16 %v2517, %v2509
    %v3174 = vpack.c.b16 %v2518, %v2510
    %v3175 = vpack.c.b16 %v2519, %v2511
    %v3176 = vpack.c.b16 %v2528, %v2520
    %v3177 = vpack.c.b16 %v2529, %v2521
    %v3178 = vpack.c.b16 %v2530, %v2522
    %v3179 = vpack.c.b16 %v2531, %v2523
    %v3180 = vpack.c.b16 %v2532, %v2524
    %v3181 = vpack.c.b16 %v2533, %v2525
    %v3182 = vpack.c.b16 %v2534, %v2526
    %v3183 = vpack.c.b16 %v2535, %v2527
    %v3184 = vpack.c.b16 %v2544, %v2536
    %v3185 = vpack.c.b16 %v2545, %v2537
    %v3186 = vpack.c.b16 %v2546, %v2538
    %v3187 = vpack.c.b16 %v2547, %v2539
    %v3188 = vpack.c.b16 %v2548, %v2540
    %v3189 = vpack.c.b16 %v2549, %v2541
    %v3190 = vpack.c.b16 %v2550, %v2542
    %v3191 = vpack.c.b16 %v2551, %v2543
    %v3192 = vpack.c.b16 %v2560, %v2552
    %v3193 = vpack.c.b16 %v2561, %v2553
    %v3194 = vpack.c.b16 %v2562, %v2554
    %v3195 = vpack.c.b16 %v2563, %v2555
    %v3196 = vpack.c.b16 %v2564, %v2556
    %v3197 = vpack.c.b16 %v2565, %v2557
    %v3198 = vpack.c.b16 %v2566, %v2558
    %v3199 = vpack.c.b16 %v2567, %v2559
    %v3200 = vpack.c.b16 %v2576, %v2568
    %v3201 = vpack.c.b16 %v2577, %v2569
    %v3202 = vpack.c.b16 %v2578, %v2570
    %v3203 = vpack.c.b16 %v2579, %v2571
    %v3204 = vpack.c.b16 %v2580, %v2572
    %v3205 = vpack.c.b16 %v2581, %v2573
    %v3206 = vpack.c.b16 %v2582, %v2574
    %v3207 = vpack.c.b16 %v2583, %v2575
    %v3208 = vpack.c.b16 %v2592, %v2584
    %v3209 = vpack.c.b16 %v2593, %v2585
    %v3210 = vpack.c.b16 %v2594, %v2586
    %v3211 = vpack.c.b16 %v2595, %v2587
    %v3212 = vpack.c.b16 %v2596, %v2588
    %v3213 = vpack.c.b16 %v2597, %v2589
    %v3214 = vpack.c.b16 %v2598, %v2590
    %v3215 = vpack.c.b16 %v2599, %v2591
    %v3216 = vpack.c.b16 %v2608, %v2600
    %v3217 = vpack.c.b16 %v2609, %v2601
    %v3218 = vpack.c.b16 %v2610, %v2602
    %v3219 = vpack.c.b16 %v2611, %v2603
    %v3220 = vpack.c.b16 %v2612, %v2604
    %v3221 = vpack.c.b16 %v2613, %v2605
    %v3222 = vpack.c.b16 %v2614, %v2606
    %v3223 = vpack.c.b16 %v2615, %v2607
    %v3224 = vpack.c.b16 %v2624, %v2616
    %v3225 = vpack.c.b16 %v2625, %v2617
    %v3226 = vpack.c.b16 %v2626, %v2618
    %v3227 = vpack.c.b16 %v2627, %v2619
    %v3228 = vpack.c.b16 %v2628, %v2620
    %v3229 = vpack.c.b16 %v2629, %v2621
    %v3230 = vpack.c.b16 %v2630, %v2622
    %v3231 = vpack.c.b16 %v2631, %v2623
    %v3232 = vpack.c.b16 %v2640, %v2632
    %v3233 = vpack.c.b16 %v2641, %v2633
    %v3234 = vpack.c.b16 %v2642, %v2634
    %v3235 = vpack.c.b16 %v2643, %v2635
    %v3236 = vpack.c.b16 %v2644, %v2636
    %v3237 = vpack.c.b16 %v2645, %v2637
    %v3238 = vpack.c.b16 %v2646, %v2638
    %v3239 = vpack.c.b16 %v2647, %v2639
    %v3240 = vpack.c.b16 %v2656, %v2648
    %v3241 = vpack.c.b16 %v2657, %v2649
    %v3242 = vpack.c.b16 %v2658, %v2650
    %v3243 = vpack.c.b16 %v2659, %v2651
    %v3244 = vpack.c.b16 %v2660, %v2652
    %v3245 = vpack.c.b16 %v2661, %v2653
    %v3246 = vpack.c.b16 %v2662, %v2654
    %v3247 = vpack.c.b16 %v2663, %v2655
    %v3248 = vpack.c.b16 %v2672, %v2664
    %v3249 = vpack.c.b16 %v2673, %v2665
    %v3250 = vpack.c.b16 %v2674, %v2666
    %v3251 = vpack.c.b16 %v2675, %v2667
    %v3252 = vpack.c.b16 %v2676, %v2668
    %v3253 = vpack.c.b16 %v2677, %v2669
    %v3254 = vpack.c.b16 %v2678, %v2670
    %v3255 = vpack.c.b16 %v2679, %v2671
    %v3256 = vpack.c.b16 %v2688, %v2680
    %v3257 = vpack.c.b16 %v2689, %v2681
    %v3258 = vpack.c.b16 %v2690, %v2682
    %v3259 = vpack.c.b16 %v2691, %v2683
    %v3260 = vpack.c.b16 %v2692, %v2684
    %v3261 = vpack.c.b16 %v2693, %v2685
    %v3262 = vpack.c.b16 %v2694, %v2686
    %v3263 = vpack.c.b16 %v2695, %v2687
    %v3264 = vpack.c.b16 %v2704, %v2696
    %v3265 = vpack.c.b16 %v2705, %v2697
    %v3266 = vpack.c.b16 %v2706, %v2698
    %v3267 = vpack.c.b16 %v2707, %v2699
    %v3268 = vpack.c.b16 %v2708, %v2700
    %v3269 = vpack.c.b16 %v2709, %v2701
    %v3270 = vpack.c.b16 %v2710, %v2702
    %v3271 = vpack.c.b16 %v2711, %v2703
    %v3272 = vpack.c.b16 %v2720, %v2712
    %v3273 = vpack.c.b16 %v2721, %v2713
    %v3274 = vpack.c.b16 %v2722, %v2714
    %v3275 = vpack.c.b16 %v2723, %v2715
    %v3276 = vpack.c.b16 %v2724, %v2716
    %v3277 = vpack.c.b16 %v2725, %v2717
    %v3278 = vpack.c.b16 %v2726, %v2718
    %v3279 = vpack.c.b16 %v2727, %v2719
    %v3280 = vpack.c.b16 %v2736, %v2728
    %v3281 = vpack.c.b16 %v2737, %v2729
    %v3282 = vpack.c.b16 %v2738, %v2730
    %v3283 = vpack.c.b16 %v2739, %v2731
    %v3284 = vpack.c.b16 %v2740, %v2732
    %v3285 = vpack.c.b16 %v2741, %v2733
    %v3286 = vpack.c.b16 %v2742, %v2734
    %v3287 = vpack.c.b16 %v2743, %v2735
    %v3288 = vpack.c.b16 %v2752, %v2744
    %v3289 = vpack.c.b16 %v2753, %v2745
    %v3290 = vpack.c.b16 %v2754, %v2746
    %v3291 = vpack.c.b16 %v2755, %v2747
    %v3292 = vpack.c.b16 %v2756, %v2748
    %v3293 = vpack.c.b16 %v2757, %v2749
    %v3294 = vpack.c.b16 %v2758, %v2750
    %v3295 = vpack.c.b16 %v2759, %v2751
    %v3296 = vpack.c.b16 %v2768, %v2760
    %v3297 = vpack.c.b16 %v2769, %v2761
    %v3298 = vpack.c.b16 %v2770, %v2762
    %v3299 = vpack.c.b16 %v2771, %v2763
    %v3300 = vpack.c.b16 %v2772, %v2764
    %v3301 = vpack.c.b16 %v2773, %v2765
    %v3302 = vpack.c.b16 %v2774, %v2766
    %v3303 = vpack.c.b16 %v2775, %v2767
    %v3304 = vpack.c.b16 %v2784, %v2776
    %v3305 = vpack.c.b16 %v2785, %v2777
    %v3306 = vpack.c.b16 %v2786, %v2778
    %v3307 = vpack.c.b16 %v2787, %v2779
    %v3308 = vpack.c.b16 %v2788, %v2780
    %v3309 = vpack.c.b16 %v2789, %v2781
    %v3310 = vpack.c.b16 %v2790, %v2782
    %v3311 = vpack.c.b16 %v2791, %v2783
    %v3312 = vpack.c.b16 %v2800, %v2792
    %v3313 = vpack.c.b16 %v2801, %v2793
    %v3314 = vpack.c.b16 %v2802, %v2794
    %v3315 = vpack.c.b16 %v2803, %v2795
    %v3316 = vpack.c.b16 %v2804, %v2796
    %v3317 = vpack.c.b16 %v2805, %v2797
    %v3318 = vpack.c.b16 %v2806, %v2798
    %v3319 = vpack.c.b16 %v2807, %v2799
    %3832 = vmatprep.subr.bf16.mxu0 %v2865
    %3833 = vmatpush1.bf16.msra.mxu0 %v2864
    %3834 = vmatprep.subr.bf16.mxu0 %v2857
    %3835 = vmatpush1.bf16.msra.mxu0 %v2856
    %3836 = vmatprep.subr.bf16.mxu0 %v2849
    %3837 = vmatpush1.bf16.msra.mxu0 %v2848
    %3838 = vmatprep.subr.bf16.mxu0 %v2841
    %3839 = vmatpush1.bf16.msra.mxu0 %v2840
    %3840 = vmatprep.subr.bf16.mxu0 %v2833
    %3841 = vmatpush1.bf16.msra.mxu0 %v2832
    %3842 = vmatprep.subr.bf16.mxu0 %v2825
    %3843 = vmatpush1.bf16.msra.mxu0 %v2824
    %3844 = vmatprep.subr.bf16.mxu0 %v2817
    %3845 = vmatpush1.bf16.msra.mxu0 %v2816
    %3846 = vmatprep.subr.bf16.mxu0 %v2809
    %3847 = vmatpush1.bf16.msra.mxu0 %v2808
    %3848 = vmatprep.subr.bf16.mxu0 %v2929
    %3849 = vmatpush2.bf16.msra.mxu0 %v2928
    %3850 = vmatprep.subr.bf16.mxu0 %v2921
    %3851 = vmatpush2.bf16.msra.mxu0 %v2920
    %3852 = vmatprep.subr.bf16.mxu0 %v2913
    %3853 = vmatpush2.bf16.msra.mxu0 %v2912
    %3854 = vmatprep.subr.bf16.mxu0 %v2905
    %3855 = vmatpush2.bf16.msra.mxu0 %v2904
    %3856 = vmatprep.subr.bf16.mxu0 %v2897
    %3857 = vmatpush2.bf16.msra.mxu0 %v2896
    %3858 = vmatprep.subr.bf16.mxu0 %v2889
    %3859 = vmatpush2.bf16.msra.mxu0 %v2888
    %3860 = vmatprep.subr.bf16.mxu0 %v2881
    %3861 = vmatpush2.bf16.msra.mxu0 %v2880
    %3862 = vmatprep.subr.bf16.mxu0 %v2873
    %3863 = vmatpush2.bf16.msra.mxu0 %v2872
    %3864 = vmatprep.mubr.bf16.mxu0 %v711
    %3865 = vmatmul.mubr.bf16.gmra.mxu0 %v710
    %v3866 = vpop.f32.mrf.mxu0
    %v3867 = vadd.f32 %v1235, %v3866
    %v3868 = vpop.f32.mrf.mxu0
    %v3869 = vadd.f32 %v1239, %v3868
    %v3870 = vpop.f32.mrf.mxu0
    %v3871 = vpop.f32.mrf.mxu0
    %3872 = vdwg.mxu0
    %3873 = vmatprep.subr.bf16.mxu0 %v2993
    %3874 = vmatpush1.bf16.msra.mxu0 %v2992
    %3875 = vmatprep.subr.bf16.mxu0 %v2985
    %3876 = vmatpush1.bf16.msra.mxu0 %v2984
    %3877 = vmatprep.subr.bf16.mxu0 %v2977
    %3878 = vmatpush1.bf16.msra.mxu0 %v2976
    %3879 = vmatprep.subr.bf16.mxu0 %v2969
    %3880 = vmatpush1.bf16.msra.mxu0 %v2968
    %3881 = vmatprep.subr.bf16.mxu0 %v2961
    %3882 = vmatpush1.bf16.msra.mxu0 %v2960
    %3883 = vmatprep.subr.bf16.mxu0 %v2953
    %3884 = vmatpush1.bf16.msra.mxu0 %v2952
    %3885 = vmatprep.subr.bf16.mxu0 %v2945
    %3886 = vmatpush1.bf16.msra.mxu0 %v2944
    %3887 = vmatprep.subr.bf16.mxu0 %v2937
    %3888 = vmatpush1.bf16.msra.mxu0 %v2936
    %3889 = vmatprep.subr.bf16.mxu0 %v3057
    %3890 = vmatpush2.bf16.msra.mxu0 %v3056
    %3891 = vmatprep.subr.bf16.mxu0 %v3049
    %3892 = vmatpush2.bf16.msra.mxu0 %v3048
    %3893 = vmatprep.subr.bf16.mxu0 %v3041
    %3894 = vmatpush2.bf16.msra.mxu0 %v3040
    %3895 = vmatprep.subr.bf16.mxu0 %v3033
    %3896 = vmatpush2.bf16.msra.mxu0 %v3032
    %3897 = vmatprep.subr.bf16.mxu0 %v3025
    %3898 = vmatpush2.bf16.msra.mxu0 %v3024
    %3899 = vmatprep.subr.bf16.mxu0 %v3017
    %3900 = vmatpush2.bf16.msra.mxu0 %v3016
    %3901 = vmatprep.subr.bf16.mxu0 %v3009
    %3902 = vmatpush2.bf16.msra.mxu0 %v3008
    %3903 = vmatprep.subr.bf16.mxu0 %v3001
    %3904 = vmatpush2.bf16.msra.mxu0 %v3000
    %3905 = vmatprep.mubr.bf16.mxu0 %v713
    %3906 = vmatmul.mubr.bf16.gmra.mxu0 %v712
    %v3907 = vpop.f32.mrf.mxu0
    %v3908 = vadd.f32 %v3867, %v3907
    %v3909 = vpop.f32.mrf.mxu0
    %v3910 = vadd.f32 %v3869, %v3909
    %v3911 = vpop.f32.mrf.mxu0
    %v3912 = vpop.f32.mrf.mxu0
    %3913 = vdwg.mxu0
    %3914 = vmatprep.subr.bf16.mxu0 %v3121
    %3915 = vmatpush1.bf16.msra.mxu0 %v3120
    %3916 = vmatprep.subr.bf16.mxu0 %v3113
    %3917 = vmatpush1.bf16.msra.mxu0 %v3112
    %3918 = vmatprep.subr.bf16.mxu0 %v3105
    %3919 = vmatpush1.bf16.msra.mxu0 %v3104
    %3920 = vmatprep.subr.bf16.mxu0 %v3097
    %3921 = vmatpush1.bf16.msra.mxu0 %v3096
    %3922 = vmatprep.subr.bf16.mxu0 %v3089
    %3923 = vmatpush1.bf16.msra.mxu0 %v3088
    %3924 = vmatprep.subr.bf16.mxu0 %v3081
    %3925 = vmatpush1.bf16.msra.mxu0 %v3080
    %3926 = vmatprep.subr.bf16.mxu0 %v3073
    %3927 = vmatpush1.bf16.msra.mxu0 %v3072
    %3928 = vmatprep.subr.bf16.mxu0 %v3065
    %3929 = vmatpush1.bf16.msra.mxu0 %v3064
    %3930 = vmatprep.subr.bf16.mxu0 %v3185
    %3931 = vmatpush2.bf16.msra.mxu0 %v3184
    %3932 = vmatprep.subr.bf16.mxu0 %v3177
    %3933 = vmatpush2.bf16.msra.mxu0 %v3176
    %3934 = vmatprep.subr.bf16.mxu0 %v3169
    %3935 = vmatpush2.bf16.msra.mxu0 %v3168
    %3936 = vmatprep.subr.bf16.mxu0 %v3161
    %3937 = vmatpush2.bf16.msra.mxu0 %v3160
    %3938 = vmatprep.subr.bf16.mxu0 %v3153
    %3939 = vmatpush2.bf16.msra.mxu0 %v3152
    %3940 = vmatprep.subr.bf16.mxu0 %v3145
    %3941 = vmatpush2.bf16.msra.mxu0 %v3144
    %3942 = vmatprep.subr.bf16.mxu0 %v3137
    %3943 = vmatpush2.bf16.msra.mxu0 %v3136
    %3944 = vmatprep.subr.bf16.mxu0 %v3129
    %3945 = vmatpush2.bf16.msra.mxu0 %v3128
    %3946 = vmatprep.mubr.bf16.mxu0 %v715
    %3947 = vmatmul.mubr.bf16.gmra.mxu0 %v714
    %v3948 = vpop.f32.mrf.mxu0
    %v3949 = vadd.f32 %v3908, %v3948
    %v3950 = vpop.f32.mrf.mxu0
    %v3951 = vadd.f32 %v3910, %v3950
    %v3952 = vpop.f32.mrf.mxu0
    %v3953 = vpop.f32.mrf.mxu0
    %3954 = vdwg.mxu0
    %3955 = vmatprep.subr.bf16.mxu0 %v3249
    %3956 = vmatpush1.bf16.msra.mxu0 %v3248
    %3957 = vmatprep.subr.bf16.mxu0 %v3241
    %3958 = vmatpush1.bf16.msra.mxu0 %v3240
    %3959 = vmatprep.subr.bf16.mxu0 %v3233
    %3960 = vmatpush1.bf16.msra.mxu0 %v3232
    %3961 = vmatprep.subr.bf16.mxu0 %v3225
    %3962 = vmatpush1.bf16.msra.mxu0 %v3224
    %3963 = vmatprep.subr.bf16.mxu0 %v3217
    %3964 = vmatpush1.bf16.msra.mxu0 %v3216
    %3965 = vmatprep.subr.bf16.mxu0 %v3209
    %3966 = vmatpush1.bf16.msra.mxu0 %v3208
    %3967 = vmatprep.subr.bf16.mxu0 %v3201
    %3968 = vmatpush1.bf16.msra.mxu0 %v3200
    %3969 = vmatprep.subr.bf16.mxu0 %v3193
    %3970 = vmatpush1.bf16.msra.mxu0 %v3192
    %3971 = vmatprep.subr.bf16.mxu0 %v3313
    %3972 = vmatpush2.bf16.msra.mxu0 %v3312
    %3973 = vmatprep.subr.bf16.mxu0 %v3305
    %3974 = vmatpush2.bf16.msra.mxu0 %v3304
    %3975 = vmatprep.subr.bf16.mxu0 %v3297
    %3976 = vmatpush2.bf16.msra.mxu0 %v3296
    %3977 = vmatprep.subr.bf16.mxu0 %v3289
    %3978 = vmatpush2.bf16.msra.mxu0 %v3288
    %3979 = vmatprep.subr.bf16.mxu0 %v3281
    %3980 = vmatpush2.bf16.msra.mxu0 %v3280
    %3981 = vmatprep.subr.bf16.mxu0 %v3273
    %3982 = vmatpush2.bf16.msra.mxu0 %v3272
    %3983 = vmatprep.subr.bf16.mxu0 %v3265
    %3984 = vmatpush2.bf16.msra.mxu0 %v3264
    %3985 = vmatprep.subr.bf16.mxu0 %v3257
    %3986 = vmatpush2.bf16.msra.mxu0 %v3256
    %3987 = vmatprep.mubr.bf16.mxu0 %v717
    %3988 = vmatmul.mubr.bf16.gmra.mxu0 %v716
    %v3989 = vpop.f32.mrf.mxu0
    %v3990 = vadd.f32 %v3949, %v3989
    %v3991 = vpop.f32.mrf.mxu0
    %v3992 = vadd.f32 %v3951, %v3991
    %v3993 = vpop.f32.mrf.mxu0
    %v3994 = vpop.f32.mrf.mxu0
    %3995 = vdwg.mxu0
    %3996 = vmatprep.subr.bf16.mxu0 %v2867
    %3997 = vmatpush1.bf16.msra.mxu0 %v2866
    %3998 = vmatprep.subr.bf16.mxu0 %v2859
    %3999 = vmatpush1.bf16.msra.mxu0 %v2858
    %4000 = vmatprep.subr.bf16.mxu0 %v2851
    %4001 = vmatpush1.bf16.msra.mxu0 %v2850
    %4002 = vmatprep.subr.bf16.mxu0 %v2843
    %4003 = vmatpush1.bf16.msra.mxu0 %v2842
    %4004 = vmatprep.subr.bf16.mxu0 %v2835
    %4005 = vmatpush1.bf16.msra.mxu0 %v2834
    %4006 = vmatprep.subr.bf16.mxu0 %v2827
    %4007 = vmatpush1.bf16.msra.mxu0 %v2826
    %4008 = vmatprep.subr.bf16.mxu0 %v2819
    %4009 = vmatpush1.bf16.msra.mxu0 %v2818
    %4010 = vmatprep.subr.bf16.mxu0 %v2811
    %4011 = vmatpush1.bf16.msra.mxu0 %v2810
    %4012 = vmatprep.subr.bf16.mxu0 %v2931
    %4013 = vmatpush2.bf16.msra.mxu0 %v2930
    %4014 = vmatprep.subr.bf16.mxu0 %v2923
    %4015 = vmatpush2.bf16.msra.mxu0 %v2922
    %4016 = vmatprep.subr.bf16.mxu0 %v2915
    %4017 = vmatpush2.bf16.msra.mxu0 %v2914
    %4018 = vmatprep.subr.bf16.mxu0 %v2907
    %4019 = vmatpush2.bf16.msra.mxu0 %v2906
    %4020 = vmatprep.subr.bf16.mxu0 %v2899
    %4021 = vmatpush2.bf16.msra.mxu0 %v2898
    %4022 = vmatprep.subr.bf16.mxu0 %v2891
    %4023 = vmatpush2.bf16.msra.mxu0 %v2890
    %4024 = vmatprep.subr.bf16.mxu0 %v2883
    %4025 = vmatpush2.bf16.msra.mxu0 %v2882
    %4026 = vmatprep.subr.bf16.mxu0 %v2875
    %4027 = vmatpush2.bf16.msra.mxu0 %v2874
    %4028 = vmatprep.mubr.bf16.mxu0 %v711
    %4029 = vmatmul.mubr.bf16.gmra.mxu0 %v710
    %v4030 = vpop.f32.mrf.mxu0
    %v4031 = vadd.f32 %v1243, %v4030
    %v4032 = vpop.f32.mrf.mxu0
    %v4033 = vadd.f32 %v1247, %v4032
    %v4034 = vpop.f32.mrf.mxu0
    %v4035 = vpop.f32.mrf.mxu0
    %4036 = vdwg.mxu0
    %4037 = vmatprep.subr.bf16.mxu0 %v2995
    %4038 = vmatpush1.bf16.msra.mxu0 %v2994
    %4039 = vmatprep.subr.bf16.mxu0 %v2987
    %4040 = vmatpush1.bf16.msra.mxu0 %v2986
    %4041 = vmatprep.subr.bf16.mxu0 %v2979
    %4042 = vmatpush1.bf16.msra.mxu0 %v2978
    %4043 = vmatprep.subr.bf16.mxu0 %v2971
    %4044 = vmatpush1.bf16.msra.mxu0 %v2970
    %4045 = vmatprep.subr.bf16.mxu0 %v2963
    %4046 = vmatpush1.bf16.msra.mxu0 %v2962
    %4047 = vmatprep.subr.bf16.mxu0 %v2955
    %4048 = vmatpush1.bf16.msra.mxu0 %v2954
    %4049 = vmatprep.subr.bf16.mxu0 %v2947
    %4050 = vmatpush1.bf16.msra.mxu0 %v2946
    %4051 = vmatprep.subr.bf16.mxu0 %v2939
    %4052 = vmatpush1.bf16.msra.mxu0 %v2938
    %4053 = vmatprep.subr.bf16.mxu0 %v3059
    %4054 = vmatpush2.bf16.msra.mxu0 %v3058
    %4055 = vmatprep.subr.bf16.mxu0 %v3051
    %4056 = vmatpush2.bf16.msra.mxu0 %v3050
    %4057 = vmatprep.subr.bf16.mxu0 %v3043
    %4058 = vmatpush2.bf16.msra.mxu0 %v3042
    %4059 = vmatprep.subr.bf16.mxu0 %v3035
    %4060 = vmatpush2.bf16.msra.mxu0 %v3034
    %4061 = vmatprep.subr.bf16.mxu0 %v3027
    %4062 = vmatpush2.bf16.msra.mxu0 %v3026
    %4063 = vmatprep.subr.bf16.mxu0 %v3019
    %4064 = vmatpush2.bf16.msra.mxu0 %v3018
    %4065 = vmatprep.subr.bf16.mxu0 %v3011
    %4066 = vmatpush2.bf16.msra.mxu0 %v3010
    %4067 = vmatprep.subr.bf16.mxu0 %v3003
    %4068 = vmatpush2.bf16.msra.mxu0 %v3002
    %4069 = vmatprep.mubr.bf16.mxu0 %v713
    %4070 = vmatmul.mubr.bf16.gmra.mxu0 %v712
    %v4071 = vpop.f32.mrf.mxu0
    %v4072 = vadd.f32 %v4031, %v4071
    %v4073 = vpop.f32.mrf.mxu0
    %v4074 = vadd.f32 %v4033, %v4073
    %v4075 = vpop.f32.mrf.mxu0
    %v4076 = vpop.f32.mrf.mxu0
    %4077 = vdwg.mxu0
    %4078 = vmatprep.subr.bf16.mxu0 %v3123
    %4079 = vmatpush1.bf16.msra.mxu0 %v3122
    %4080 = vmatprep.subr.bf16.mxu0 %v3115
    %4081 = vmatpush1.bf16.msra.mxu0 %v3114
    %4082 = vmatprep.subr.bf16.mxu0 %v3107
    %4083 = vmatpush1.bf16.msra.mxu0 %v3106
    %4084 = vmatprep.subr.bf16.mxu0 %v3099
    %4085 = vmatpush1.bf16.msra.mxu0 %v3098
    %4086 = vmatprep.subr.bf16.mxu0 %v3091
    %4087 = vmatpush1.bf16.msra.mxu0 %v3090
    %4088 = vmatprep.subr.bf16.mxu0 %v3083
    %4089 = vmatpush1.bf16.msra.mxu0 %v3082
    %4090 = vmatprep.subr.bf16.mxu0 %v3075
    %4091 = vmatpush1.bf16.msra.mxu0 %v3074
    %4092 = vmatprep.subr.bf16.mxu0 %v3067
    %4093 = vmatpush1.bf16.msra.mxu0 %v3066
    %4094 = vmatprep.subr.bf16.mxu0 %v3187
    %4095 = vmatpush2.bf16.msra.mxu0 %v3186
    %4096 = vmatprep.subr.bf16.mxu0 %v3179
    %4097 = vmatpush2.bf16.msra.mxu0 %v3178
    %4098 = vmatprep.subr.bf16.mxu0 %v3171
    %4099 = vmatpush2.bf16.msra.mxu0 %v3170
    %4100 = vmatprep.subr.bf16.mxu0 %v3163
    %4101 = vmatpush2.bf16.msra.mxu0 %v3162
    %4102 = vmatprep.subr.bf16.mxu0 %v3155
    %4103 = vmatpush2.bf16.msra.mxu0 %v3154
    %4104 = vmatprep.subr.bf16.mxu0 %v3147
    %4105 = vmatpush2.bf16.msra.mxu0 %v3146
    %4106 = vmatprep.subr.bf16.mxu0 %v3139
    %4107 = vmatpush2.bf16.msra.mxu0 %v3138
    %4108 = vmatprep.subr.bf16.mxu0 %v3131
    %4109 = vmatpush2.bf16.msra.mxu0 %v3130
    %4110 = vmatprep.mubr.bf16.mxu0 %v715
    %4111 = vmatmul.mubr.bf16.gmra.mxu0 %v714
    %v4112 = vpop.f32.mrf.mxu0
    %v4113 = vadd.f32 %v4072, %v4112
    %v4114 = vpop.f32.mrf.mxu0
    %v4115 = vadd.f32 %v4074, %v4114
    %v4116 = vpop.f32.mrf.mxu0
    %v4117 = vpop.f32.mrf.mxu0
    %4118 = vdwg.mxu0
    %4119 = vmatprep.subr.bf16.mxu0 %v3251
    %4120 = vmatpush1.bf16.msra.mxu0 %v3250
    %4121 = vmatprep.subr.bf16.mxu0 %v3243
    %4122 = vmatpush1.bf16.msra.mxu0 %v3242
    %4123 = vmatprep.subr.bf16.mxu0 %v3235
    %4124 = vmatpush1.bf16.msra.mxu0 %v3234
    %4125 = vmatprep.subr.bf16.mxu0 %v3227
    %4126 = vmatpush1.bf16.msra.mxu0 %v3226
    %4127 = vmatprep.subr.bf16.mxu0 %v3219
    %4128 = vmatpush1.bf16.msra.mxu0 %v3218
    %4129 = vmatprep.subr.bf16.mxu0 %v3211
    %4130 = vmatpush1.bf16.msra.mxu0 %v3210
    %4131 = vmatprep.subr.bf16.mxu0 %v3203
    %4132 = vmatpush1.bf16.msra.mxu0 %v3202
    %4133 = vmatprep.subr.bf16.mxu0 %v3195
    %4134 = vmatpush1.bf16.msra.mxu0 %v3194
    %4135 = vmatprep.subr.bf16.mxu0 %v3315
    %4136 = vmatpush2.bf16.msra.mxu0 %v3314
    %4137 = vmatprep.subr.bf16.mxu0 %v3307
    %4138 = vmatpush2.bf16.msra.mxu0 %v3306
    %4139 = vmatprep.subr.bf16.mxu0 %v3299
    %4140 = vmatpush2.bf16.msra.mxu0 %v3298
    %4141 = vmatprep.subr.bf16.mxu0 %v3291
    %4142 = vmatpush2.bf16.msra.mxu0 %v3290
    %4143 = vmatprep.subr.bf16.mxu0 %v3283
    %4144 = vmatpush2.bf16.msra.mxu0 %v3282
    %4145 = vmatprep.subr.bf16.mxu0 %v3275
    %4146 = vmatpush2.bf16.msra.mxu0 %v3274
    %4147 = vmatprep.subr.bf16.mxu0 %v3267
    %4148 = vmatpush2.bf16.msra.mxu0 %v3266
    %4149 = vmatprep.subr.bf16.mxu0 %v3259
    %4150 = vmatpush2.bf16.msra.mxu0 %v3258
    %4151 = vmatprep.mubr.bf16.mxu0 %v717
    %4152 = vmatmul.mubr.bf16.gmra.mxu0 %v716
    %v4153 = vpop.f32.mrf.mxu0
    %v4154 = vadd.f32 %v4113, %v4153
    %v4155 = vpop.f32.mrf.mxu0
    %v4156 = vadd.f32 %v4115, %v4155
    %v4157 = vpop.f32.mrf.mxu0
    %v4158 = vpop.f32.mrf.mxu0
    %4159 = vdwg.mxu0
    %4160 = vmatprep.subr.bf16.mxu0 %v2869
    %4161 = vmatpush1.bf16.msra.mxu0 %v2868
    %4162 = vmatprep.subr.bf16.mxu0 %v2861
    %4163 = vmatpush1.bf16.msra.mxu0 %v2860
    %4164 = vmatprep.subr.bf16.mxu0 %v2853
    %4165 = vmatpush1.bf16.msra.mxu0 %v2852
    %4166 = vmatprep.subr.bf16.mxu0 %v2845
    %4167 = vmatpush1.bf16.msra.mxu0 %v2844
    %4168 = vmatprep.subr.bf16.mxu0 %v2837
    %4169 = vmatpush1.bf16.msra.mxu0 %v2836
    %4170 = vmatprep.subr.bf16.mxu0 %v2829
    %4171 = vmatpush1.bf16.msra.mxu0 %v2828
    %4172 = vmatprep.subr.bf16.mxu0 %v2821
    %4173 = vmatpush1.bf16.msra.mxu0 %v2820
    %4174 = vmatprep.subr.bf16.mxu0 %v2813
    %4175 = vmatpush1.bf16.msra.mxu0 %v2812
    %4176 = vmatprep.subr.bf16.mxu0 %v2933
    %4177 = vmatpush2.bf16.msra.mxu0 %v2932
    %4178 = vmatprep.subr.bf16.mxu0 %v2925
    %4179 = vmatpush2.bf16.msra.mxu0 %v2924
    %4180 = vmatprep.subr.bf16.mxu0 %v2917
    %4181 = vmatpush2.bf16.msra.mxu0 %v2916
    %4182 = vmatprep.subr.bf16.mxu0 %v2909
    %4183 = vmatpush2.bf16.msra.mxu0 %v2908
    %4184 = vmatprep.subr.bf16.mxu0 %v2901
    %4185 = vmatpush2.bf16.msra.mxu0 %v2900
    %4186 = vmatprep.subr.bf16.mxu0 %v2893
    %4187 = vmatpush2.bf16.msra.mxu0 %v2892
    %4188 = vmatprep.subr.bf16.mxu0 %v2885
    %4189 = vmatpush2.bf16.msra.mxu0 %v2884
    %4190 = vmatprep.subr.bf16.mxu0 %v2877
    %4191 = vmatpush2.bf16.msra.mxu0 %v2876
    %4192 = vmatprep.mubr.bf16.mxu0 %v711
    %4193 = vmatmul.mubr.bf16.gmra.mxu0 %v710
    %v4194 = vpop.f32.mrf.mxu0
    %v4195 = vadd.f32 %v1251, %v4194
    %v4196 = vpop.f32.mrf.mxu0
    %v4197 = vadd.f32 %v1255, %v4196
    %v4198 = vpop.f32.mrf.mxu0
    %v4199 = vpop.f32.mrf.mxu0
    %4200 = vdwg.mxu0
    %4201 = vmatprep.subr.bf16.mxu0 %v2997
    %4202 = vmatpush1.bf16.msra.mxu0 %v2996
    %4203 = vmatprep.subr.bf16.mxu0 %v2989
    %4204 = vmatpush1.bf16.msra.mxu0 %v2988
    %4205 = vmatprep.subr.bf16.mxu0 %v2981
    %4206 = vmatpush1.bf16.msra.mxu0 %v2980
    %4207 = vmatprep.subr.bf16.mxu0 %v2973
    %4208 = vmatpush1.bf16.msra.mxu0 %v2972
    %4209 = vmatprep.subr.bf16.mxu0 %v2965
    %4210 = vmatpush1.bf16.msra.mxu0 %v2964
    %4211 = vmatprep.subr.bf16.mxu0 %v2957
    %4212 = vmatpush1.bf16.msra.mxu0 %v2956
    %4213 = vmatprep.subr.bf16.mxu0 %v2949
    %4214 = vmatpush1.bf16.msra.mxu0 %v2948
    %4215 = vmatprep.subr.bf16.mxu0 %v2941
    %4216 = vmatpush1.bf16.msra.mxu0 %v2940
    %4217 = vmatprep.subr.bf16.mxu0 %v3061
    %4218 = vmatpush2.bf16.msra.mxu0 %v3060
    %4219 = vmatprep.subr.bf16.mxu0 %v3053
    %4220 = vmatpush2.bf16.msra.mxu0 %v3052
    %4221 = vmatprep.subr.bf16.mxu0 %v3045
    %4222 = vmatpush2.bf16.msra.mxu0 %v3044
    %4223 = vmatprep.subr.bf16.mxu0 %v3037
    %4224 = vmatpush2.bf16.msra.mxu0 %v3036
    %4225 = vmatprep.subr.bf16.mxu0 %v3029
    %4226 = vmatpush2.bf16.msra.mxu0 %v3028
    %4227 = vmatprep.subr.bf16.mxu0 %v3021
    %4228 = vmatpush2.bf16.msra.mxu0 %v3020
    %4229 = vmatprep.subr.bf16.mxu0 %v3013
    %4230 = vmatpush2.bf16.msra.mxu0 %v3012
    %4231 = vmatprep.subr.bf16.mxu0 %v3005
    %4232 = vmatpush2.bf16.msra.mxu0 %v3004
    %4233 = vmatprep.mubr.bf16.mxu0 %v713
    %4234 = vmatmul.mubr.bf16.gmra.mxu0 %v712
    %v4235 = vpop.f32.mrf.mxu0
    %v4236 = vadd.f32 %v4195, %v4235
    %v4237 = vpop.f32.mrf.mxu0
    %v4238 = vadd.f32 %v4197, %v4237
    %v4239 = vpop.f32.mrf.mxu0
    %v4240 = vpop.f32.mrf.mxu0
    %4241 = vdwg.mxu0
    %4242 = vmatprep.subr.bf16.mxu0 %v3125
    %4243 = vmatpush1.bf16.msra.mxu0 %v3124
    %4244 = vmatprep.subr.bf16.mxu0 %v3117
    %4245 = vmatpush1.bf16.msra.mxu0 %v3116
    %4246 = vmatprep.subr.bf16.mxu0 %v3109
    %4247 = vmatpush1.bf16.msra.mxu0 %v3108
    %4248 = vmatprep.subr.bf16.mxu0 %v3101
    %4249 = vmatpush1.bf16.msra.mxu0 %v3100
    %4250 = vmatprep.subr.bf16.mxu0 %v3093
    %4251 = vmatpush1.bf16.msra.mxu0 %v3092
    %4252 = vmatprep.subr.bf16.mxu0 %v3085
    %4253 = vmatpush1.bf16.msra.mxu0 %v3084
    %4254 = vmatprep.subr.bf16.mxu0 %v3077
    %4255 = vmatpush1.bf16.msra.mxu0 %v3076
    %4256 = vmatprep.subr.bf16.mxu0 %v3069
    %4257 = vmatpush1.bf16.msra.mxu0 %v3068
    %4258 = vmatprep.subr.bf16.mxu0 %v3189
    %4259 = vmatpush2.bf16.msra.mxu0 %v3188
    %4260 = vmatprep.subr.bf16.mxu0 %v3181
    %4261 = vmatpush2.bf16.msra.mxu0 %v3180
    %4262 = vmatprep.subr.bf16.mxu0 %v3173
    %4263 = vmatpush2.bf16.msra.mxu0 %v3172
    %4264 = vmatprep.subr.bf16.mxu0 %v3165
    %4265 = vmatpush2.bf16.msra.mxu0 %v3164
    %4266 = vmatprep.subr.bf16.mxu0 %v3157
    %4267 = vmatpush2.bf16.msra.mxu0 %v3156
    %4268 = vmatprep.subr.bf16.mxu0 %v3149
    %4269 = vmatpush2.bf16.msra.mxu0 %v3148
    %4270 = vmatprep.subr.bf16.mxu0 %v3141
    %4271 = vmatpush2.bf16.msra.mxu0 %v3140
    %4272 = vmatprep.subr.bf16.mxu0 %v3133
    %4273 = vmatpush2.bf16.msra.mxu0 %v3132
    %4274 = vmatprep.mubr.bf16.mxu0 %v715
    %4275 = vmatmul.mubr.bf16.gmra.mxu0 %v714
    %v4276 = vpop.f32.mrf.mxu0
    %v4277 = vadd.f32 %v4236, %v4276
    %v4278 = vpop.f32.mrf.mxu0
    %v4279 = vadd.f32 %v4238, %v4278
    %v4280 = vpop.f32.mrf.mxu0
    %v4281 = vpop.f32.mrf.mxu0
    %4282 = vdwg.mxu0
    %4283 = vmatprep.subr.bf16.mxu0 %v3253
    %4284 = vmatpush1.bf16.msra.mxu0 %v3252
    %4285 = vmatprep.subr.bf16.mxu0 %v3245
    %4286 = vmatpush1.bf16.msra.mxu0 %v3244
    %4287 = vmatprep.subr.bf16.mxu0 %v3237
    %4288 = vmatpush1.bf16.msra.mxu0 %v3236
    %4289 = vmatprep.subr.bf16.mxu0 %v3229
    %4290 = vmatpush1.bf16.msra.mxu0 %v3228
    %4291 = vmatprep.subr.bf16.mxu0 %v3221
    %4292 = vmatpush1.bf16.msra.mxu0 %v3220
    %4293 = vmatprep.subr.bf16.mxu0 %v3213
    %4294 = vmatpush1.bf16.msra.mxu0 %v3212
    %4295 = vmatprep.subr.bf16.mxu0 %v3205
    %4296 = vmatpush1.bf16.msra.mxu0 %v3204
    %4297 = vmatprep.subr.bf16.mxu0 %v3197
    %4298 = vmatpush1.bf16.msra.mxu0 %v3196
    %4299 = vmatprep.subr.bf16.mxu0 %v3317
    %4300 = vmatpush2.bf16.msra.mxu0 %v3316
    %4301 = vmatprep.subr.bf16.mxu0 %v3309
    %4302 = vmatpush2.bf16.msra.mxu0 %v3308
    %4303 = vmatprep.subr.bf16.mxu0 %v3301
    %4304 = vmatpush2.bf16.msra.mxu0 %v3300
    %4305 = vmatprep.subr.bf16.mxu0 %v3293
    %4306 = vmatpush2.bf16.msra.mxu0 %v3292
    %4307 = vmatprep.subr.bf16.mxu0 %v3285
    %4308 = vmatpush2.bf16.msra.mxu0 %v3284
    %4309 = vmatprep.subr.bf16.mxu0 %v3277
    %4310 = vmatpush2.bf16.msra.mxu0 %v3276
    %4311 = vmatprep.subr.bf16.mxu0 %v3269
    %4312 = vmatpush2.bf16.msra.mxu0 %v3268
    %4313 = vmatprep.subr.bf16.mxu0 %v3261
    %4314 = vmatpush2.bf16.msra.mxu0 %v3260
    %4315 = vmatprep.mubr.bf16.mxu0 %v717
    %4316 = vmatmul.mubr.bf16.gmra.mxu0 %v716
    %v4317 = vpop.f32.mrf.mxu0
    %v4318 = vadd.f32 %v4277, %v4317
    %v4319 = vpop.f32.mrf.mxu0
    %v4320 = vadd.f32 %v4279, %v4319
    %v4321 = vpop.f32.mrf.mxu0
    %v4322 = vpop.f32.mrf.mxu0
    %4323 = vdwg.mxu0
    %4324 = vmatprep.subr.bf16.mxu0 %v2871
    %4325 = vmatpush1.bf16.msra.mxu0 %v2870
    %4326 = vmatprep.subr.bf16.mxu0 %v2863
    %4327 = vmatpush1.bf16.msra.mxu0 %v2862
    %4328 = vmatprep.subr.bf16.mxu0 %v2855
    %4329 = vmatpush1.bf16.msra.mxu0 %v2854
    %4330 = vmatprep.subr.bf16.mxu0 %v2847
    %4331 = vmatpush1.bf16.msra.mxu0 %v2846
    %4332 = vmatprep.subr.bf16.mxu0 %v2839
    %4333 = vmatpush1.bf16.msra.mxu0 %v2838
    %4334 = vmatprep.subr.bf16.mxu0 %v2831
    %4335 = vmatpush1.bf16.msra.mxu0 %v2830
    %4336 = vmatprep.subr.bf16.mxu0 %v2823
    %4337 = vmatpush1.bf16.msra.mxu0 %v2822
    %4338 = vmatprep.subr.bf16.mxu0 %v2815
    %4339 = vmatpush1.bf16.msra.mxu0 %v2814
    %4340 = vmatprep.subr.bf16.mxu0 %v2935
    %4341 = vmatpush2.bf16.msra.mxu0 %v2934
    %4342 = vmatprep.subr.bf16.mxu0 %v2927
    %4343 = vmatpush2.bf16.msra.mxu0 %v2926
    %4344 = vmatprep.subr.bf16.mxu0 %v2919
    %4345 = vmatpush2.bf16.msra.mxu0 %v2918
    %4346 = vmatprep.subr.bf16.mxu0 %v2911
    %4347 = vmatpush2.bf16.msra.mxu0 %v2910
    %4348 = vmatprep.subr.bf16.mxu0 %v2903
    %4349 = vmatpush2.bf16.msra.mxu0 %v2902
    %4350 = vmatprep.subr.bf16.mxu0 %v2895
    %4351 = vmatpush2.bf16.msra.mxu0 %v2894
    %4352 = vmatprep.subr.bf16.mxu0 %v2887
    %4353 = vmatpush2.bf16.msra.mxu0 %v2886
    %4354 = vmatprep.subr.bf16.mxu0 %v2879
    %4355 = vmatpush2.bf16.msra.mxu0 %v2878
    %4356 = vmatprep.mubr.bf16.mxu0 %v711
    %4357 = vmatmul.mubr.bf16.gmra.mxu0 %v710
    %v4358 = vpop.f32.mrf.mxu0
    %v4359 = vadd.f32 %v1259, %v4358
    %v4360 = vpop.f32.mrf.mxu0
    %v4361 = vadd.f32 %v1263, %v4360
    %v4362 = vpop.f32.mrf.mxu0
    %v4363 = vpop.f32.mrf.mxu0
    %4364 = vdwg.mxu0
    %4365 = vmatprep.subr.bf16.mxu0 %v2999
    %4366 = vmatpush1.bf16.msra.mxu0 %v2998
    %4367 = vmatprep.subr.bf16.mxu0 %v2991
    %4368 = vmatpush1.bf16.msra.mxu0 %v2990
    %4369 = vmatprep.subr.bf16.mxu0 %v2983
    %4370 = vmatpush1.bf16.msra.mxu0 %v2982
    %4371 = vmatprep.subr.bf16.mxu0 %v2975
    %4372 = vmatpush1.bf16.msra.mxu0 %v2974
    %4373 = vmatprep.subr.bf16.mxu0 %v2967
    %4374 = vmatpush1.bf16.msra.mxu0 %v2966
    %4375 = vmatprep.subr.bf16.mxu0 %v2959
    %4376 = vmatpush1.bf16.msra.mxu0 %v2958
    %4377 = vmatprep.subr.bf16.mxu0 %v2951
    %4378 = vmatpush1.bf16.msra.mxu0 %v2950
    %4379 = vmatprep.subr.bf16.mxu0 %v2943
    %4380 = vmatpush1.bf16.msra.mxu0 %v2942
    %4381 = vmatprep.subr.bf16.mxu0 %v3063
    %4382 = vmatpush2.bf16.msra.mxu0 %v3062
    %4383 = vmatprep.subr.bf16.mxu0 %v3055
    %4384 = vmatpush2.bf16.msra.mxu0 %v3054
    %4385 = vmatprep.subr.bf16.mxu0 %v3047
    %4386 = vmatpush2.bf16.msra.mxu0 %v3046
    %4387 = vmatprep.subr.bf16.mxu0 %v3039
    %4388 = vmatpush2.bf16.msra.mxu0 %v3038
    %4389 = vmatprep.subr.bf16.mxu0 %v3031
    %4390 = vmatpush2.bf16.msra.mxu0 %v3030
    %4391 = vmatprep.subr.bf16.mxu0 %v3023
    %4392 = vmatpush2.bf16.msra.mxu0 %v3022
    %4393 = vmatprep.subr.bf16.mxu0 %v3015
    %4394 = vmatpush2.bf16.msra.mxu0 %v3014
    %4395 = vmatprep.subr.bf16.mxu0 %v3007
    %4396 = vmatpush2.bf16.msra.mxu0 %v3006
    %4397 = vmatprep.mubr.bf16.mxu0 %v713
    %4398 = vmatmul.mubr.bf16.gmra.mxu0 %v712
    %v4399 = vpop.f32.mrf.mxu0
    %v4400 = vadd.f32 %v4359, %v4399
    %v4401 = vpop.f32.mrf.mxu0
    %v4402 = vadd.f32 %v4361, %v4401
    %v4403 = vpop.f32.mrf.mxu0
    %v4404 = vpop.f32.mrf.mxu0
    %4405 = vdwg.mxu0
    %4406 = vmatprep.subr.bf16.mxu0 %v3127
    %4407 = vmatpush1.bf16.msra.mxu0 %v3126
    %4408 = vmatprep.subr.bf16.mxu0 %v3119
    %4409 = vmatpush1.bf16.msra.mxu0 %v3118
    %4410 = vmatprep.subr.bf16.mxu0 %v3111
    %4411 = vmatpush1.bf16.msra.mxu0 %v3110
    %4412 = vmatprep.subr.bf16.mxu0 %v3103
    %4413 = vmatpush1.bf16.msra.mxu0 %v3102
    %4414 = vmatprep.subr.bf16.mxu0 %v3095
    %4415 = vmatpush1.bf16.msra.mxu0 %v3094
    %4416 = vmatprep.subr.bf16.mxu0 %v3087
    %4417 = vmatpush1.bf16.msra.mxu0 %v3086
    %4418 = vmatprep.subr.bf16.mxu0 %v3079
    %4419 = vmatpush1.bf16.msra.mxu0 %v3078
    %4420 = vmatprep.subr.bf16.mxu0 %v3071
    %4421 = vmatpush1.bf16.msra.mxu0 %v3070
    %4422 = vmatprep.subr.bf16.mxu0 %v3191
    %4423 = vmatpush2.bf16.msra.mxu0 %v3190
    %4424 = vmatprep.subr.bf16.mxu0 %v3183
    %4425 = vmatpush2.bf16.msra.mxu0 %v3182
    %4426 = vmatprep.subr.bf16.mxu0 %v3175
    %4427 = vmatpush2.bf16.msra.mxu0 %v3174
    %4428 = vmatprep.subr.bf16.mxu0 %v3167
    %4429 = vmatpush2.bf16.msra.mxu0 %v3166
    %4430 = vmatprep.subr.bf16.mxu0 %v3159
    %4431 = vmatpush2.bf16.msra.mxu0 %v3158
    %4432 = vmatprep.subr.bf16.mxu0 %v3151
    %4433 = vmatpush2.bf16.msra.mxu0 %v3150
    %4434 = vmatprep.subr.bf16.mxu0 %v3143
    %4435 = vmatpush2.bf16.msra.mxu0 %v3142
    %4436 = vmatprep.subr.bf16.mxu0 %v3135
    %4437 = vmatpush2.bf16.msra.mxu0 %v3134
    %4438 = vmatprep.mubr.bf16.mxu0 %v715
    %4439 = vmatmul.mubr.bf16.gmra.mxu0 %v714
    %v4440 = vpop.f32.mrf.mxu0
    %v4441 = vadd.f32 %v4400, %v4440
    %v4442 = vpop.f32.mrf.mxu0
    %v4443 = vadd.f32 %v4402, %v4442
    %v4444 = vpop.f32.mrf.mxu0
    %v4445 = vpop.f32.mrf.mxu0
    %4446 = vdwg.mxu0
    %4447 = vmatprep.subr.bf16.mxu0 %v3255
    %4448 = vmatpush1.bf16.msra.mxu0 %v3254
    %4449 = vmatprep.subr.bf16.mxu0 %v3247
    %4450 = vmatpush1.bf16.msra.mxu0 %v3246
    %4451 = vmatprep.subr.bf16.mxu0 %v3239
    %4452 = vmatpush1.bf16.msra.mxu0 %v3238
    %4453 = vmatprep.subr.bf16.mxu0 %v3231
    %4454 = vmatpush1.bf16.msra.mxu0 %v3230
    %4455 = vmatprep.subr.bf16.mxu0 %v3223
    %4456 = vmatpush1.bf16.msra.mxu0 %v3222
    %4457 = vmatprep.subr.bf16.mxu0 %v3215
    %4458 = vmatpush1.bf16.msra.mxu0 %v3214
    %4459 = vmatprep.subr.bf16.mxu0 %v3207
    %4460 = vmatpush1.bf16.msra.mxu0 %v3206
    %4461 = vmatprep.subr.bf16.mxu0 %v3199
    %4462 = vmatpush1.bf16.msra.mxu0 %v3198
    %4463 = vmatprep.subr.bf16.mxu0 %v3319
    %4464 = vmatpush2.bf16.msra.mxu0 %v3318
    %4465 = vmatprep.subr.bf16.mxu0 %v3311
    %4466 = vmatpush2.bf16.msra.mxu0 %v3310
    %4467 = vmatprep.subr.bf16.mxu0 %v3303
    %4468 = vmatpush2.bf16.msra.mxu0 %v3302
    %4469 = vmatprep.subr.bf16.mxu0 %v3295
    %4470 = vmatpush2.bf16.msra.mxu0 %v3294
    %4471 = vmatprep.subr.bf16.mxu0 %v3287
    %4472 = vmatpush2.bf16.msra.mxu0 %v3286
    %4473 = vmatprep.subr.bf16.mxu0 %v3279
    %4474 = vmatpush2.bf16.msra.mxu0 %v3278
    %4475 = vmatprep.subr.bf16.mxu0 %v3271
    %4476 = vmatpush2.bf16.msra.mxu0 %v3270
    %4477 = vmatprep.subr.bf16.mxu0 %v3263
    %4478 = vmatpush2.bf16.msra.mxu0 %v3262
    %4479 = vmatprep.mubr.bf16.mxu0 %v717
    %4480 = vmatmul.mubr.bf16.gmra.mxu0 %v716
    %v4481 = vpop.f32.mrf.mxu0
    %v4482 = vadd.f32 %v4441, %v4481
    %v4483 = vpop.f32.mrf.mxu0
    %v4484 = vadd.f32 %v4443, %v4483
    %v4485 = vpop.f32.mrf.mxu0
    %v4486 = vpop.f32.mrf.mxu0
    %4487 = vdwg.mxu0
    %v4488 = vmax.f32 %v3990, 0.0
    %v4489 = vmax.f32 %v3992, 0.0
    %v4490 = vmax.f32 %v4154, 0.0
    %v4491 = vmax.f32 %v4156, 0.0
    %v4492 = vmax.f32 %v4318, 0.0
    %v4493 = vmax.f32 %v4320, 0.0
    %v4494 = vmax.f32 %v4482, 0.0
    %v4495 = vmax.f32 %v4484, 0.0
    %v4496 = vpack.c.bf16 %v4488, %v4488
    %v4497 = vpack.c.bf16 %v4489, %v4489
    %v4498 = vpack.c.bf16 %v4490, %v4490
    %v4499 = vpack.c.bf16 %v4491, %v4491
    %v4500 = vpack.c.bf16 %v4492, %v4492
    %v4501 = vpack.c.bf16 %v4493, %v4493
    %v4502 = vpack.c.bf16 %v4494, %v4494
    %v4503 = vpack.c.bf16 %v4495, %v4495
    %v4504 = vld [vmem:[#allocation13] sm:$0xf]
    %v4505 = vld [vmem:[#allocation13 + $0x4] sm:$0xf]
    %v4506 = vld [vmem:[#allocation13 + $0x8] sm:$0xf]
    %v4507 = vld [vmem:[#allocation13 + $0xc] sm:$0xf]
    %v4508 = vld [vmem:[#allocation13 + $0x10] sm:$0xf]
    %v4509 = vld [vmem:[#allocation13 + $0x14] sm:$0xf]
    %v4510 = vld [vmem:[#allocation13 + $0x18] sm:$0xf]
    %v4511 = vld [vmem:[#allocation13 + $0x1c] sm:$0xf]
    %v4512 = vld [vmem:[#allocation13 + $0x20] sm:$0xf]
    %v4513 = vld [vmem:[#allocation13 + $0x24] sm:$0xf]
    %v4514 = vld [vmem:[#allocation13 + $0x28] sm:$0xf]
    %v4515 = vld [vmem:[#allocation13 + $0x2c] sm:$0xf]
    %v4516 = vld [vmem:[#allocation13 + $0x30] sm:$0xf]
    %v4517 = vld [vmem:[#allocation13 + $0x34] sm:$0xf]
    %v4518 = vld [vmem:[#allocation13 + $0x38] sm:$0xf]
    %v4519 = vld [vmem:[#allocation13 + $0x3c] sm:$0xf]
    %v4520 = vld [vmem:[#allocation13 + $0x40] sm:$0xf]
    %v4521 = vld [vmem:[#allocation13 + $0x44] sm:$0xf]
    %v4522 = vld [vmem:[#allocation13 + $0x48] sm:$0xf]
    %v4523 = vld [vmem:[#allocation13 + $0x4c] sm:$0xf]
    %v4524 = vld [vmem:[#allocation13 + $0x50] sm:$0xf]
    %v4525 = vld [vmem:[#allocation13 + $0x54] sm:$0xf]
    %v4526 = vld [vmem:[#allocation13 + $0x58] sm:$0xf]
    %v4527 = vld [vmem:[#allocation13 + $0x5c] sm:$0xf]
    %v4528 = vld [vmem:[#allocation13 + $0x60] sm:$0xf]
    %v4529 = vld [vmem:[#allocation13 + $0x64] sm:$0xf]
    %v4530 = vld [vmem:[#allocation13 + $0x68] sm:$0xf]
    %v4531 = vld [vmem:[#allocation13 + $0x6c] sm:$0xf]
    %v4532 = vld [vmem:[#allocation13 + $0x70] sm:$0xf]
    %v4533 = vld [vmem:[#allocation13 + $0x74] sm:$0xf]
    %v4534 = vld [vmem:[#allocation13 + $0x78] sm:$0xf]
    %v4535 = vld [vmem:[#allocation13 + $0x7c] sm:$0xf]
    %v4536 = vld [vmem:[#allocation13 + $0x80] sm:$0xf]
    %v4537 = vld [vmem:[#allocation13 + $0x84] sm:$0xf]
    %v4538 = vld [vmem:[#allocation13 + $0x88] sm:$0xf]
    %v4539 = vld [vmem:[#allocation13 + $0x8c] sm:$0xf]
    %v4540 = vld [vmem:[#allocation13 + $0x90] sm:$0xf]
    %v4541 = vld [vmem:[#allocation13 + $0x94] sm:$0xf]
    %v4542 = vld [vmem:[#allocation13 + $0x98] sm:$0xf]
    %v4543 = vld [vmem:[#allocation13 + $0x9c] sm:$0xf]
    %v4544 = vld [vmem:[#allocation13 + $0xa0] sm:$0xf]
    %v4545 = vld [vmem:[#allocation13 + $0xa4] sm:$0xf]
    %v4546 = vld [vmem:[#allocation13 + $0xa8] sm:$0xf]
    %v4547 = vld [vmem:[#allocation13 + $0xac] sm:$0xf]
    %v4548 = vld [vmem:[#allocation13 + $0xb0] sm:$0xf]
    %v4549 = vld [vmem:[#allocation13 + $0xb4] sm:$0xf]
    %v4550 = vld [vmem:[#allocation13 + $0xb8] sm:$0xf]
    %v4551 = vld [vmem:[#allocation13 + $0xbc] sm:$0xf]
    %v4552 = vld [vmem:[#allocation13 + $0xc0] sm:$0xf]
    %v4553 = vld [vmem:[#allocation13 + $0xc4] sm:$0xf]
    %v4554 = vld [vmem:[#allocation13 + $0xc8] sm:$0xf]
    %v4555 = vld [vmem:[#allocation13 + $0xcc] sm:$0xf]
    %v4556 = vld [vmem:[#allocation13 + $0xd0] sm:$0xf]
    %v4557 = vld [vmem:[#allocation13 + $0xd4] sm:$0xf]
    %v4558 = vld [vmem:[#allocation13 + $0xd8] sm:$0xf]
    %v4559 = vld [vmem:[#allocation13 + $0xdc] sm:$0xf]
    %v4560 = vld [vmem:[#allocation13 + $0xe0] sm:$0xf]
    %v4561 = vld [vmem:[#allocation13 + $0xe4] sm:$0xf]
    %v4562 = vld [vmem:[#allocation13 + $0xe8] sm:$0xf]
    %v4563 = vld [vmem:[#allocation13 + $0xec] sm:$0xf]
    %v4564 = vld [vmem:[#allocation13 + $0xf0] sm:$0xf]
    %v4565 = vld [vmem:[#allocation13 + $0xf4] sm:$0xf]
    %v4566 = vld [vmem:[#allocation13 + $0xf8] sm:$0xf]
    %v4567 = vld [vmem:[#allocation13 + $0xfc] sm:$0xf]
    %v4568 = vld [vmem:[#allocation13 + $0x100] sm:$0xf]
    %v4569 = vld [vmem:[#allocation13 + $0x104] sm:$0xf]
    %v4570 = vld [vmem:[#allocation13 + $0x108] sm:$0xf]
    %v4571 = vld [vmem:[#allocation13 + $0x10c] sm:$0xf]
    %v4572 = vld [vmem:[#allocation13 + $0x110] sm:$0xf]
    %v4573 = vld [vmem:[#allocation13 + $0x114] sm:$0xf]
    %v4574 = vld [vmem:[#allocation13 + $0x118] sm:$0xf]
    %v4575 = vld [vmem:[#allocation13 + $0x11c] sm:$0xf]
    %v4576 = vld [vmem:[#allocation13 + $0x120] sm:$0xf]
    %v4577 = vld [vmem:[#allocation13 + $0x124] sm:$0xf]
    %v4578 = vld [vmem:[#allocation13 + $0x128] sm:$0xf]
    %v4579 = vld [vmem:[#allocation13 + $0x12c] sm:$0xf]
    %v4580 = vld [vmem:[#allocation13 + $0x130] sm:$0xf]
    %v4581 = vld [vmem:[#allocation13 + $0x134] sm:$0xf]
    %v4582 = vld [vmem:[#allocation13 + $0x138] sm:$0xf]
    %v4583 = vld [vmem:[#allocation13 + $0x13c] sm:$0xf]
    %v4584 = vld [vmem:[#allocation13 + $0x140] sm:$0xf]
    %v4585 = vld [vmem:[#allocation13 + $0x144] sm:$0xf]
    %v4586 = vld [vmem:[#allocation13 + $0x148] sm:$0xf]
    %v4587 = vld [vmem:[#allocation13 + $0x14c] sm:$0xf]
    %v4588 = vld [vmem:[#allocation13 + $0x150] sm:$0xf]
    %v4589 = vld [vmem:[#allocation13 + $0x154] sm:$0xf]
    %v4590 = vld [vmem:[#allocation13 + $0x158] sm:$0xf]
    %v4591 = vld [vmem:[#allocation13 + $0x15c] sm:$0xf]
    %v4592 = vld [vmem:[#allocation13 + $0x160] sm:$0xf]
    %v4593 = vld [vmem:[#allocation13 + $0x164] sm:$0xf]
    %v4594 = vld [vmem:[#allocation13 + $0x168] sm:$0xf]
    %v4595 = vld [vmem:[#allocation13 + $0x16c] sm:$0xf]
    %v4596 = vld [vmem:[#allocation13 + $0x170] sm:$0xf]
    %v4597 = vld [vmem:[#allocation13 + $0x174] sm:$0xf]
    %v4598 = vld [vmem:[#allocation13 + $0x178] sm:$0xf]
    %v4599 = vld [vmem:[#allocation13 + $0x17c] sm:$0xf]
    %v4600 = vld [vmem:[#allocation13 + $0x180] sm:$0xf]
    %v4601 = vld [vmem:[#allocation13 + $0x184] sm:$0xf]
    %v4602 = vld [vmem:[#allocation13 + $0x188] sm:$0xf]
    %v4603 = vld [vmem:[#allocation13 + $0x18c] sm:$0xf]
    %v4604 = vld [vmem:[#allocation13 + $0x190] sm:$0xf]
    %v4605 = vld [vmem:[#allocation13 + $0x194] sm:$0xf]
    %v4606 = vld [vmem:[#allocation13 + $0x198] sm:$0xf]
    %v4607 = vld [vmem:[#allocation13 + $0x19c] sm:$0xf]
    %v4608 = vld [vmem:[#allocation13 + $0x1a0] sm:$0xf]
    %v4609 = vld [vmem:[#allocation13 + $0x1a4] sm:$0xf]
    %v4610 = vld [vmem:[#allocation13 + $0x1a8] sm:$0xf]
    %v4611 = vld [vmem:[#allocation13 + $0x1ac] sm:$0xf]
    %v4612 = vld [vmem:[#allocation13 + $0x1b0] sm:$0xf]
    %v4613 = vld [vmem:[#allocation13 + $0x1b4] sm:$0xf]
    %v4614 = vld [vmem:[#allocation13 + $0x1b8] sm:$0xf]
    %v4615 = vld [vmem:[#allocation13 + $0x1bc] sm:$0xf]
    %v4616 = vld [vmem:[#allocation13 + $0x1c0] sm:$0xf]
    %v4617 = vld [vmem:[#allocation13 + $0x1c4] sm:$0xf]
    %v4618 = vld [vmem:[#allocation13 + $0x1c8] sm:$0xf]
    %v4619 = vld [vmem:[#allocation13 + $0x1cc] sm:$0xf]
    %v4620 = vld [vmem:[#allocation13 + $0x1d0] sm:$0xf]
    %v4621 = vld [vmem:[#allocation13 + $0x1d4] sm:$0xf]
    %v4622 = vld [vmem:[#allocation13 + $0x1d8] sm:$0xf]
    %v4623 = vld [vmem:[#allocation13 + $0x1dc] sm:$0xf]
    %v4624 = vld [vmem:[#allocation13 + $0x1e0] sm:$0xf]
    %v4625 = vld [vmem:[#allocation13 + $0x1e4] sm:$0xf]
    %v4626 = vld [vmem:[#allocation13 + $0x1e8] sm:$0xf]
    %v4627 = vld [vmem:[#allocation13 + $0x1ec] sm:$0xf]
    %v4628 = vld [vmem:[#allocation13 + $0x1f0] sm:$0xf]
    %v4629 = vld [vmem:[#allocation13 + $0x1f4] sm:$0xf]
    %v4630 = vld [vmem:[#allocation13 + $0x1f8] sm:$0xf]
    %v4631 = vld [vmem:[#allocation13 + $0x1fc] sm:$0xf]
    %v4632 = vld [vmem:[#allocation14] sm:$0x1]
    %v4634 = vlaneseq
    %v4635 = vshrl.u32 %v4634, 7
    %v4636 = vsub.s32 0, %v4635
    %v4637 = vrot.slane %v4632, %v4636
    %v4767 = vunpack.c.l.b16 %v4504
    %v4768 = vunpack.c.l.b16 %v4505
    %v4769 = vunpack.c.l.b16 %v4506
    %v4770 = vunpack.c.l.b16 %v4507
    %v4771 = vunpack.c.l.b16 %v4508
    %v4772 = vunpack.c.l.b16 %v4509
    %v4773 = vunpack.c.l.b16 %v4510
    %v4774 = vunpack.c.l.b16 %v4511
    %v4775 = vunpack.c.l.b16 %v4512
    %v4776 = vunpack.c.l.b16 %v4513
    %v4777 = vunpack.c.l.b16 %v4514
    %v4778 = vunpack.c.l.b16 %v4515
    %v4779 = vunpack.c.l.b16 %v4516
    %v4780 = vunpack.c.l.b16 %v4517
    %v4781 = vunpack.c.l.b16 %v4518
    %v4782 = vunpack.c.l.b16 %v4519
    %v4783 = vunpack.c.l.b16 %v4520
    %v4784 = vunpack.c.l.b16 %v4521
    %v4785 = vunpack.c.l.b16 %v4522
    %v4786 = vunpack.c.l.b16 %v4523
    %v4787 = vunpack.c.l.b16 %v4524
    %v4788 = vunpack.c.l.b16 %v4525
    %v4789 = vunpack.c.l.b16 %v4526
    %v4790 = vunpack.c.l.b16 %v4527
    %v4791 = vunpack.c.l.b16 %v4528
    %v4792 = vunpack.c.l.b16 %v4529
    %v4793 = vunpack.c.l.b16 %v4530
    %v4794 = vunpack.c.l.b16 %v4531
    %v4795 = vunpack.c.l.b16 %v4532
    %v4796 = vunpack.c.l.b16 %v4533
    %v4797 = vunpack.c.l.b16 %v4534
    %v4798 = vunpack.c.l.b16 %v4535
    %v4799 = vunpack.c.l.b16 %v4536
    %v4800 = vunpack.c.l.b16 %v4537
    %v4801 = vunpack.c.l.b16 %v4538
    %v4802 = vunpack.c.l.b16 %v4539
    %v4803 = vunpack.c.l.b16 %v4540
    %v4804 = vunpack.c.l.b16 %v4541
    %v4805 = vunpack.c.l.b16 %v4542
    %v4806 = vunpack.c.l.b16 %v4543
    %v4807 = vunpack.c.l.b16 %v4544
    %v4808 = vunpack.c.l.b16 %v4545
    %v4809 = vunpack.c.l.b16 %v4546
    %v4810 = vunpack.c.l.b16 %v4547
    %v4811 = vunpack.c.l.b16 %v4548
    %v4812 = vunpack.c.l.b16 %v4549
    %v4813 = vunpack.c.l.b16 %v4550
    %v4814 = vunpack.c.l.b16 %v4551
    %v4815 = vunpack.c.l.b16 %v4552
    %v4816 = vunpack.c.l.b16 %v4553
    %v4817 = vunpack.c.l.b16 %v4554
    %v4818 = vunpack.c.l.b16 %v4555
    %v4819 = vunpack.c.l.b16 %v4556
    %v4820 = vunpack.c.l.b16 %v4557
    %v4821 = vunpack.c.l.b16 %v4558
    %v4822 = vunpack.c.l.b16 %v4559
    %v4823 = vunpack.c.l.b16 %v4560
    %v4824 = vunpack.c.l.b16 %v4561
    %v4825 = vunpack.c.l.b16 %v4562
    %v4826 = vunpack.c.l.b16 %v4563
    %v4827 = vunpack.c.l.b16 %v4564
    %v4828 = vunpack.c.l.b16 %v4565
    %v4829 = vunpack.c.l.b16 %v4566
    %v4830 = vunpack.c.l.b16 %v4567
    %v4831 = vunpack.c.l.b16 %v4568
    %v4832 = vunpack.c.l.b16 %v4569
    %v4833 = vunpack.c.l.b16 %v4570
    %v4834 = vunpack.c.l.b16 %v4571
    %v4835 = vunpack.c.l.b16 %v4572
    %v4836 = vunpack.c.l.b16 %v4573
    %v4837 = vunpack.c.l.b16 %v4574
    %v4838 = vunpack.c.l.b16 %v4575
    %v4839 = vunpack.c.l.b16 %v4576
    %v4840 = vunpack.c.l.b16 %v4577
    %v4841 = vunpack.c.l.b16 %v4578
    %v4842 = vunpack.c.l.b16 %v4579
    %v4843 = vunpack.c.l.b16 %v4580
    %v4844 = vunpack.c.l.b16 %v4581
    %v4845 = vunpack.c.l.b16 %v4582
    %v4846 = vunpack.c.l.b16 %v4583
    %v4847 = vunpack.c.l.b16 %v4584
    %v4848 = vunpack.c.l.b16 %v4585
    %v4849 = vunpack.c.l.b16 %v4586
    %v4850 = vunpack.c.l.b16 %v4587
    %v4851 = vunpack.c.l.b16 %v4588
    %v4852 = vunpack.c.l.b16 %v4589
    %v4853 = vunpack.c.l.b16 %v4590
    %v4854 = vunpack.c.l.b16 %v4591
    %v4855 = vunpack.c.l.b16 %v4592
    %v4856 = vunpack.c.l.b16 %v4593
    %v4857 = vunpack.c.l.b16 %v4594
    %v4858 = vunpack.c.l.b16 %v4595
    %v4859 = vunpack.c.l.b16 %v4596
    %v4860 = vunpack.c.l.b16 %v4597
    %v4861 = vunpack.c.l.b16 %v4598
    %v4862 = vunpack.c.l.b16 %v4599
    %v4863 = vunpack.c.l.b16 %v4600
    %v4864 = vunpack.c.l.b16 %v4601
    %v4865 = vunpack.c.l.b16 %v4602
    %v4866 = vunpack.c.l.b16 %v4603
    %v4867 = vunpack.c.l.b16 %v4604
    %v4868 = vunpack.c.l.b16 %v4605
    %v4869 = vunpack.c.l.b16 %v4606
    %v4870 = vunpack.c.l.b16 %v4607
    %v4871 = vunpack.c.l.b16 %v4608
    %v4872 = vunpack.c.l.b16 %v4609
    %v4873 = vunpack.c.l.b16 %v4610
    %v4874 = vunpack.c.l.b16 %v4611
    %v4875 = vunpack.c.l.b16 %v4612
    %v4876 = vunpack.c.l.b16 %v4613
    %v4877 = vunpack.c.l.b16 %v4614
    %v4878 = vunpack.c.l.b16 %v4615
    %v4879 = vunpack.c.l.b16 %v4616
    %v4880 = vunpack.c.l.b16 %v4617
    %v4881 = vunpack.c.l.b16 %v4618
    %v4882 = vunpack.c.l.b16 %v4619
    %v4883 = vunpack.c.l.b16 %v4620
    %v4884 = vunpack.c.l.b16 %v4621
    %v4885 = vunpack.c.l.b16 %v4622
    %v4886 = vunpack.c.l.b16 %v4623
    %v4887 = vunpack.c.l.b16 %v4624
    %v4888 = vunpack.c.l.b16 %v4625
    %v4889 = vunpack.c.l.b16 %v4626
    %v4890 = vunpack.c.l.b16 %v4627
    %v4891 = vunpack.c.l.b16 %v4628
    %v4892 = vunpack.c.l.b16 %v4629
    %v4893 = vunpack.c.l.b16 %v4630
    %v4894 = vunpack.c.l.b16 %v4631
    %v4895 = vpack.c.b16 %v4768, %v4767
    %v4896 = vpack.c.b16 %v4770, %v4769
    %v4897 = vpack.c.b16 %v4772, %v4771
    %v4898 = vpack.c.b16 %v4774, %v4773
    %v4899 = vpack.c.b16 %v4776, %v4775
    %v4900 = vpack.c.b16 %v4778, %v4777
    %v4901 = vpack.c.b16 %v4780, %v4779
    %v4902 = vpack.c.b16 %v4782, %v4781
    %v4903 = vpack.c.b16 %v4784, %v4783
    %v4904 = vpack.c.b16 %v4786, %v4785
    %v4905 = vpack.c.b16 %v4788, %v4787
    %v4906 = vpack.c.b16 %v4790, %v4789
    %v4907 = vpack.c.b16 %v4792, %v4791
    %v4908 = vpack.c.b16 %v4794, %v4793
    %v4909 = vpack.c.b16 %v4796, %v4795
    %v4910 = vpack.c.b16 %v4798, %v4797
    %v4911 = vpack.c.b16 %v4800, %v4799
    %v4912 = vpack.c.b16 %v4802, %v4801
    %v4913 = vpack.c.b16 %v4804, %v4803
    %v4914 = vpack.c.b16 %v4806, %v4805
    %v4915 = vpack.c.b16 %v4808, %v4807
    %v4916 = vpack.c.b16 %v4810, %v4809
    %v4917 = vpack.c.b16 %v4812, %v4811
    %v4918 = vpack.c.b16 %v4814, %v4813
    %v4919 = vpack.c.b16 %v4816, %v4815
    %v4920 = vpack.c.b16 %v4818, %v4817
    %v4921 = vpack.c.b16 %v4820, %v4819
    %v4922 = vpack.c.b16 %v4822, %v4821
    %v4923 = vpack.c.b16 %v4824, %v4823
    %v4924 = vpack.c.b16 %v4826, %v4825
    %v4925 = vpack.c.b16 %v4828, %v4827
    %v4926 = vpack.c.b16 %v4830, %v4829
    %v4927 = vpack.c.b16 %v4832, %v4831
    %v4928 = vpack.c.b16 %v4834, %v4833
    %v4929 = vpack.c.b16 %v4836, %v4835
    %v4930 = vpack.c.b16 %v4838, %v4837
    %v4931 = vpack.c.b16 %v4840, %v4839
    %v4932 = vpack.c.b16 %v4842, %v4841
    %v4933 = vpack.c.b16 %v4844, %v4843
    %v4934 = vpack.c.b16 %v4846, %v4845
    %v4935 = vpack.c.b16 %v4848, %v4847
    %v4936 = vpack.c.b16 %v4850, %v4849
    %v4937 = vpack.c.b16 %v4852, %v4851
    %v4938 = vpack.c.b16 %v4854, %v4853
    %v4939 = vpack.c.b16 %v4856, %v4855
    %v4940 = vpack.c.b16 %v4858, %v4857
    %v4941 = vpack.c.b16 %v4860, %v4859
    %v4942 = vpack.c.b16 %v4862, %v4861
    %v4943 = vpack.c.b16 %v4864, %v4863
    %v4944 = vpack.c.b16 %v4866, %v4865
    %v4945 = vpack.c.b16 %v4868, %v4867
    %v4946 = vpack.c.b16 %v4870, %v4869
    %v4947 = vpack.c.b16 %v4872, %v4871
    %v4948 = vpack.c.b16 %v4874, %v4873
    %v4949 = vpack.c.b16 %v4876, %v4875
    %v4950 = vpack.c.b16 %v4878, %v4877
    %v4951 = vpack.c.b16 %v4880, %v4879
    %v4952 = vpack.c.b16 %v4882, %v4881
    %v4953 = vpack.c.b16 %v4884, %v4883
    %v4954 = vpack.c.b16 %v4886, %v4885
    %v4955 = vpack.c.b16 %v4888, %v4887
    %v4956 = vpack.c.b16 %v4890, %v4889
    %v4957 = vpack.c.b16 %v4892, %v4891
    %v4958 = vpack.c.b16 %v4894, %v4893
    %5023 = vmatprep.subr.bf16.mxu0 0
    %5024 = vmatpush1.bf16.msra.mxu0 %v4902
    %5025 = vmatprep.subr.bf16.mxu0 0
    %5026 = vmatpush1.bf16.msra.mxu0 %v4901
    %5027 = vmatprep.subr.bf16.mxu0 0
    %5028 = vmatpush1.bf16.msra.mxu0 %v4900
    %5029 = vmatprep.subr.bf16.mxu0 0
    %5030 = vmatpush1.bf16.msra.mxu0 %v4899
    %5031 = vmatprep.subr.bf16.mxu0 0
    %5032 = vmatpush1.bf16.msra.mxu0 %v4898
    %5033 = vmatprep.subr.bf16.mxu0 0
    %5034 = vmatpush1.bf16.msra.mxu0 %v4897
    %5035 = vmatprep.subr.bf16.mxu0 0
    %5036 = vmatpush1.bf16.msra.mxu0 %v4896
    %5037 = vmatprep.subr.bf16.mxu0 0
    %5038 = vmatpush1.bf16.msra.mxu0 %v4895
    %5039 = vmatprep.subr.bf16.mxu0 0
    %5040 = vmatpush2.bf16.msra.mxu0 %v4910
    %5041 = vmatprep.subr.bf16.mxu0 0
    %5042 = vmatpush2.bf16.msra.mxu0 %v4909
    %5043 = vmatprep.subr.bf16.mxu0 0
    %5044 = vmatpush2.bf16.msra.mxu0 %v4908
    %5045 = vmatprep.subr.bf16.mxu0 0
    %5046 = vmatpush2.bf16.msra.mxu0 %v4907
    %5047 = vmatprep.subr.bf16.mxu0 0
    %5048 = vmatpush2.bf16.msra.mxu0 %v4906
    %5049 = vmatprep.subr.bf16.mxu0 0
    %5050 = vmatpush2.bf16.msra.mxu0 %v4905
    %5051 = vmatprep.subr.bf16.mxu0 0
    %5052 = vmatpush2.bf16.msra.mxu0 %v4904
    %5053 = vmatprep.subr.bf16.mxu0 0
    %5054 = vmatpush2.bf16.msra.mxu0 %v4903
    %5055 = vmatprep.mubr.bf16.mxu0 %v4497
    %5056 = vmatmul.mubr.bf16.gmra.mxu0 %v4496
    %v5057 = vpop.f32.mrf.mxu0
    %v5058 = vadd.f32 %v4637, %v5057
    %v5059 = vpop.f32.mrf.mxu0
    %v5060 = vpop.f32.mrf.mxu0
    %v5061 = vpop.f32.mrf.mxu0
    %5062 = vdwg.mxu0
    %5063 = vmatprep.subr.bf16.mxu0 0
    %5064 = vmatpush1.bf16.msra.mxu0 %v4918
    %5065 = vmatprep.subr.bf16.mxu0 0
    %5066 = vmatpush1.bf16.msra.mxu0 %v4917
    %5067 = vmatprep.subr.bf16.mxu0 0
    %5068 = vmatpush1.bf16.msra.mxu0 %v4916
    %5069 = vmatprep.subr.bf16.mxu0 0
    %5070 = vmatpush1.bf16.msra.mxu0 %v4915
    %5071 = vmatprep.subr.bf16.mxu0 0
    %5072 = vmatpush1.bf16.msra.mxu0 %v4914
    %5073 = vmatprep.subr.bf16.mxu0 0
    %5074 = vmatpush1.bf16.msra.mxu0 %v4913
    %5075 = vmatprep.subr.bf16.mxu0 0
    %5076 = vmatpush1.bf16.msra.mxu0 %v4912
    %5077 = vmatprep.subr.bf16.mxu0 0
    %5078 = vmatpush1.bf16.msra.mxu0 %v4911
    %5079 = vmatprep.subr.bf16.mxu0 0
    %5080 = vmatpush2.bf16.msra.mxu0 %v4926
    %5081 = vmatprep.subr.bf16.mxu0 0
    %5082 = vmatpush2.bf16.msra.mxu0 %v4925
    %5083 = vmatprep.subr.bf16.mxu0 0
    %5084 = vmatpush2.bf16.msra.mxu0 %v4924
    %5085 = vmatprep.subr.bf16.mxu0 0
    %5086 = vmatpush2.bf16.msra.mxu0 %v4923
    %5087 = vmatprep.subr.bf16.mxu0 0
    %5088 = vmatpush2.bf16.msra.mxu0 %v4922
    %5089 = vmatprep.subr.bf16.mxu0 0
    %5090 = vmatpush2.bf16.msra.mxu0 %v4921
    %5091 = vmatprep.subr.bf16.mxu0 0
    %5092 = vmatpush2.bf16.msra.mxu0 %v4920
    %5093 = vmatprep.subr.bf16.mxu0 0
    %5094 = vmatpush2.bf16.msra.mxu0 %v4919
    %5095 = vmatprep.mubr.bf16.mxu0 %v4499
    %5096 = vmatmul.mubr.bf16.gmra.mxu0 %v4498
    %v5097 = vpop.f32.mrf.mxu0
    %v5098 = vadd.f32 %v5058, %v5097
    %v5099 = vpop.f32.mrf.mxu0
    %v5100 = vpop.f32.mrf.mxu0
    %v5101 = vpop.f32.mrf.mxu0
    %5102 = vdwg.mxu0
    %5103 = vmatprep.subr.bf16.mxu0 0
    %5104 = vmatpush1.bf16.msra.mxu0 %v4934
    %5105 = vmatprep.subr.bf16.mxu0 0
    %5106 = vmatpush1.bf16.msra.mxu0 %v4933
    %5107 = vmatprep.subr.bf16.mxu0 0
    %5108 = vmatpush1.bf16.msra.mxu0 %v4932
    %5109 = vmatprep.subr.bf16.mxu0 0
    %5110 = vmatpush1.bf16.msra.mxu0 %v4931
    %5111 = vmatprep.subr.bf16.mxu0 0
    %5112 = vmatpush1.bf16.msra.mxu0 %v4930
    %5113 = vmatprep.subr.bf16.mxu0 0
    %5114 = vmatpush1.bf16.msra.mxu0 %v4929
    %5115 = vmatprep.subr.bf16.mxu0 0
    %5116 = vmatpush1.bf16.msra.mxu0 %v4928
    %5117 = vmatprep.subr.bf16.mxu0 0
    %5118 = vmatpush1.bf16.msra.mxu0 %v4927
    %5119 = vmatprep.subr.bf16.mxu0 0
    %5120 = vmatpush2.bf16.msra.mxu0 %v4942
    %5121 = vmatprep.subr.bf16.mxu0 0
    %5122 = vmatpush2.bf16.msra.mxu0 %v4941
    %5123 = vmatprep.subr.bf16.mxu0 0
    %5124 = vmatpush2.bf16.msra.mxu0 %v4940
    %5125 = vmatprep.subr.bf16.mxu0 0
    %5126 = vmatpush2.bf16.msra.mxu0 %v4939
    %5127 = vmatprep.subr.bf16.mxu0 0
    %5128 = vmatpush2.bf16.msra.mxu0 %v4938
    %5129 = vmatprep.subr.bf16.mxu0 0
    %5130 = vmatpush2.bf16.msra.mxu0 %v4937
    %5131 = vmatprep.subr.bf16.mxu0 0
    %5132 = vmatpush2.bf16.msra.mxu0 %v4936
    %5133 = vmatprep.subr.bf16.mxu0 0
    %5134 = vmatpush2.bf16.msra.mxu0 %v4935
    %5135 = vmatprep.mubr.bf16.mxu0 %v4501
    %5136 = vmatmul.mubr.bf16.gmra.mxu0 %v4500
    %v5137 = vpop.f32.mrf.mxu0
    %v5138 = vadd.f32 %v5098, %v5137
    %v5139 = vpop.f32.mrf.mxu0
    %v5140 = vpop.f32.mrf.mxu0
    %v5141 = vpop.f32.mrf.mxu0
    %5142 = vdwg.mxu0
    %5143 = vmatprep.subr.bf16.mxu0 0
    %5144 = vmatpush1.bf16.msra.mxu0 %v4950
    %5145 = vmatprep.subr.bf16.mxu0 0
    %5146 = vmatpush1.bf16.msra.mxu0 %v4949
    %5147 = vmatprep.subr.bf16.mxu0 0
    %5148 = vmatpush1.bf16.msra.mxu0 %v4948
    %5149 = vmatprep.subr.bf16.mxu0 0
    %5150 = vmatpush1.bf16.msra.mxu0 %v4947
    %5151 = vmatprep.subr.bf16.mxu0 0
    %5152 = vmatpush1.bf16.msra.mxu0 %v4946
    %5153 = vmatprep.subr.bf16.mxu0 0
    %5154 = vmatpush1.bf16.msra.mxu0 %v4945
    %5155 = vmatprep.subr.bf16.mxu0 0
    %5156 = vmatpush1.bf16.msra.mxu0 %v4944
    %5157 = vmatprep.subr.bf16.mxu0 0
    %5158 = vmatpush1.bf16.msra.mxu0 %v4943
    %5159 = vmatprep.subr.bf16.mxu0 0
    %5160 = vmatpush2.bf16.msra.mxu0 %v4958
    %5161 = vmatprep.subr.bf16.mxu0 0
    %5162 = vmatpush2.bf16.msra.mxu0 %v4957
    %5163 = vmatprep.subr.bf16.mxu0 0
    %5164 = vmatpush2.bf16.msra.mxu0 %v4956
    %5165 = vmatprep.subr.bf16.mxu0 0
    %5166 = vmatpush2.bf16.msra.mxu0 %v4955
    %5167 = vmatprep.subr.bf16.mxu0 0
    %5168 = vmatpush2.bf16.msra.mxu0 %v4954
    %5169 = vmatprep.subr.bf16.mxu0 0
    %5170 = vmatpush2.bf16.msra.mxu0 %v4953
    %5171 = vmatprep.subr.bf16.mxu0 0
    %5172 = vmatpush2.bf16.msra.mxu0 %v4952
    %5173 = vmatprep.subr.bf16.mxu0 0
    %5174 = vmatpush2.bf16.msra.mxu0 %v4951
    %5175 = vmatprep.mubr.bf16.mxu0 %v4503
    %5176 = vmatmul.mubr.bf16.gmra.mxu0 %v4502
    %v5177 = vpop.f32.mrf.mxu0
    %v5178 = vadd.f32 %v5138, %v5177
    %v5179 = vpop.f32.mrf.mxu0
    %v5180 = vpop.f32.mrf.mxu0
    %v5181 = vpop.f32.mrf.mxu0
    %5182 = vdwg.mxu0
    %v5183 = vsub.f32 0.0, %v5178
    %v5184 = vmul.f32 %v5183, 1.442695
    %v5185 = vpow.pop %v5184
    %v5186 = vadd.f32 %v5185, 1.0
    %v5187 = vrcp.pop %v5186
    %v5188 = vmul.f32 1.0, %v5187
    %5189 = vst [vmem:[%s11] sm:$0xff] %v5188
    // Predicated region
    $region70: #{cmu_forward.1} parent=1 // pred_check
      _
    $region71: #{cmu_forward.1} parent=1 // pred_check_branch
      %5191 = sbr.rel (0) target = $region73
    $region72: #{cmu_forward.1} parent=1 // pred_region
      %s5193 = ssub.s32 256, 256
      %5194 = vsyncadd [#allocation4], %s5193
      %s5196 = sshll.u32 [#allocation16], 4
      %s5197 = int_to_ptr.vmem [resolvable:$true] %s5196
      %5199 = dma.vmem_to_hbm [thread:$0]  %s5197, 256, %s9, [#allocation4]
    $region73: #{cmu_forward.1} parent=1 // pred_fallthru
      _
    // Predicated region
    $region74: #{cmu_forward.1} parent=1 // pred_check
      _
    $region75: #{cmu_forward.1} parent=1 // pred_check_branch
      %5201 = sbr.rel (0) target = $region77
    $region76: #{cmu_forward.1} parent=1 // pred_region
      _
    $region77: #{cmu_forward.1} parent=1 // pred_fallthru
      _
    // Predicated region
    $region78: #{cmu_forward.1} parent=1 // pred_check
      _
    $region79: #{cmu_forward.1} parent=1 // pred_check_branch
      %5203 = sbr.rel (0) target = $region81
    $region80: #{cmu_forward.1} parent=1 // pred_region
      _
    $region81: #{cmu_forward.1} parent=1 // pred_fallthru
      _
    // Predicated region
    $region82: #{cmu_forward.1} parent=1 // pred_check
      _
    $region83: #{cmu_forward.1} parent=1 // pred_check_branch
      %5205 = sbr.rel (0) target = $region85
    $region84: #{cmu_forward.1} parent=1 // pred_region
      %5206 = dma.done [#allocation4], 256
    $region85: #{cmu_forward.1} parent=1 // pred_fallthru
      _
    // Predicated region
    $region86: #{cmu_forward.1} parent=1 // pred_check
      _
    $region87: #{cmu_forward.1} parent=1 // pred_check_branch
      %5208 = sbr.rel (0) target = $region89
    $region88: #{cmu_forward.1} parent=1 // pred_region
      _
    $region89: #{cmu_forward.1} parent=1 // pred_fallthru
      _
    // Predicated region
    $region90: #{cmu_forward.1} parent=1 // pred_check
      _
    $region91: #{cmu_forward.1} parent=1 // pred_check_branch
      %5210 = sbr.rel (0) target = $region93
    $region92: #{cmu_forward.1} parent=1 // pred_region
      _
    $region93: #{cmu_forward.1} parent=1 // pred_fallthru
      _
    %5211 = vsyncpa [#allocation3], 1
    %5212 = vsyncpa [#allocation6], 1
    %5213 = vsyncpa [#allocation9], 1
    %5214 = vsyncpa [#allocation12], 1
    %5215 = vsyncpa [#allocation15], 1
    %5216 = vsyncpa [#allocation4], 1

</llo_original>
